<compile_context>
chip_gen: v7x
topology: tpu7x:2x2x1
jax: 0.10.0
libtpu: 0.0.40
codegen_flags: <defaults>
</compile_context>

<pallas_src>
import functools

import jax
import jax.numpy as jnp
from jax.experimental import pallas as pl
from jax.experimental.pallas import tpu as pltpu

_GN_GROUPS = 32
_GN_EPS = 1e-5


def _erf(x):
    # Abramowitz & Stegun 7.1.26 rational approximation, |error| <= 1.5e-7.
    # Uses only exp / mul / add / where, which always lower on Mosaic.
    p = 0.3275911
    a1, a2, a3, a4, a5 = (0.254829592, -0.284496736, 1.421413741,
                          -1.453152027, 1.061405429)
    z = jnp.abs(x)
    t = 1.0 / (1.0 + p * z)
    poly = t * (a1 + t * (a2 + t * (a3 + t * (a4 + t * a5))))
    y = 1.0 - poly * jnp.exp(-z * z)
    return jnp.where(x >= 0.0, y, -y)


def _gelu(x):
    # exact (erf-based) GELU, matching torch.nn.GELU() default (approximate='none')
    return 0.5 * x * (1.0 + _erf(x * 0.7071067811865476))


def _encoder_kernel(x_ref, w1_ref, b1_ref, g1_ref, be1_ref,
                    w2_ref, b2_ref, g2_ref, be2_ref, grp_ref,
                    o_ref, pp_ref, h1p_ref,
                    *, B, Hp, Wp, Cin, Cout, pool, mxu_dtype):
    """One batch block (B images) per grid step."""
    f32 = jnp.float32
    HW = Hp * Wp

    # ---- zero only the 1-pixel conv border of the padded scratch images ------
    # (interior is fully overwritten below; done every step so the batch axis
    #  can stay "parallel" -- on megacore each TC owns a private scratch copy).
    for ref, c in ((pp_ref, Cin), (h1p_ref, Cout)):
        zrow = jnp.zeros((B, 1, Wp + 2, c), f32)
        zcol = jnp.zeros((B, Hp + 2, 1, c), f32)
        ref[:, 0:1, :, :] = zrow
        ref[:, Hp + 1:Hp + 2, :, :] = zrow
        ref[:, :, 0:1, :] = zcol
        ref[:, :, Wp + 1:Wp + 2, :] = zcol

    # ---- AvgPool2d(kernel_size=2, stride=2), vectorized ----------------------
    if pool:
        # x_ref is (B, 2*Hp, Wp, 2*Cin): the wrapper pre-folded adjacent W pairs
        # into the lane dim, so pooling is one H-pair add + one lane-half add.
        xv = x_ref[...].astype(f32).reshape(B, Hp, 2, Wp, 2 * Cin)
        row = xv[:, :, 0, :, :] + xv[:, :, 1, :, :]           # (B, Hp, Wp, 2*Cin)
        pooled = 0.25 * (row[..., :Cin] + row[..., Cin:])     # (B, Hp, Wp, Cin)
    else:
        pooled = x_ref[...].astype(f32)
    pp_ref[:, 1:Hp + 1, 1:Wp + 1, :] = pooled

    def conv3x3(src_ref, w_ref, b_ref, cin):
        # im2col: concatenate the 9 shifted taps along lanes, then one MXU
        # matmul with K = 9*cin (vs 9 separate K = cin matmuls).
        taps = [src_ref[:, ky:ky + Hp, kx:kx + Wp, :]
                for ky in range(3) for kx in range(3)]
        patch = jnp.concatenate(taps, axis=-1)                # (B, Hp, Wp, 9*cin)
        patch = patch.reshape(B * HW, 9 * cin).astype(mxu_dtype)
        y = jnp.dot(patch, w_ref[...].astype(mxu_dtype),
                    preferred_element_type=f32)
        return y + b_ref[...]                                 # (B*HW, Cout)

    def group_norm(z, gamma_ref, beta_ref):
        # z: (B, HW, C).  Per-group stats = per-channel moments averaged over
        # each group's channels; both moments go through one fused matmul.
        mean_c = jnp.mean(z, axis=1)                          # (B, C)
        msq_c = jnp.mean(z * z, axis=1)                       # (B, C)
        stats = jnp.concatenate([mean_c, msq_c], axis=0)      # (2B, C)
        stats_g = jnp.dot(stats, grp_ref[...], preferred_element_type=f32)
        mean_g = stats_g[:B].reshape(B, 1, Cout)
        msq_g = stats_g[B:].reshape(B, 1, Cout)
        inv = jax.lax.rsqrt(msq_g - mean_g * mean_g + _GN_EPS)
        gamma = gamma_ref[...].reshape(1, 1, Cout)
        beta = beta_ref[...].reshape(1, 1, Cout)
        return (z - mean_g) * inv * gamma + beta

    # conv1 -> GroupNorm -> GELU
    h1 = conv3x3(pp_ref, w1_ref, b1_ref, Cin).reshape(B, HW, Cout)
    h1 = _gelu(group_norm(h1, g1_ref, be1_ref))
    h1p_ref[:, 1:Hp + 1, 1:Wp + 1, :] = h1.reshape(B, Hp, Wp, Cout)

    # conv2 -> GroupNorm -> GELU
    h2 = conv3x3(h1p_ref, w2_ref, b2_ref, Cout).reshape(B, HW, Cout)
    h2 = _gelu(group_norm(h2, g2_ref, be2_ref))

    # TODO(synk): when Cout < 128 a lane-dense packed output (N, Hp, Wp*Cout)
    # would avoid masked partial stores on writeback; for typical encoder widths
    # (Cout >= 128) this NHWC store is already lane-dense.
    o_ref[...] = h2.reshape(B, Hp, Wp, Cout).astype(o_ref.dtype)


def encoder_block(x_nchw, params, *, pool=True, mxu_dtype=jnp.float32,
                  vmem_budget_bytes=40 * 1024 * 1024):
    """Pallas implementation of _EncoderBlock.forward. x_nchw: (N, Cin, H, W).

    Set mxu_dtype=jnp.bfloat16 on v6e/v7x for ~2x MXU throughput (accumulation
    stays f32); f32 default keeps the numeric comparison tight.
    """
    N, Cin, H, W = x_nchw.shape
    Cout = params["w1"].shape[-1]
    assert Cout % _GN_GROUPS == 0, "GroupNorm(32, C) requires C % 32 == 0"
    if pool:
        assert H % 2 == 0 and W % 2 == 0
        Hp, Wp = H // 2, W // 2
    else:
        Hp, Wp = H, W

    x = jnp.transpose(x_nchw, (0, 2, 3, 1)).astype(jnp.float32)          # NHWC
    if pool:
        # Free row-major reinterpretation: fold adjacent W pairs into the lane
        # dim so in-kernel pooling needs no strided sublane access.
        x = x.reshape(N, H, Wp, 2 * Cin)

    # im2col-reshaped conv weights: (3,3,ci,co) -> (9*ci, co); K order matches
    # the (ky, kx, ci) tap concatenation order inside the kernel.
    w1r = params["w1"].astype(jnp.float32).reshape(9 * Cin, Cout)
    w2r = params["w2"].astype(jnp.float32).reshape(9 * Cout, Cout)

    # group-membership averaging matrix for GroupNorm
    cpg = Cout // _GN_GROUPS
    gid = jnp.arange(Cout) // cpg
    grp = (gid[:, None] == gid[None, :]).astype(jnp.float32) / cpg

    def vmem_est(b):
        hw = Hp * Wp
        in_elems = b * H * W * Cin if pool else b * hw * Cin
        io = 2 * (in_elems + b * hw * Cout)                   # double-buffered I/O
        pad = b * (Hp + 2) * (Wp + 2) * (Cin + Cout)          # padded halo images
        patch = b * hw * 9 * max(Cin, Cout)                   # live im2col value
        live = 4 * b * hw * Cout                              # conv/GN/GELU temps
        par = 9 * Cin * Cout + 9 * Cout * Cout + Cout * Cout + 6 * Cout
        return (io + pad + patch + live + par) * 4

    # Largest batch block that divides N and fits the VMEM budget (budget is
    # conservative so the same tiling also fits v7x's 64 MiB per-TC VMEM).
    B = 1
    for b in range(1, N + 1):
        if N % b == 0 and vmem_est(b) <= vmem_budget_bytes:
            B = b
    # TODO(synk): if vmem_est(1) exceeds the budget (very large H*W*Cout), add
    # spatial row-stripe tiling with a 1-row halo instead of whole images.

    kern = functools.partial(_encoder_kernel, B=B, Hp=Hp, Wp=Wp, Cin=Cin,
                             Cout=Cout, pool=pool, mxu_dtype=mxu_dtype)

    def full(shape):
        return pl.BlockSpec(shape, lambda n: (0,) * len(shape))

    in_block = (B, H, Wp, 2 * Cin) if pool else (B, Hp, Wp, Cin)
    vmem_limit = int(min(56 * 1024 * 1024,
                         max(32 * 1024 * 1024, 2 * vmem_est(B))))

    out_nhwc = pl.pallas_call(
        kern,
        out_shape=jax.ShapeDtypeStruct((N, Hp, Wp, Cout), jnp.float32),
        grid=(N // B,),
        in_specs=[
            pl.BlockSpec(in_block, lambda n: (n, 0, 0, 0)),              # x block
            full((9 * Cin, Cout)),                                       # w1 (im2col)
            full((1, Cout)), full((1, Cout)), full((1, Cout)),           # b1, g1, be1
            full((9 * Cout, Cout)),                                      # w2 (im2col)
            full((1, Cout)), full((1, Cout)), full((1, Cout)),           # b2, g2, be2
            full((Cout, Cout)),                                          # group matrix
        ],
        out_specs=pl.BlockSpec((B, Hp, Wp, Cout), lambda n: (n, 0, 0, 0)),
        scratch_shapes=[
            pltpu.VMEM((B, Hp + 2, Wp + 2, Cin), jnp.float32),           # padded pooled x
            pltpu.VMEM((B, Hp + 2, Wp + 2, Cout), jnp.float32),          # padded hidden
        ],
        compiler_params=pltpu.CompilerParams(
            dimension_semantics=("parallel",),
            vmem_limit_bytes=vmem_limit),
    )(x, w1r, params["b1"].astype(jnp.float32), params["g1"].astype(jnp.float32),
      params["be1"].astype(jnp.float32), w2r, params["b2"].astype(jnp.float32),
      params["g2"].astype(jnp.float32), params["be2"].astype(jnp.float32), grp)

    return jnp.transpose(out_nhwc, (0, 3, 1, 2))                         # back to NCHW


# ----------------------------- pure-JAX reference -------------------------------
def _group_norm_ref(x, gamma, beta):
    N, C, H, W = x.shape
    G = _GN_GROUPS
    xg = x.reshape(N, G, C // G, H, W)
    m = xg.mean(axis=(2, 3, 4), keepdims=True)
    v = ((xg - m) ** 2).mean(axis=(2, 3, 4), keepdims=True)
    xn = ((xg - m) / jnp.sqrt(v + _GN_EPS)).reshape(N, C, H, W)
    return xn * gamma.reshape(1, C, 1, 1) + beta.reshape(1, C, 1, 1)


def _reference(x, params, *, pool=True):
    if pool:
        N, C, H, W = x.shape
        x = x.reshape(N, C, H // 2, 2, W // 2, 2).mean(axis=(3, 5))

    def conv(h, w_hwio, b):
        w_oihw = jnp.transpose(w_hwio, (3, 2, 0, 1))
        y = jax.lax.conv_general_dilated(
            h, w_oihw, window_strides=(1, 1), padding="SAME",
            dimension_numbers=("NCHW", "OIHW", "NCHW"))
        return y + b.reshape(1, -1, 1, 1)

    h = conv(x, params["w1"], params["b1"])
    h = jax.nn.gelu(_group_norm_ref(h, params["g1"], params["be1"]), approximate=False)
    h = conv(h, params["w2"], params["b2"])
    h = jax.nn.gelu(_group_norm_ref(h, params["g2"], params["be2"]), approximate=False)
    return h


if __name__ == "__main__":
    key = jax.random.PRNGKey(0)
    ks = jax.random.split(key, 9)

    N, Cin, H, W = 2, 4, 16, 16
    Cout = 32  # GroupNorm(32, Cout) requires a multiple of 32

    x = jax.random.normal(ks[0], (N, Cin, H, W), jnp.float32)
    params = {
        "w1": 0.2 * jax.random.normal(ks[1], (3, 3, Cin, Cout), jnp.float32),
        "b1": 0.1 * jax.random.normal(ks[2], (1, Cout), jnp.float32),
        "g1": 1.0 + 0.1 * jax.random.normal(ks[3], (1, Cout), jnp.float32),
        "be1": 0.1 * jax.random.normal(ks[4], (1, Cout), jnp.float32),
        "w2": 0.2 * jax.random.normal(ks[5], (3, 3, Cout, Cout), jnp.float32),
        "b2": 0.1 * jax.random.normal(ks[6], (1, Cout), jnp.float32),
        "g2": 1.0 + 0.1 * jax.random.normal(ks[7], (1, Cout), jnp.float32),
        "be2": 0.1 * jax.random.normal(ks[8], (1, Cout), jnp.float32),
    }

    out = encoder_block(x, params, pool=True)
    out = jax.block_until_ready(out)

    ref = _reference(x, params, pool=True)
    err = float(jnp.max(jnp.abs(out - ref)))
    assert out.shape == (N, Cout, H // 2, W // 2), out.shape
    assert err < 5e-3, f"max abs error vs pure-JAX reference too large: {err}"
    print("KERNEL_OK")
</pallas_src>

<mosaic_0001>
module attributes {stable_mosaic.version = 11 : i64} {
  func.func @_encoder_kernel(%arg0: i32, %arg1: memref<2x16x8x8xf32, #tpu.memory_space<vmem>>, %arg2: memref<36x32xf32, #tpu.memory_space<vmem>>, %arg3: memref<1x32xf32, #tpu.memory_space<vmem>>, %arg4: memref<1x32xf32, #tpu.memory_space<vmem>>, %arg5: memref<1x32xf32, #tpu.memory_space<vmem>>, %arg6: memref<288x32xf32, #tpu.memory_space<vmem>>, %arg7: memref<1x32xf32, #tpu.memory_space<vmem>>, %arg8: memref<1x32xf32, #tpu.memory_space<vmem>>, %arg9: memref<1x32xf32, #tpu.memory_space<vmem>>, %arg10: memref<32x32xf32, #tpu.memory_space<vmem>>, %arg11: memref<2x8x8x32xf32, #tpu.memory_space<vmem>>, %arg12: memref<2x10x10x4xf32, #tpu.memory_space<vmem>>, %arg13: memref<2x10x10x32xf32, #tpu.memory_space<vmem>>) attributes {dimension_semantics = [#tpu.dimension_semantics<parallel>], iteration_bounds = array<i64: 1>, scalar_prefetch = 0 : i64, scratch_operands = 2 : i64, tpu.core_type = #tpu.core_type<tc>, window_params = [{transform_indices = @transform_0, window_bounds = array<i64: 2, 16, 8, 8>}, {pipeline_mode = #tpu.pipeline_mode<synchronous>, transform_indices = @transform_1, window_bounds = array<i64: 36, 32>}, {pipeline_mode = #tpu.pipeline_mode<synchronous>, transform_indices = @transform_2, window_bounds = array<i64: 1, 32>}, {pipeline_mode = #tpu.pipeline_mode<synchronous>, transform_indices = @transform_3, window_bounds = array<i64: 1, 32>}, {pipeline_mode = #tpu.pipeline_mode<synchronous>, transform_indices = @transform_4, window_bounds = array<i64: 1, 32>}, {pipeline_mode = #tpu.pipeline_mode<synchronous>, transform_indices = @transform_5, window_bounds = array<i64: 288, 32>}, {pipeline_mode = #tpu.pipeline_mode<synchronous>, transform_indices = @transform_6, window_bounds = array<i64: 1, 32>}, {pipeline_mode = #tpu.pipeline_mode<synchronous>, transform_indices = @transform_7, window_bounds = array<i64: 1, 32>}, {pipeline_mode = #tpu.pipeline_mode<synchronous>, transform_indices = @transform_8, window_bounds = array<i64: 1, 32>}, {pipeline_mode = #tpu.pipeline_mode<synchronous>, transform_indices = @transform_9, window_bounds = array<i64: 32, 32>}, {transform_indices = @transform_10, window_bounds = array<i64: 2, 8, 8, 32>}]} {
    %cst = arith.constant 0.000000e+00 : f32
    %0 = vector.broadcast %cst : f32 to vector<2x1x10x4xf32>
    %cst_0 = arith.constant 0.000000e+00 : f32
    %1 = vector.broadcast %cst_0 : f32 to vector<2x10x1x4xf32>
    %c0 = arith.constant 0 : index
    %c0_1 = arith.constant 0 : index
    %c0_2 = arith.constant 0 : index
    %c0_3 = arith.constant 0 : index
    %2 = vector.load %arg12[%c0, %c0_1, %c0_2, %c0_3] : memref<2x10x10x4xf32, #tpu.memory_space<vmem>>, vector<2x1x10x4xf32>
    tpu.vector_store %arg12[%c0, %c0_1, %c0_2, %c0_3], %0 {strides = array<i32>} : memref<2x10x10x4xf32, #tpu.memory_space<vmem>>, vector<2x1x10x4xf32>,
    %c0_4 = arith.constant 0 : index
    %c9 = arith.constant 9 : index
    %c0_5 = arith.constant 0 : index
    %c0_6 = arith.constant 0 : index
    %3 = vector.load %arg12[%c0_4, %c9, %c0_5, %c0_6] : memref<2x10x10x4xf32, #tpu.memory_space<vmem>>, vector<2x1x10x4xf32>
    tpu.vector_store %arg12[%c0_4, %c9, %c0_5, %c0_6], %0 {strides = array<i32>} : memref<2x10x10x4xf32, #tpu.memory_space<vmem>>, vector<2x1x10x4xf32>,
    %c0_7 = arith.constant 0 : index
    %c0_8 = arith.constant 0 : index
    %c0_9 = arith.constant 0 : index
    %c0_10 = arith.constant 0 : index
    %4 = vector.load %arg12[%c0_7, %c0_8, %c0_9, %c0_10] : memref<2x10x10x4xf32, #tpu.memory_space<vmem>>, vector<2x10x1x4xf32>
    tpu.vector_store %arg12[%c0_7, %c0_8, %c0_9, %c0_10], %1 {strides = array<i32>} : memref<2x10x10x4xf32, #tpu.memory_space<vmem>>, vector<2x10x1x4xf32>,
    %c0_11 = arith.constant 0 : index
    %c0_12 = arith.constant 0 : index
    %c9_13 = arith.constant 9 : index
    %c0_14 = arith.constant 0 : index
    %5 = vector.load %arg12[%c0_11, %c0_12, %c9_13, %c0_14] : memref<2x10x10x4xf32, #tpu.memory_space<vmem>>, vector<2x10x1x4xf32>
    tpu.vector_store %arg12[%c0_11, %c0_12, %c9_13, %c0_14], %1 {strides = array<i32>} : memref<2x10x10x4xf32, #tpu.memory_space<vmem>>, vector<2x10x1x4xf32>,
    %cst_15 = arith.constant 0.000000e+00 : f32
    %6 = vector.broadcast %cst_15 : f32 to vector<2x1x10x32xf32>
    %cst_16 = arith.constant 0.000000e+00 : f32
    %7 = vector.broadcast %cst_16 : f32 to vector<2x10x1x32xf32>
    %c0_17 = arith.constant 0 : index
    %c0_18 = arith.constant 0 : index
    %c0_19 = arith.constant 0 : index
    %c0_20 = arith.constant 0 : index
    %8 = vector.load %arg13[%c0_17, %c0_18, %c0_19, %c0_20] : memref<2x10x10x32xf32, #tpu.memory_space<vmem>>, vector<2x1x10x32xf32>
    tpu.vector_store %arg13[%c0_17, %c0_18, %c0_19, %c0_20], %6 {strides = array<i32>} : memref<2x10x10x32xf32, #tpu.memory_space<vmem>>, vector<2x1x10x32xf32>,
    %c0_21 = arith.constant 0 : index
    %c9_22 = arith.constant 9 : index
    %c0_23 = arith.constant 0 : index
    %c0_24 = arith.constant 0 : index
    %9 = vector.load %arg13[%c0_21, %c9_22, %c0_23, %c0_24] : memref<2x10x10x32xf32, #tpu.memory_space<vmem>>, vector<2x1x10x32xf32>
    tpu.vector_store %arg13[%c0_21, %c9_22, %c0_23, %c0_24], %6 {strides = array<i32>} : memref<2x10x10x32xf32, #tpu.memory_space<vmem>>, vector<2x1x10x32xf32>,
    %c0_25 = arith.constant 0 : index
    %c0_26 = arith.constant 0 : index
    %c0_27 = arith.constant 0 : index
    %c0_28 = arith.constant 0 : index
    %10 = vector.load %arg13[%c0_25, %c0_26, %c0_27, %c0_28] : memref<2x10x10x32xf32, #tpu.memory_space<vmem>>, vector<2x10x1x32xf32>
    tpu.vector_store %arg13[%c0_25, %c0_26, %c0_27, %c0_28], %7 {strides = array<i32>} : memref<2x10x10x32xf32, #tpu.memory_space<vmem>>, vector<2x10x1x32xf32>,
    %c0_29 = arith.constant 0 : index
    %c0_30 = arith.constant 0 : index
    %c9_31 = arith.constant 9 : index
    %c0_32 = arith.constant 0 : index
    %11 = vector.load %arg13[%c0_29, %c0_30, %c9_31, %c0_32] : memref<2x10x10x32xf32, #tpu.memory_space<vmem>>, vector<2x10x1x32xf32>
    tpu.vector_store %arg13[%c0_29, %c0_30, %c9_31, %c0_32], %7 {strides = array<i32>} : memref<2x10x10x32xf32, #tpu.memory_space<vmem>>, vector<2x10x1x32xf32>,
    %c0_33 = arith.constant 0 : index
    %c0_34 = arith.constant 0 : index
    %c0_35 = arith.constant 0 : index
    %c0_36 = arith.constant 0 : index
    %12 = vector.load %arg1[%c0_33, %c0_34, %c0_35, %c0_36] : memref<2x16x8x8xf32, #tpu.memory_space<vmem>>, vector<2x16x8x8xf32>
    %13 = vector.shape_cast %12 : vector<2x16x8x8xf32> to vector<2x8x2x8x8xf32>
    %14 = vector.extract_strided_slice %13 {offsets = [0, 0, 0, 0, 0], sizes = [2, 8, 1, 8, 8], strides = [1, 1, 1, 1, 1]} : vector<2x8x2x8x8xf32> to vector<2x8x1x8x8xf32>
    %15 = vector.shape_cast %14 : vector<2x8x1x8x8xf32> to vector<2x8x8x8xf32>
    %16 = vector.extract_strided_slice %13 {offsets = [0, 0, 1, 0, 0], sizes = [2, 8, 1, 8, 8], strides = [1, 1, 1, 1, 1]} : vector<2x8x2x8x8xf32> to vector<2x8x1x8x8xf32>
    %17 = vector.shape_cast %16 : vector<2x8x1x8x8xf32> to vector<2x8x8x8xf32>
    %18 = arith.addf %15, %17 : vector<2x8x8x8xf32>
    %19 = vector.extract_strided_slice %18 {offsets = [0, 0, 0, 0], sizes = [2, 8, 8, 4], strides = [1, 1, 1, 1]} : vector<2x8x8x8xf32> to vector<2x8x8x4xf32>
    %20 = vector.extract_strided_slice %18 {offsets = [0, 0, 0, 4], sizes = [2, 8, 8, 4], strides = [1, 1, 1, 1]} : vector<2x8x8x8xf32> to vector<2x8x8x4xf32>
    %21 = arith.addf %19, %20 : vector<2x8x8x4xf32>
    %cst_37 = arith.constant 2.500000e-01 : f32
    %22 = vector.broadcast %cst_37 : f32 to vector<2x8x8x4xf32>
    %23 = arith.mulf %22, %21 : vector<2x8x8x4xf32>
    %c0_38 = arith.constant 0 : index
    %c1 = arith.constant 1 : index
    %c1_39 = arith.constant 1 : index
    %c0_40 = arith.constant 0 : index
    %24 = vector.load %arg12[%c0_38, %c1, %c1_39, %c0_40] : memref<2x10x10x4xf32, #tpu.memory_space<vmem>>, vector<2x8x8x4xf32>
    tpu.vector_store %arg12[%c0_38, %c1, %c1_39, %c0_40], %23 {strides = array<i32>} : memref<2x10x10x4xf32, #tpu.memory_space<vmem>>, vector<2x8x8x4xf32>,
    %c0_41 = arith.constant 0 : index
    %c0_42 = arith.constant 0 : index
    %c0_43 = arith.constant 0 : index
    %c0_44 = arith.constant 0 : index
    %25 = vector.load %arg12[%c0_41, %c0_42, %c0_43, %c0_44] : memref<2x10x10x4xf32, #tpu.memory_space<vmem>>, vector<2x8x8x4xf32>
    %c0_45 = arith.constant 0 : index
    %c0_46 = arith.constant 0 : index
    %c1_47 = arith.constant 1 : index
    %c0_48 = arith.constant 0 : index
    %26 = vector.load %arg12[%c0_45, %c0_46, %c1_47, %c0_48] : memref<2x10x10x4xf32, #tpu.memory_space<vmem>>, vector<2x8x8x4xf32>
    %c0_49 = arith.constant 0 : index
    %c0_50 = arith.constant 0 : index
    %c2 = arith.constant 2 : index
    %c0_51 = arith.constant 0 : index
    %27 = vector.load %arg12[%c0_49, %c0_50, %c2, %c0_51] : memref<2x10x10x4xf32, #tpu.memory_space<vmem>>, vector<2x8x8x4xf32>
    %c0_52 = arith.constant 0 : index
    %c1_53 = arith.constant 1 : index
    %c0_54 = arith.constant 0 : index
    %c0_55 = arith.constant 0 : index
    %28 = vector.load %arg12[%c0_52, %c1_53, %c0_54, %c0_55] : memref<2x10x10x4xf32, #tpu.memory_space<vmem>>, vector<2x8x8x4xf32>
    %c0_56 = arith.constant 0 : index
    %c1_57 = arith.constant 1 : index
    %c1_58 = arith.constant 1 : index
    %c0_59 = arith.constant 0 : index
    %29 = vector.load %arg12[%c0_56, %c1_57, %c1_58, %c0_59] : memref<2x10x10x4xf32, #tpu.memory_space<vmem>>, vector<2x8x8x4xf32>
    %c0_60 = arith.constant 0 : index
    %c1_61 = arith.constant 1 : index
    %c2_62 = arith.constant 2 : index
    %c0_63 = arith.constant 0 : index
    %30 = vector.load %arg12[%c0_60, %c1_61, %c2_62, %c0_63] : memref<2x10x10x4xf32, #tpu.memory_space<vmem>>, vector<2x8x8x4xf32>
    %c0_64 = arith.constant 0 : index
    %c2_65 = arith.constant 2 : index
    %c0_66 = arith.constant 0 : index
    %c0_67 = arith.constant 0 : index
    %31 = vector.load %arg12[%c0_64, %c2_65, %c0_66, %c0_67] : memref<2x10x10x4xf32, #tpu.memory_space<vmem>>, vector<2x8x8x4xf32>
    %c0_68 = arith.constant 0 : index
    %c2_69 = arith.constant 2 : index
    %c1_70 = arith.constant 1 : index
    %c0_71 = arith.constant 0 : index
    %32 = vector.load %arg12[%c0_68, %c2_69, %c1_70, %c0_71] : memref<2x10x10x4xf32, #tpu.memory_space<vmem>>, vector<2x8x8x4xf32>
    %c0_72 = arith.constant 0 : index
    %c2_73 = arith.constant 2 : index
    %c2_74 = arith.constant 2 : index
    %c0_75 = arith.constant 0 : index
    %33 = vector.load %arg12[%c0_72, %c2_73, %c2_74, %c0_75] : memref<2x10x10x4xf32, #tpu.memory_space<vmem>>, vector<2x8x8x4xf32>
    %34 = tpu.concatenate %25, %26, %27, %28, %29, %30, %31, %32, %33 in 3 : vector<2x8x8x4xf32>, vector<2x8x8x4xf32>, vector<2x8x8x4xf32>, vector<2x8x8x4xf32>, vector<2x8x8x4xf32>, vector<2x8x8x4xf32>, vector<2x8x8x4xf32>, vector<2x8x8x4xf32>, vector<2x8x8x4xf32> -> vector<2x8x8x36xf32>
    %35 = vector.shape_cast %34 : vector<2x8x8x36xf32> to vector<128x36xf32>
    %c0_76 = arith.constant 0 : index
    %c0_77 = arith.constant 0 : index
    %36 = vector.load %arg2[%c0_76, %c0_77] : memref<36x32xf32, #tpu.memory_space<vmem>>, vector<36x32xf32>
    %cst_78 = arith.constant dense<0.000000e+00> : vector<128x32xf32>
    %37 = tpu.matmul %35, %36, %cst_78 {dimension_numbers = #tpu.dot_dimension_numbers<[1], [0], [0], [1], [0, 0, 1, 1], [], []>} : vector<128x36xf32>, vector<36x32xf32>, vector<128x32xf32> -> vector<128x32xf32>
    %c0_79 = arith.constant 0 : index
    %c0_80 = arith.constant 0 : index
    %38 = vector.load %arg3[%c0_79, %c0_80] : memref<1x32xf32, #tpu.memory_space<vmem>>, vector<1x32xf32>
    %39 = vector.broadcast %38 : vector<1x32xf32> to vector<128x32xf32>
    %40 = arith.addf %37, %39 : vector<128x32xf32>
    %41 = vector.shape_cast %40 : vector<128x32xf32> to vector<2x64x32xf32>
    %cst_81 = arith.constant dense<0.000000e+00> : vector<2x32xf32>
    %42 = vector.multi_reduction <add>, %41, %cst_81 [1] : vector<2x64x32xf32> to vector<2x32xf32>
    %cst_82 = arith.constant 6.400000e+01 : f32
    %43 = vector.broadcast %cst_82 : f32 to vector<2x32xf32>
    %44 = arith.divf %42, %43 : vector<2x32xf32>
    %45 = arith.mulf %41, %41 : vector<2x64x32xf32>
    %cst_83 = arith.constant dense<0.000000e+00> : vector<2x32xf32>
    %46 = vector.multi_reduction <add>, %45, %cst_83 [1] : vector<2x64x32xf32> to vector<2x32xf32>
    %cst_84 = arith.constant 6.400000e+01 : f32
    %47 = vector.broadcast %cst_84 : f32 to vector<2x32xf32>
    %48 = arith.divf %46, %47 : vector<2x32xf32>
    %49 = tpu.concatenate %44, %48 in 0 : vector<2x32xf32>, vector<2x32xf32> -> vector<4x32xf32>
    %c0_85 = arith.constant 0 : index
    %c0_86 = arith.constant 0 : index
    %50 = vector.load %arg10[%c0_85, %c0_86] : memref<32x32xf32, #tpu.memory_space<vmem>>, vector<32x32xf32>
    %cst_87 = arith.constant dense<0.000000e+00> : vector<4x32xf32>
    %51 = tpu.matmul %49, %50, %cst_87 {dimension_numbers = #tpu.dot_dimension_numbers<[1], [0], [0], [1], [0, 0, 1, 1], [], []>} : vector<4x32xf32>, vector<32x32xf32>, vector<4x32xf32> -> vector<4x32xf32>
    %52 = vector.extract_strided_slice %51 {offsets = [0, 0], sizes = [2, 32], strides = [1, 1]} : vector<4x32xf32> to vector<2x32xf32>
    %53 = vector.shape_cast %52 : vector<2x32xf32> to vector<2x1x32xf32>
    %54 = vector.extract_strided_slice %51 {offsets = [2, 0], sizes = [2, 32], strides = [1, 1]} : vector<4x32xf32> to vector<2x32xf32>
    %55 = vector.shape_cast %54 : vector<2x32xf32> to vector<2x1x32xf32>
    %56 = arith.mulf %53, %53 : vector<2x1x32xf32>
    %57 = arith.subf %55, %56 : vector<2x1x32xf32>
    %cst_88 = arith.constant 9.99999974E-6 : f32
    %58 = vector.broadcast %cst_88 : f32 to vector<2x1x32xf32>
    %59 = arith.addf %57, %58 : vector<2x1x32xf32>
    %60 = math.rsqrt %59 : vector<2x1x32xf32>
    %c0_89 = arith.constant 0 : index
    %c0_90 = arith.constant 0 : index
    %61 = vector.load %arg4[%c0_89, %c0_90] : memref<1x32xf32, #tpu.memory_space<vmem>>, vector<1x32xf32>
    %62 = vector.shape_cast %61 : vector<1x32xf32> to vector<1x1x32xf32>
    %c0_91 = arith.constant 0 : index
    %c0_92 = arith.constant 0 : index
    %63 = vector.load %arg5[%c0_91, %c0_92] : memref<1x32xf32, #tpu.memory_space<vmem>>, vector<1x32xf32>
    %64 = vector.shape_cast %63 : vector<1x32xf32> to vector<1x1x32xf32>
    %65 = vector.broadcast %53 : vector<2x1x32xf32> to vector<2x64x32xf32>
    %66 = arith.subf %41, %65 : vector<2x64x32xf32>
    %67 = vector.broadcast %60 : vector<2x1x32xf32> to vector<2x64x32xf32>
    %68 = arith.mulf %66, %67 : vector<2x64x32xf32>
    %69 = vector.broadcast %62 : vector<1x1x32xf32> to vector<2x64x32xf32>
    %70 = arith.mulf %68, %69 : vector<2x64x32xf32>
    %71 = vector.broadcast %64 : vector<1x1x32xf32> to vector<2x64x32xf32>
    %72 = arith.addf %70, %71 : vector<2x64x32xf32>
    %cst_93 = arith.constant 5.000000e-01 : f32
    %73 = vector.broadcast %cst_93 : f32 to vector<2x64x32xf32>
    %74 = arith.mulf %73, %72 : vector<2x64x32xf32>
    %cst_94 = arith.constant 0.707106769 : f32
    %75 = vector.broadcast %cst_94 : f32 to vector<2x64x32xf32>
    %76 = arith.mulf %72, %75 : vector<2x64x32xf32>
    %77 = math.absf %76 : vector<2x64x32xf32>
    %cst_95 = arith.constant 0.327591091 : f32
    %78 = vector.broadcast %cst_95 : f32 to vector<2x64x32xf32>
    %79 = arith.mulf %78, %77 : vector<2x64x32xf32>
    %cst_96 = arith.constant 1.000000e+00 : f32
    %80 = vector.broadcast %cst_96 : f32 to vector<2x64x32xf32>
    %81 = arith.addf %80, %79 : vector<2x64x32xf32>
    %cst_97 = arith.constant 1.000000e+00 : f32
    %82 = vector.broadcast %cst_97 : f32 to vector<2x64x32xf32>
    %83 = arith.divf %82, %81 : vector<2x64x32xf32>
    %cst_98 = arith.constant 1.06140542 : f32
    %84 = vector.broadcast %cst_98 : f32 to vector<2x64x32xf32>
    %85 = arith.mulf %83, %84 : vector<2x64x32xf32>
    %cst_99 = arith.constant -1.45315206 : f32
    %86 = vector.broadcast %cst_99 : f32 to vector<2x64x32xf32>
    %87 = arith.addf %86, %85 : vector<2x64x32xf32>
    %88 = arith.mulf %83, %87 : vector<2x64x32xf32>
    %cst_100 = arith.constant 1.42141378 : f32
    %89 = vector.broadcast %cst_100 : f32 to vector<2x64x32xf32>
    %90 = arith.addf %89, %88 : vector<2x64x32xf32>
    %91 = arith.mulf %83, %90 : vector<2x64x32xf32>
    %cst_101 = arith.constant -0.284496725 : f32
    %92 = vector.broadcast %cst_101 : f32 to vector<2x64x32xf32>
    %93 = arith.addf %92, %91 : vector<2x64x32xf32>
    %94 = arith.mulf %83, %93 : vector<2x64x32xf32>
    %cst_102 = arith.constant 0.254829586 : f32
    %95 = vector.broadcast %cst_102 : f32 to vector<2x64x32xf32>
    %96 = arith.addf %95, %94 : vector<2x64x32xf32>
    %97 = arith.mulf %83, %96 : vector<2x64x32xf32>
    %cst_103 = arith.constant 0.000000e+00 : f32
    %98 = vector.broadcast %cst_103 : f32 to vector<2x64x32xf32>
    %99 = arith.subf %98, %77 : vector<2x64x32xf32>
    %100 = arith.mulf %99, %77 : vector<2x64x32xf32>
    %101 = math.exp %100 : vector<2x64x32xf32>
    %102 = arith.mulf %97, %101 : vector<2x64x32xf32>
    %cst_104 = arith.constant 1.000000e+00 : f32
    %103 = vector.broadcast %cst_104 : f32 to vector<2x64x32xf32>
    %104 = arith.subf %103, %102 : vector<2x64x32xf32>
    %cst_105 = arith.constant 0.000000e+00 : f32
    %105 = vector.broadcast %cst_105 : f32 to vector<2x64x32xf32>
    %106 = arith.cmpf oge, %76, %105 : vector<2x64x32xf32>
    %cst_106 = arith.constant 0.000000e+00 : f32
    %107 = vector.broadcast %cst_106 : f32 to vector<2x64x32xf32>
    %108 = arith.subf %107, %104 : vector<2x64x32xf32>
    %109 = arith.select %106, %104, %108 : vector<2x64x32xi1>, vector<2x64x32xf32>
    %cst_107 = arith.constant 1.000000e+00 : f32
    %110 = vector.broadcast %cst_107 : f32 to vector<2x64x32xf32>
    %111 = arith.addf %110, %109 : vector<2x64x32xf32>
    %112 = arith.mulf %74, %111 : vector<2x64x32xf32>
    %113 = vector.shape_cast %112 : vector<2x64x32xf32> to vector<2x8x8x32xf32>
    %c0_108 = arith.constant 0 : index
    %c1_109 = arith.constant 1 : index
    %c1_110 = arith.constant 1 : index
    %c0_111 = arith.constant 0 : index
    %114 = vector.load %arg13[%c0_108, %c1_109, %c1_110, %c0_111] : memref<2x10x10x32xf32, #tpu.memory_space<vmem>>, vector<2x8x8x32xf32>
    tpu.vector_store %arg13[%c0_108, %c1_109, %c1_110, %c0_111], %113 {strides = array<i32>} : memref<2x10x10x32xf32, #tpu.memory_space<vmem>>, vector<2x8x8x32xf32>,
    %c0_112 = arith.constant 0 : index
    %c0_113 = arith.constant 0 : index
    %c0_114 = arith.constant 0 : index
    %c0_115 = arith.constant 0 : index
    %115 = vector.load %arg13[%c0_112, %c0_113, %c0_114, %c0_115] : memref<2x10x10x32xf32, #tpu.memory_space<vmem>>, vector<2x8x8x32xf32>
    %c0_116 = arith.constant 0 : index
    %c0_117 = arith.constant 0 : index
    %c1_118 = arith.constant 1 : index
    %c0_119 = arith.constant 0 : index
    %116 = vector.load %arg13[%c0_116, %c0_117, %c1_118, %c0_119] : memref<2x10x10x32xf32, #tpu.memory_space<vmem>>, vector<2x8x8x32xf32>
    %c0_120 = arith.constant 0 : index
    %c0_121 = arith.constant 0 : index
    %c2_122 = arith.constant 2 : index
    %c0_123 = arith.constant 0 : index
    %117 = vector.load %arg13[%c0_120, %c0_121, %c2_122, %c0_123] : memref<2x10x10x32xf32, #tpu.memory_space<vmem>>, vector<2x8x8x32xf32>
    %c0_124 = arith.constant 0 : index
    %c1_125 = arith.constant 1 : index
    %c0_126 = arith.constant 0 : index
    %c0_127 = arith.constant 0 : index
    %118 = vector.load %arg13[%c0_124, %c1_125, %c0_126, %c0_127] : memref<2x10x10x32xf32, #tpu.memory_space<vmem>>, vector<2x8x8x32xf32>
    %c0_128 = arith.constant 0 : index
    %c1_129 = arith.constant 1 : index
    %c1_130 = arith.constant 1 : index
    %c0_131 = arith.constant 0 : index
    %119 = vector.load %arg13[%c0_128, %c1_129, %c1_130, %c0_131] : memref<2x10x10x32xf32, #tpu.memory_space<vmem>>, vector<2x8x8x32xf32>
    %c0_132 = arith.constant 0 : index
    %c1_133 = arith.constant 1 : index
    %c2_134 = arith.constant 2 : index
    %c0_135 = arith.constant 0 : index
    %120 = vector.load %arg13[%c0_132, %c1_133, %c2_134, %c0_135] : memref<2x10x10x32xf32, #tpu.memory_space<vmem>>, vector<2x8x8x32xf32>
    %c0_136 = arith.constant 0 : index
    %c2_137 = arith.constant 2 : index
    %c0_138 = arith.constant 0 : index
    %c0_139 = arith.constant 0 : index
    %121 = vector.load %arg13[%c0_136, %c2_137, %c0_138, %c0_139] : memref<2x10x10x32xf32, #tpu.memory_space<vmem>>, vector<2x8x8x32xf32>
    %c0_140 = arith.constant 0 : index
    %c2_141 = arith.constant 2 : index
    %c1_142 = arith.constant 1 : index
    %c0_143 = arith.constant 0 : index
    %122 = vector.load %arg13[%c0_140, %c2_141, %c1_142, %c0_143] : memref<2x10x10x32xf32, #tpu.memory_space<vmem>>, vector<2x8x8x32xf32>
    %c0_144 = arith.constant 0 : index
    %c2_145 = arith.constant 2 : index
    %c2_146 = arith.constant 2 : index
    %c0_147 = arith.constant 0 : index
    %123 = vector.load %arg13[%c0_144, %c2_145, %c2_146, %c0_147] : memref<2x10x10x32xf32, #tpu.memory_space<vmem>>, vector<2x8x8x32xf32>
    %124 = tpu.concatenate %115, %116, %117, %118, %119, %120, %121, %122, %123 in 3 : vector<2x8x8x32xf32>, vector<2x8x8x32xf32>, vector<2x8x8x32xf32>, vector<2x8x8x32xf32>, vector<2x8x8x32xf32>, vector<2x8x8x32xf32>, vector<2x8x8x32xf32>, vector<2x8x8x32xf32>, vector<2x8x8x32xf32> -> vector<2x8x8x288xf32>
    %125 = vector.shape_cast %124 : vector<2x8x8x288xf32> to vector<128x288xf32>
    %c0_148 = arith.constant 0 : index
    %c0_149 = arith.constant 0 : index
    %126 = vector.load %arg6[%c0_148, %c0_149] : memref<288x32xf32, #tpu.memory_space<vmem>>, vector<288x32xf32>
    %cst_150 = arith.constant dense<0.000000e+00> : vector<128x32xf32>
    %127 = tpu.matmul %125, %126, %cst_150 {dimension_numbers = #tpu.dot_dimension_numbers<[1], [0], [0], [1], [0, 0, 1, 1], [], []>} : vector<128x288xf32>, vector<288x32xf32>, vector<128x32xf32> -> vector<128x32xf32>
    %c0_151 = arith.constant 0 : index
    %c0_152 = arith.constant 0 : index
    %128 = vector.load %arg7[%c0_151, %c0_152] : memref<1x32xf32, #tpu.memory_space<vmem>>, vector<1x32xf32>
    %129 = vector.broadcast %128 : vector<1x32xf32> to vector<128x32xf32>
    %130 = arith.addf %127, %129 : vector<128x32xf32>
    %131 = vector.shape_cast %130 : vector<128x32xf32> to vector<2x64x32xf32>
    %cst_153 = arith.constant dense<0.000000e+00> : vector<2x32xf32>
    %132 = vector.multi_reduction <add>, %131, %cst_153 [1] : vector<2x64x32xf32> to vector<2x32xf32>
    %cst_154 = arith.constant 6.400000e+01 : f32
    %133 = vector.broadcast %cst_154 : f32 to vector<2x32xf32>
    %134 = arith.divf %132, %133 : vector<2x32xf32>
    %135 = arith.mulf %131, %131 : vector<2x64x32xf32>
    %cst_155 = arith.constant dense<0.000000e+00> : vector<2x32xf32>
    %136 = vector.multi_reduction <add>, %135, %cst_155 [1] : vector<2x64x32xf32> to vector<2x32xf32>
    %cst_156 = arith.constant 6.400000e+01 : f32
    %137 = vector.broadcast %cst_156 : f32 to vector<2x32xf32>
    %138 = arith.divf %136, %137 : vector<2x32xf32>
    %139 = tpu.concatenate %134, %138 in 0 : vector<2x32xf32>, vector<2x32xf32> -> vector<4x32xf32>
    %c0_157 = arith.constant 0 : index
    %c0_158 = arith.constant 0 : index
    %140 = vector.load %arg10[%c0_157, %c0_158] : memref<32x32xf32, #tpu.memory_space<vmem>>, vector<32x32xf32>
    %cst_159 = arith.constant dense<0.000000e+00> : vector<4x32xf32>
    %141 = tpu.matmul %139, %140, %cst_159 {dimension_numbers = #tpu.dot_dimension_numbers<[1], [0], [0], [1], [0, 0, 1, 1], [], []>} : vector<4x32xf32>, vector<32x32xf32>, vector<4x32xf32> -> vector<4x32xf32>
    %142 = vector.extract_strided_slice %141 {offsets = [0, 0], sizes = [2, 32], strides = [1, 1]} : vector<4x32xf32> to vector<2x32xf32>
    %143 = vector.shape_cast %142 : vector<2x32xf32> to vector<2x1x32xf32>
    %144 = vector.extract_strided_slice %141 {offsets = [2, 0], sizes = [2, 32], strides = [1, 1]} : vector<4x32xf32> to vector<2x32xf32>
    %145 = vector.shape_cast %144 : vector<2x32xf32> to vector<2x1x32xf32>
    %146 = arith.mulf %143, %143 : vector<2x1x32xf32>
    %147 = arith.subf %145, %146 : vector<2x1x32xf32>
    %cst_160 = arith.constant 9.99999974E-6 : f32
    %148 = vector.broadcast %cst_160 : f32 to vector<2x1x32xf32>
    %149 = arith.addf %147, %148 : vector<2x1x32xf32>
    %150 = math.rsqrt %149 : vector<2x1x32xf32>
    %c0_161 = arith.constant 0 : index
    %c0_162 = arith.constant 0 : index
    %151 = vector.load %arg8[%c0_161, %c0_162] : memref<1x32xf32, #tpu.memory_space<vmem>>, vector<1x32xf32>
    %152 = vector.shape_cast %151 : vector<1x32xf32> to vector<1x1x32xf32>
    %c0_163 = arith.constant 0 : index
    %c0_164 = arith.constant 0 : index
    %153 = vector.load %arg9[%c0_163, %c0_164] : memref<1x32xf32, #tpu.memory_space<vmem>>, vector<1x32xf32>
    %154 = vector.shape_cast %153 : vector<1x32xf32> to vector<1x1x32xf32>
    %155 = vector.broadcast %143 : vector<2x1x32xf32> to vector<2x64x32xf32>
    %156 = arith.subf %131, %155 : vector<2x64x32xf32>
    %157 = vector.broadcast %150 : vector<2x1x32xf32> to vector<2x64x32xf32>
    %158 = arith.mulf %156, %157 : vector<2x64x32xf32>
    %159 = vector.broadcast %152 : vector<1x1x32xf32> to vector<2x64x32xf32>
    %160 = arith.mulf %158, %159 : vector<2x64x32xf32>
    %161 = vector.broadcast %154 : vector<1x1x32xf32> to vector<2x64x32xf32>
    %162 = arith.addf %160, %161 : vector<2x64x32xf32>
    %cst_165 = arith.constant 5.000000e-01 : f32
    %163 = vector.broadcast %cst_165 : f32 to vector<2x64x32xf32>
    %164 = arith.mulf %163, %162 : vector<2x64x32xf32>
    %cst_166 = arith.constant 0.707106769 : f32
    %165 = vector.broadcast %cst_166 : f32 to vector<2x64x32xf32>
    %166 = arith.mulf %162, %165 : vector<2x64x32xf32>
    %167 = math.absf %166 : vector<2x64x32xf32>
    %cst_167 = arith.constant 0.327591091 : f32
    %168 = vector.broadcast %cst_167 : f32 to vector<2x64x32xf32>
    %169 = arith.mulf %168, %167 : vector<2x64x32xf32>
    %cst_168 = arith.constant 1.000000e+00 : f32
    %170 = vector.broadcast %cst_168 : f32 to vector<2x64x32xf32>
    %171 = arith.addf %170, %169 : vector<2x64x32xf32>
    %cst_169 = arith.constant 1.000000e+00 : f32
    %172 = vector.broadcast %cst_169 : f32 to vector<2x64x32xf32>
    %173 = arith.divf %172, %171 : vector<2x64x32xf32>
    %cst_170 = arith.constant 1.06140542 : f32
    %174 = vector.broadcast %cst_170 : f32 to vector<2x64x32xf32>
    %175 = arith.mulf %173, %174 : vector<2x64x32xf32>
    %cst_171 = arith.constant -1.45315206 : f32
    %176 = vector.broadcast %cst_171 : f32 to vector<2x64x32xf32>
    %177 = arith.addf %176, %175 : vector<2x64x32xf32>
    %178 = arith.mulf %173, %177 : vector<2x64x32xf32>
    %cst_172 = arith.constant 1.42141378 : f32
    %179 = vector.broadcast %cst_172 : f32 to vector<2x64x32xf32>
    %180 = arith.addf %179, %178 : vector<2x64x32xf32>
    %181 = arith.mulf %173, %180 : vector<2x64x32xf32>
    %cst_173 = arith.constant -0.284496725 : f32
    %182 = vector.broadcast %cst_173 : f32 to vector<2x64x32xf32>
    %183 = arith.addf %182, %181 : vector<2x64x32xf32>
    %184 = arith.mulf %173, %183 : vector<2x64x32xf32>
    %cst_174 = arith.constant 0.254829586 : f32
    %185 = vector.broadcast %cst_174 : f32 to vector<2x64x32xf32>
    %186 = arith.addf %185, %184 : vector<2x64x32xf32>
    %187 = arith.mulf %173, %186 : vector<2x64x32xf32>
    %cst_175 = arith.constant 0.000000e+00 : f32
    %188 = vector.broadcast %cst_175 : f32 to vector<2x64x32xf32>
    %189 = arith.subf %188, %167 : vector<2x64x32xf32>
    %190 = arith.mulf %189, %167 : vector<2x64x32xf32>
    %191 = math.exp %190 : vector<2x64x32xf32>
    %192 = arith.mulf %187, %191 : vector<2x64x32xf32>
    %cst_176 = arith.constant 1.000000e+00 : f32
    %193 = vector.broadcast %cst_176 : f32 to vector<2x64x32xf32>
    %194 = arith.subf %193, %192 : vector<2x64x32xf32>
    %cst_177 = arith.constant 0.000000e+00 : f32
    %195 = vector.broadcast %cst_177 : f32 to vector<2x64x32xf32>
    %196 = arith.cmpf oge, %166, %195 : vector<2x64x32xf32>
    %cst_178 = arith.constant 0.000000e+00 : f32
    %197 = vector.broadcast %cst_178 : f32 to vector<2x64x32xf32>
    %198 = arith.subf %197, %194 : vector<2x64x32xf32>
    %199 = arith.select %196, %194, %198 : vector<2x64x32xi1>, vector<2x64x32xf32>
    %cst_179 = arith.constant 1.000000e+00 : f32
    %200 = vector.broadcast %cst_179 : f32 to vector<2x64x32xf32>
    %201 = arith.addf %200, %199 : vector<2x64x32xf32>
    %202 = arith.mulf %164, %201 : vector<2x64x32xf32>
    %203 = vector.shape_cast %202 : vector<2x64x32xf32> to vector<2x8x8x32xf32>
    %c0_180 = arith.constant 0 : index
    %c0_181 = arith.constant 0 : index
    %c0_182 = arith.constant 0 : index
    %c0_183 = arith.constant 0 : index
    %204 = vector.load %arg11[%c0_180, %c0_181, %c0_182, %c0_183] : memref<2x8x8x32xf32, #tpu.memory_space<vmem>>, vector<2x8x8x32xf32>
    tpu.vector_store %arg11[%c0_180, %c0_181, %c0_182, %c0_183], %203 {strides = array<i32>} : memref<2x8x8x32xf32, #tpu.memory_space<vmem>>, vector<2x8x8x32xf32>,
    return
  }
  func.func @transform_0(%arg0: i32) -> (i32, i32, i32, i32) {
    %c0_i32 = arith.constant 0 : i32
    %c0_i32_0 = arith.constant 0 : i32
    %c0_i32_1 = arith.constant 0 : i32
    %c0_i32_2 = arith.constant 0 : i32
    return %arg0, %c0_i32, %c0_i32_0, %c0_i32_1 : i32, i32, i32, i32
  }
  func.func @transform_1(%arg0: i32) -> (i32, i32) {
    %c0_i32 = arith.constant 0 : i32
    %c0_i32_0 = arith.constant 0 : i32
    %c0_i32_1 = arith.constant 0 : i32
    return %c0_i32, %c0_i32_0 : i32, i32
  }
  func.func @transform_2(%arg0: i32) -> (i32, i32) {
    %c0_i32 = arith.constant 0 : i32
    %c0_i32_0 = arith.constant 0 : i32
    %c0_i32_1 = arith.constant 0 : i32
    return %c0_i32, %c0_i32_0 : i32, i32
  }
  func.func @transform_3(%arg0: i32) -> (i32, i32) {
    %c0_i32 = arith.constant 0 : i32
    %c0_i32_0 = arith.constant 0 : i32
    %c0_i32_1 = arith.constant 0 : i32
    return %c0_i32, %c0_i32_0 : i32, i32
  }
  func.func @transform_4(%arg0: i32) -> (i32, i32) {
    %c0_i32 = arith.constant 0 : i32
    %c0_i32_0 = arith.constant 0 : i32
    %c0_i32_1 = arith.constant 0 : i32
    return %c0_i32, %c0_i32_0 : i32, i32
  }
  func.func @transform_5(%arg0: i32) -> (i32, i32) {
    %c0_i32 = arith.constant 0 : i32
    %c0_i32_0 = arith.constant 0 : i32
    %c0_i32_1 = arith.constant 0 : i32
    return %c0_i32, %c0_i32_0 : i32, i32
  }
  func.func @transform_6(%arg0: i32) -> (i32, i32) {
    %c0_i32 = arith.constant 0 : i32
    %c0_i32_0 = arith.constant 0 : i32
    %c0_i32_1 = arith.constant 0 : i32
    return %c0_i32, %c0_i32_0 : i32, i32
  }
  func.func @transform_7(%arg0: i32) -> (i32, i32) {
    %c0_i32 = arith.constant 0 : i32
    %c0_i32_0 = arith.constant 0 : i32
    %c0_i32_1 = arith.constant 0 : i32
    return %c0_i32, %c0_i32_0 : i32, i32
  }
  func.func @transform_8(%arg0: i32) -> (i32, i32) {
    %c0_i32 = arith.constant 0 : i32
    %c0_i32_0 = arith.constant 0 : i32
    %c0_i32_1 = arith.constant 0 : i32
    return %c0_i32, %c0_i32_0 : i32, i32
  }
  func.func @transform_9(%arg0: i32) -> (i32, i32) {
    %c0_i32 = arith.constant 0 : i32
    %c0_i32_0 = arith.constant 0 : i32
    %c0_i32_1 = arith.constant 0 : i32
    return %c0_i32, %c0_i32_0 : i32, i32
  }
  func.func @transform_10(%arg0: i32) -> (i32, i32, i32, i32) {
    %c0_i32 = arith.constant 0 : i32
    %c0_i32_0 = arith.constant 0 : i32
    %c0_i32_1 = arith.constant 0 : i32
    %c0_i32_2 = arith.constant 0 : i32
    return %arg0, %c0_i32, %c0_i32_0, %c0_i32_1 : i32, i32, i32, i32
  }
}

</mosaic_0001>

<llo_original>
// kernel: tpu_custom_call.1
$region0: #{tpu_custom_call.1}
  #allocation0 [shape = 'u32[]', space=smem, size = 0x4, offset = 0x4, fixed_abs, tag = 'smem constant byte address 0x4 - core index']
  #allocation1 [shape = 'u32[144,128]{1,0:T(1,128)}', space=vmem, size = 0x12000, scoped, tag = 'internal scratch']
  #allocation2 [shape = 'f32[2,10,10,4]{3,2,1,0:T(8,128)}', space=vmem, size = 0x28000, scoped, tag = 'scratch operand']
  #allocation3 [shape = 'f32[2,10,10,32]{3,2,1,0:T(8,128)}', space=vmem, size = 0x28000, scoped, tag = 'scratch operand']
  %s0 = inlined_call_operand.vmem [shape: f32[2,16,8,8], index: 0, kind: input, shape index: {}]
  %s1 = inlined_call_operand.vmem [shape: f32[36,32], index: 1, kind: input, shape index: {}]
  %s2 = inlined_call_operand.vmem [shape: f32[1,32], index: 2, kind: input, shape index: {}]
  %s3 = inlined_call_operand.vmem [shape: f32[1,32], index: 3, kind: input, shape index: {}]
  %s4 = inlined_call_operand.vmem [shape: f32[1,32], index: 4, kind: input, shape index: {}]
  %s5 = inlined_call_operand.vmem [shape: f32[288,32], index: 5, kind: input, shape index: {}]
  %s6 = inlined_call_operand.vmem [shape: f32[1,32], index: 6, kind: input, shape index: {}]
  %s7 = inlined_call_operand.vmem [shape: f32[1,32], index: 7, kind: input, shape index: {}]
  %s8 = inlined_call_operand.vmem [shape: f32[1,32], index: 8, kind: input, shape index: {}]
  %s9 = inlined_call_operand.vmem [shape: f32[32,32], index: 9, kind: input, shape index: {}]
  %s10 = inlined_call_operand.hbm [shape: f32[2,8,8,32], index: 10, kind: output, shape index: {}]
  %s11 = sld [smem:[#allocation0]]
  $region50: #{tpu_custom_call.1} parent=0
    _
  %s13 = ssub.s32 1, %s11
  %s14 = scalar_select 0, %s13, %s11
  $region1: #{tpu_custom_call.1} parent=0
    #allocation4 [shape = 'u8[65536]{0}', space=vmem, size = 0x10000, scoped, tag = 'output window, operand 0, single buffered']
    #allocation5 [shape = 's32[1]{0}', space=sflag, size = 0x4, scoped, tag = 'scoped memory for tpu_custom_call.1']
    %15 = vsyncpa [#allocation5], 0
    // Predicated region
    $region2: #{tpu_custom_call.1} parent=1 // pred_check
      _
    $region3: #{tpu_custom_call.1} parent=1 // pred_check_branch
      %17 = sbr.rel (0) target = $region5
    $region4: #{tpu_custom_call.1} parent=1 // pred_region
      _
    $region5: #{tpu_custom_call.1} parent=1 // pred_fallthru
      _
    // Predicated region
    $region6: #{tpu_custom_call.1} parent=1 // pred_check
      _
    $region7: #{tpu_custom_call.1} parent=1 // pred_check_branch
      %19 = sbr.rel (0) target = $region9
    $region8: #{tpu_custom_call.1} parent=1 // pred_region
      _
    $region9: #{tpu_custom_call.1} parent=1 // pred_fallthru
      _
    // Predicated region
    $region10: #{tpu_custom_call.1} parent=1 // pred_check
      _
    $region11: #{tpu_custom_call.1} parent=1 // pred_check_branch
      %21 = sbr.rel (0) target = $region13
    $region12: #{tpu_custom_call.1} parent=1 // pred_region
      _
    $region13: #{tpu_custom_call.1} parent=1 // pred_fallthru
      _
    // Predicated region
    $region14: #{tpu_custom_call.1} parent=1 // pred_check
      _
    $region15: #{tpu_custom_call.1} parent=1 // pred_check_branch
      %23 = sbr.rel (0) target = $region17
    $region16: #{tpu_custom_call.1} parent=1 // pred_region
      _
    $region17: #{tpu_custom_call.1} parent=1 // pred_fallthru
      _
    // Predicated region
    $region18: #{tpu_custom_call.1} parent=1 // pred_check
      _
    $region19: #{tpu_custom_call.1} parent=1 // pred_check_branch
      %25 = sbr.rel (0) target = $region21
    $region20: #{tpu_custom_call.1} parent=1 // pred_region
      _
    $region21: #{tpu_custom_call.1} parent=1 // pred_fallthru
      _
    // Predicated region
    $region22: #{tpu_custom_call.1} parent=1 // pred_check
      _
    $region23: #{tpu_custom_call.1} parent=1 // pred_check_branch
      %27 = sbr.rel (0) target = $region25
    $region24: #{tpu_custom_call.1} parent=1 // pred_region
      _
    $region25: #{tpu_custom_call.1} parent=1 // pred_fallthru
      _
    // Predicated region
    $region26: #{tpu_custom_call.1} parent=1 // pred_check
      _
    $region27: #{tpu_custom_call.1} parent=1 // pred_check_branch
      %29 = sbr.rel (0) target = $region29
    $region28: #{tpu_custom_call.1} parent=1 // pred_region
      _
    $region29: #{tpu_custom_call.1} parent=1 // pred_fallthru
      _
    // Predicated region
    $region30: #{tpu_custom_call.1} parent=1 // pred_check
      _
    $region31: #{tpu_custom_call.1} parent=1 // pred_check_branch
      %31 = sbr.rel (0) target = $region33
    $region32: #{tpu_custom_call.1} parent=1 // pred_region
      _
    $region33: #{tpu_custom_call.1} parent=1 // pred_fallthru
      _
    // Predicated region
    $region34: #{tpu_custom_call.1} parent=1 // pred_check
      _
    $region35: #{tpu_custom_call.1} parent=1 // pred_check_branch
      %33 = sbr.rel (0) target = $region37
    $region36: #{tpu_custom_call.1} parent=1 // pred_region
      _
    $region37: #{tpu_custom_call.1} parent=1 // pred_fallthru
      _
    // Predicated region
    $region38: #{tpu_custom_call.1} parent=1 // pred_check
      _
    $region39: #{tpu_custom_call.1} parent=1 // pred_check_branch
      %35 = sbr.rel (0) target = $region41
    $region40: #{tpu_custom_call.1} parent=1 // pred_region
      _
    $region41: #{tpu_custom_call.1} parent=1 // pred_fallthru
      _
    %vm36 = vcmask 31744
    %37 = vst.msk [vmem:[#allocation2] sm:$0xff] %vm36, 0.0
    %vm38 = vcmask 25600
    %39 = vst.msk [vmem:[#allocation2 + $0x8] sm:$0x3] %vm38, 0.0
    %40 = vst.msk [vmem:[#allocation2 + $0xa0] sm:$0xff] %vm36, 0.0
    %41 = vst.msk [vmem:[#allocation2 + $0xa8] sm:$0x3] %vm38, 0.0
    %s42 = scalar_lea.vmem [#allocation2], 144
    %43 = vst.msk [vmem:[%s42] sm:$0xff] %vm36, 0.0
    %44 = vst.msk [vmem:[%s42 + $0x8] sm:$0x3] %vm38, 0.0
    %45 = vst.msk [vmem:[%s42 + $0xa0] sm:$0xff] %vm36, 0.0
    %46 = vst.msk [vmem:[%s42 + $0xa8] sm:$0x3] %vm38, 0.0
    %vm47 = vcmask 24576
    %48 = vst.msk [vmem:[#allocation2] sm:$0x1] %vm47, 0.0
    %49 = vst.msk [vmem:[#allocation2 + $0x10] sm:$0x1] %vm47, 0.0
    %50 = vst.msk [vmem:[#allocation2 + $0x20] sm:$0x1] %vm47, 0.0
    %51 = vst.msk [vmem:[#allocation2 + $0x30] sm:$0x1] %vm47, 0.0
    %52 = vst.msk [vmem:[#allocation2 + $0x40] sm:$0x1] %vm47, 0.0
    %53 = vst.msk [vmem:[#allocation2 + $0x50] sm:$0x1] %vm47, 0.0
    %54 = vst.msk [vmem:[#allocation2 + $0x60] sm:$0x1] %vm47, 0.0
    %55 = vst.msk [vmem:[#allocation2 + $0x70] sm:$0x1] %vm47, 0.0
    %56 = vst.msk [vmem:[#allocation2 + $0x80] sm:$0x1] %vm47, 0.0
    %57 = vst.msk [vmem:[#allocation2 + $0x90] sm:$0x1] %vm47, 0.0
    %58 = vst.msk [vmem:[#allocation2 + $0xa0] sm:$0x1] %vm47, 0.0
    %59 = vst.msk [vmem:[#allocation2 + $0xb0] sm:$0x1] %vm47, 0.0
    %60 = vst.msk [vmem:[#allocation2 + $0xc0] sm:$0x1] %vm47, 0.0
    %61 = vst.msk [vmem:[#allocation2 + $0xd0] sm:$0x1] %vm47, 0.0
    %62 = vst.msk [vmem:[#allocation2 + $0xe0] sm:$0x1] %vm47, 0.0
    %63 = vst.msk [vmem:[#allocation2 + $0xf0] sm:$0x1] %vm47, 0.0
    %64 = vst.msk [vmem:[#allocation2 + $0x100] sm:$0x1] %vm47, 0.0
    %65 = vst.msk [vmem:[#allocation2 + $0x110] sm:$0x1] %vm47, 0.0
    %66 = vst.msk [vmem:[#allocation2 + $0x120] sm:$0x1] %vm47, 0.0
    %67 = vst.msk [vmem:[#allocation2 + $0x130] sm:$0x1] %vm47, 0.0
    %68 = vst.msk [vmem:[#allocation2 + $0x9] sm:$0x1] %vm47, 0.0
    %69 = vst.msk [vmem:[#allocation2 + $0x19] sm:$0x1] %vm47, 0.0
    %70 = vst.msk [vmem:[#allocation2 + $0x29] sm:$0x1] %vm47, 0.0
    %71 = vst.msk [vmem:[#allocation2 + $0x39] sm:$0x1] %vm47, 0.0
    %72 = vst.msk [vmem:[#allocation2 + $0x49] sm:$0x1] %vm47, 0.0
    %73 = vst.msk [vmem:[#allocation2 + $0x59] sm:$0x1] %vm47, 0.0
    %74 = vst.msk [vmem:[#allocation2 + $0x69] sm:$0x1] %vm47, 0.0
    %75 = vst.msk [vmem:[#allocation2 + $0x79] sm:$0x1] %vm47, 0.0
    %76 = vst.msk [vmem:[#allocation2 + $0x89] sm:$0x1] %vm47, 0.0
    %77 = vst.msk [vmem:[#allocation2 + $0x99] sm:$0x1] %vm47, 0.0
    %78 = vst.msk [vmem:[#allocation2 + $0xa9] sm:$0x1] %vm47, 0.0
    %79 = vst.msk [vmem:[#allocation2 + $0xb9] sm:$0x1] %vm47, 0.0
    %80 = vst.msk [vmem:[#allocation2 + $0xc9] sm:$0x1] %vm47, 0.0
    %81 = vst.msk [vmem:[#allocation2 + $0xd9] sm:$0x1] %vm47, 0.0
    %82 = vst.msk [vmem:[#allocation2 + $0xe9] sm:$0x1] %vm47, 0.0
    %83 = vst.msk [vmem:[#allocation2 + $0xf9] sm:$0x1] %vm47, 0.0
    %84 = vst.msk [vmem:[#allocation2 + $0x109] sm:$0x1] %vm47, 0.0
    %85 = vst.msk [vmem:[#allocation2 + $0x119] sm:$0x1] %vm47, 0.0
    %86 = vst.msk [vmem:[#allocation2 + $0x129] sm:$0x1] %vm47, 0.0
    %87 = vst.msk [vmem:[#allocation2 + $0x139] sm:$0x1] %vm47, 0.0
    %vm88 = vcmask 261120
    %89 = vst.msk [vmem:[#allocation3] sm:$0xff] %vm88, 0.0
    %vm90 = vcmask 254976
    %91 = vst.msk [vmem:[#allocation3 + $0x8] sm:$0x3] %vm90, 0.0
    %92 = vst.msk [vmem:[#allocation3 + $0xa0] sm:$0xff] %vm88, 0.0
    %93 = vst.msk [vmem:[#allocation3 + $0xa8] sm:$0x3] %vm90, 0.0
    %s94 = scalar_lea.vmem [#allocation3], 144
    %95 = vst.msk [vmem:[%s94] sm:$0xff] %vm88, 0.0
    %96 = vst.msk [vmem:[%s94 + $0x8] sm:$0x3] %vm90, 0.0
    %97 = vst.msk [vmem:[%s94 + $0xa0] sm:$0xff] %vm88, 0.0
    %98 = vst.msk [vmem:[%s94 + $0xa8] sm:$0x3] %vm90, 0.0
    %vm99 = vcmask 253952
    %100 = vst.msk [vmem:[#allocation3] sm:$0x1] %vm99, 0.0
    %101 = vst.msk [vmem:[#allocation3 + $0x10] sm:$0x1] %vm99, 0.0
    %102 = vst.msk [vmem:[#allocation3 + $0x20] sm:$0x1] %vm99, 0.0
    %103 = vst.msk [vmem:[#allocation3 + $0x30] sm:$0x1] %vm99, 0.0
    %104 = vst.msk [vmem:[#allocation3 + $0x40] sm:$0x1] %vm99, 0.0
    %105 = vst.msk [vmem:[#allocation3 + $0x50] sm:$0x1] %vm99, 0.0
    %106 = vst.msk [vmem:[#allocation3 + $0x60] sm:$0x1] %vm99, 0.0
    %107 = vst.msk [vmem:[#allocation3 + $0x70] sm:$0x1] %vm99, 0.0
    %108 = vst.msk [vmem:[#allocation3 + $0x80] sm:$0x1] %vm99, 0.0
    %109 = vst.msk [vmem:[#allocation3 + $0x90] sm:$0x1] %vm99, 0.0
    %110 = vst.msk [vmem:[#allocation3 + $0xa0] sm:$0x1] %vm99, 0.0
    %111 = vst.msk [vmem:[#allocation3 + $0xb0] sm:$0x1] %vm99, 0.0
    %112 = vst.msk [vmem:[#allocation3 + $0xc0] sm:$0x1] %vm99, 0.0
    %113 = vst.msk [vmem:[#allocation3 + $0xd0] sm:$0x1] %vm99, 0.0
    %114 = vst.msk [vmem:[#allocation3 + $0xe0] sm:$0x1] %vm99, 0.0
    %115 = vst.msk [vmem:[#allocation3 + $0xf0] sm:$0x1] %vm99, 0.0
    %116 = vst.msk [vmem:[#allocation3 + $0x100] sm:$0x1] %vm99, 0.0
    %117 = vst.msk [vmem:[#allocation3 + $0x110] sm:$0x1] %vm99, 0.0
    %118 = vst.msk [vmem:[#allocation3 + $0x120] sm:$0x1] %vm99, 0.0
    %119 = vst.msk [vmem:[#allocation3 + $0x130] sm:$0x1] %vm99, 0.0
    %120 = vst.msk [vmem:[#allocation3 + $0x9] sm:$0x1] %vm99, 0.0
    %121 = vst.msk [vmem:[#allocation3 + $0x19] sm:$0x1] %vm99, 0.0
    %122 = vst.msk [vmem:[#allocation3 + $0x29] sm:$0x1] %vm99, 0.0
    %123 = vst.msk [vmem:[#allocation3 + $0x39] sm:$0x1] %vm99, 0.0
    %124 = vst.msk [vmem:[#allocation3 + $0x49] sm:$0x1] %vm99, 0.0
    %125 = vst.msk [vmem:[#allocation3 + $0x59] sm:$0x1] %vm99, 0.0
    %126 = vst.msk [vmem:[#allocation3 + $0x69] sm:$0x1] %vm99, 0.0
    %127 = vst.msk [vmem:[#allocation3 + $0x79] sm:$0x1] %vm99, 0.0
    %128 = vst.msk [vmem:[#allocation3 + $0x89] sm:$0x1] %vm99, 0.0
    %129 = vst.msk [vmem:[#allocation3 + $0x99] sm:$0x1] %vm99, 0.0
    %130 = vst.msk [vmem:[#allocation3 + $0xa9] sm:$0x1] %vm99, 0.0
    %131 = vst.msk [vmem:[#allocation3 + $0xb9] sm:$0x1] %vm99, 0.0
    %132 = vst.msk [vmem:[#allocation3 + $0xc9] sm:$0x1] %vm99, 0.0
    %133 = vst.msk [vmem:[#allocation3 + $0xd9] sm:$0x1] %vm99, 0.0
    %134 = vst.msk [vmem:[#allocation3 + $0xe9] sm:$0x1] %vm99, 0.0
    %135 = vst.msk [vmem:[#allocation3 + $0xf9] sm:$0x1] %vm99, 0.0
    %136 = vst.msk [vmem:[#allocation3 + $0x109] sm:$0x1] %vm99, 0.0
    %137 = vst.msk [vmem:[#allocation3 + $0x119] sm:$0x1] %vm99, 0.0
    %138 = vst.msk [vmem:[#allocation3 + $0x129] sm:$0x1] %vm99, 0.0
    %139 = vst.msk [vmem:[#allocation3 + $0x139] sm:$0x1] %vm99, 0.0
    %v140 = vld [vmem:[%s0] sm:$0xff]
    %v141 = vld [vmem:[%s0 + $0x8] sm:$0xff]
    %v142 = vld [vmem:[%s0 + $0x10] sm:$0xff]
    %v143 = vld [vmem:[%s0 + $0x18] sm:$0xff]
    %v144 = vld [vmem:[%s0 + $0x20] sm:$0xff]
    %v145 = vld [vmem:[%s0 + $0x28] sm:$0xff]
    %v146 = vld [vmem:[%s0 + $0x30] sm:$0xff]
    %v147 = vld [vmem:[%s0 + $0x38] sm:$0xff]
    %v148 = vld [vmem:[%s0 + $0x40] sm:$0xff]
    %v149 = vld [vmem:[%s0 + $0x48] sm:$0xff]
    %v150 = vld [vmem:[%s0 + $0x50] sm:$0xff]
    %v151 = vld [vmem:[%s0 + $0x58] sm:$0xff]
    %v152 = vld [vmem:[%s0 + $0x60] sm:$0xff]
    %v153 = vld [vmem:[%s0 + $0x68] sm:$0xff]
    %v154 = vld [vmem:[%s0 + $0x70] sm:$0xff]
    %v155 = vld [vmem:[%s0 + $0x78] sm:$0xff]
    %v156 = vld [vmem:[%s0 + $0x80] sm:$0xff]
    %v157 = vld [vmem:[%s0 + $0x88] sm:$0xff]
    %v158 = vld [vmem:[%s0 + $0x90] sm:$0xff]
    %v159 = vld [vmem:[%s0 + $0x98] sm:$0xff]
    %v160 = vld [vmem:[%s0 + $0xa0] sm:$0xff]
    %v161 = vld [vmem:[%s0 + $0xa8] sm:$0xff]
    %v162 = vld [vmem:[%s0 + $0xb0] sm:$0xff]
    %v163 = vld [vmem:[%s0 + $0xb8] sm:$0xff]
    %v164 = vld [vmem:[%s0 + $0xc0] sm:$0xff]
    %v165 = vld [vmem:[%s0 + $0xc8] sm:$0xff]
    %v166 = vld [vmem:[%s0 + $0xd0] sm:$0xff]
    %v167 = vld [vmem:[%s0 + $0xd8] sm:$0xff]
    %v168 = vld [vmem:[%s0 + $0xe0] sm:$0xff]
    %v169 = vld [vmem:[%s0 + $0xe8] sm:$0xff]
    %v170 = vld [vmem:[%s0 + $0xf0] sm:$0xff]
    %v171 = vld [vmem:[%s0 + $0xf8] sm:$0xff]
    %v172 = vadd.f32 %v140, %v141
    %v173 = vadd.f32 %v142, %v143
    %v174 = vadd.f32 %v144, %v145
    %v175 = vadd.f32 %v146, %v147
    %v176 = vadd.f32 %v148, %v149
    %v177 = vadd.f32 %v150, %v151
    %v178 = vadd.f32 %v152, %v153
    %v179 = vadd.f32 %v154, %v155
    %v180 = vadd.f32 %v156, %v157
    %v181 = vadd.f32 %v158, %v159
    %v182 = vadd.f32 %v160, %v161
    %v183 = vadd.f32 %v162, %v163
    %v184 = vadd.f32 %v164, %v165
    %v185 = vadd.f32 %v166, %v167
    %v186 = vadd.f32 %v168, %v169
    %v187 = vadd.f32 %v170, %v171
    %204 = vrot.lane.b32.xlu0 %v172, 124
    %v205 = vpop.permute.xlu0 %204
    %206 = vrot.lane.b32.xlu0 %v173, 124
    %v207 = vpop.permute.xlu0 %206
    %208 = vrot.lane.b32.xlu0 %v174, 124
    %v209 = vpop.permute.xlu0 %208
    %210 = vrot.lane.b32.xlu0 %v175, 124
    %v211 = vpop.permute.xlu0 %210
    %212 = vrot.lane.b32.xlu0 %v176, 124
    %v213 = vpop.permute.xlu0 %212
    %214 = vrot.lane.b32.xlu0 %v177, 124
    %v215 = vpop.permute.xlu0 %214
    %216 = vrot.lane.b32.xlu0 %v178, 124
    %v217 = vpop.permute.xlu0 %216
    %218 = vrot.lane.b32.xlu0 %v179, 124
    %v219 = vpop.permute.xlu0 %218
    %220 = vrot.lane.b32.xlu0 %v180, 124
    %v221 = vpop.permute.xlu0 %220
    %222 = vrot.lane.b32.xlu0 %v181, 124
    %v223 = vpop.permute.xlu0 %222
    %224 = vrot.lane.b32.xlu0 %v182, 124
    %v225 = vpop.permute.xlu0 %224
    %226 = vrot.lane.b32.xlu0 %v183, 124
    %v227 = vpop.permute.xlu0 %226
    %228 = vrot.lane.b32.xlu0 %v184, 124
    %v229 = vpop.permute.xlu0 %228
    %230 = vrot.lane.b32.xlu0 %v185, 124
    %v231 = vpop.permute.xlu0 %230
    %232 = vrot.lane.b32.xlu0 %v186, 124
    %v233 = vpop.permute.xlu0 %232
    %234 = vrot.lane.b32.xlu0 %v187, 124
    %v235 = vpop.permute.xlu0 %234
    %v252 = vadd.f32 %v172, %v205
    %v253 = vadd.f32 %v173, %v207
    %v254 = vadd.f32 %v174, %v209
    %v255 = vadd.f32 %v175, %v211
    %v256 = vadd.f32 %v176, %v213
    %v257 = vadd.f32 %v177, %v215
    %v258 = vadd.f32 %v178, %v217
    %v259 = vadd.f32 %v179, %v219
    %v260 = vadd.f32 %v180, %v221
    %v261 = vadd.f32 %v181, %v223
    %v262 = vadd.f32 %v182, %v225
    %v263 = vadd.f32 %v183, %v227
    %v264 = vadd.f32 %v184, %v229
    %v265 = vadd.f32 %v185, %v231
    %v266 = vadd.f32 %v186, %v233
    %v267 = vadd.f32 %v187, %v235
    %v268 = vmul.f32 %v252, 0.25
    %v269 = vmul.f32 %v253, 0.25
    %v270 = vmul.f32 %v254, 0.25
    %v271 = vmul.f32 %v255, 0.25
    %v272 = vmul.f32 %v256, 0.25
    %v273 = vmul.f32 %v257, 0.25
    %v274 = vmul.f32 %v258, 0.25
    %v275 = vmul.f32 %v259, 0.25
    %v276 = vmul.f32 %v260, 0.25
    %v277 = vmul.f32 %v261, 0.25
    %v278 = vmul.f32 %v262, 0.25
    %v279 = vmul.f32 %v263, 0.25
    %v280 = vmul.f32 %v264, 0.25
    %v281 = vmul.f32 %v265, 0.25
    %v282 = vmul.f32 %v266, 0.25
    %v283 = vmul.f32 %v267, 0.25
    %s284 = scalar_lea.vmem [#allocation2], 16
    %285 = vst.msk [vmem:[%s284 + $0x1] sm:$0xff] %vm36, %v268
    %286 = vst.msk [vmem:[%s284 + $0x11] sm:$0xff] %vm36, %v269
    %287 = vst.msk [vmem:[%s284 + $0x21] sm:$0xff] %vm36, %v270
    %288 = vst.msk [vmem:[%s284 + $0x31] sm:$0xff] %vm36, %v271
    %289 = vst.msk [vmem:[%s284 + $0x41] sm:$0xff] %vm36, %v272
    %290 = vst.msk [vmem:[%s284 + $0x51] sm:$0xff] %vm36, %v273
    %291 = vst.msk [vmem:[%s284 + $0x61] sm:$0xff] %vm36, %v274
    %292 = vst.msk [vmem:[%s284 + $0x71] sm:$0xff] %vm36, %v275
    %293 = vst.msk [vmem:[%s284 + $0xa1] sm:$0xff] %vm36, %v276
    %294 = vst.msk [vmem:[%s284 + $0xb1] sm:$0xff] %vm36, %v277
    %295 = vst.msk [vmem:[%s284 + $0xc1] sm:$0xff] %vm36, %v278
    %296 = vst.msk [vmem:[%s284 + $0xd1] sm:$0xff] %vm36, %v279
    %297 = vst.msk [vmem:[%s284 + $0xe1] sm:$0xff] %vm36, %v280
    %298 = vst.msk [vmem:[%s284 + $0xf1] sm:$0xff] %vm36, %v281
    %299 = vst.msk [vmem:[%s284 + $0x101] sm:$0xff] %vm36, %v282
    %300 = vst.msk [vmem:[%s284 + $0x111] sm:$0xff] %vm36, %v283
    %v301 = vld [vmem:[#allocation2] sm:$0xff]
    %v302 = vld [vmem:[#allocation2 + $0x10] sm:$0xff]
    %v303 = vld [vmem:[#allocation2 + $0x20] sm:$0xff]
    %v304 = vld [vmem:[#allocation2 + $0x30] sm:$0xff]
    %v305 = vld [vmem:[#allocation2 + $0x40] sm:$0xff]
    %v306 = vld [vmem:[#allocation2 + $0x50] sm:$0xff]
    %v307 = vld [vmem:[#allocation2 + $0x60] sm:$0xff]
    %v308 = vld [vmem:[#allocation2 + $0x70] sm:$0xff]
    %v309 = vld [vmem:[#allocation2 + $0xa0] sm:$0xff]
    %v310 = vld [vmem:[#allocation2 + $0xb0] sm:$0xff]
    %v311 = vld [vmem:[#allocation2 + $0xc0] sm:$0xff]
    %v312 = vld [vmem:[#allocation2 + $0xd0] sm:$0xff]
    %v313 = vld [vmem:[#allocation2 + $0xe0] sm:$0xff]
    %v314 = vld [vmem:[#allocation2 + $0xf0] sm:$0xff]
    %v315 = vld [vmem:[#allocation2 + $0x100] sm:$0xff]
    %v316 = vld [vmem:[#allocation2 + $0x110] sm:$0xff]
    %v317 = vld [vmem:[#allocation2 + $0x1] sm:$0xff]
    %v318 = vld [vmem:[#allocation2 + $0x11] sm:$0xff]
    %v319 = vld [vmem:[#allocation2 + $0x21] sm:$0xff]
    %v320 = vld [vmem:[#allocation2 + $0x31] sm:$0xff]
    %v321 = vld [vmem:[#allocation2 + $0x41] sm:$0xff]
    %v322 = vld [vmem:[#allocation2 + $0x51] sm:$0xff]
    %v323 = vld [vmem:[#allocation2 + $0x61] sm:$0xff]
    %v324 = vld [vmem:[#allocation2 + $0x71] sm:$0xff]
    %v325 = vld [vmem:[#allocation2 + $0xa1] sm:$0xff]
    %v326 = vld [vmem:[#allocation2 + $0xb1] sm:$0xff]
    %v327 = vld [vmem:[#allocation2 + $0xc1] sm:$0xff]
    %v328 = vld [vmem:[#allocation2 + $0xd1] sm:$0xff]
    %v329 = vld [vmem:[#allocation2 + $0xe1] sm:$0xff]
    %v330 = vld [vmem:[#allocation2 + $0xf1] sm:$0xff]
    %v331 = vld [vmem:[#allocation2 + $0x101] sm:$0xff]
    %v332 = vld [vmem:[#allocation2 + $0x111] sm:$0xff]
    %v333 = vld [vmem:[#allocation2 + $0x2] sm:$0xff]
    %v334 = vld [vmem:[#allocation2 + $0x12] sm:$0xff]
    %v335 = vld [vmem:[#allocation2 + $0x22] sm:$0xff]
    %v336 = vld [vmem:[#allocation2 + $0x32] sm:$0xff]
    %v337 = vld [vmem:[#allocation2 + $0x42] sm:$0xff]
    %v338 = vld [vmem:[#allocation2 + $0x52] sm:$0xff]
    %v339 = vld [vmem:[#allocation2 + $0x62] sm:$0xff]
    %v340 = vld [vmem:[#allocation2 + $0x72] sm:$0xff]
    %v341 = vld [vmem:[#allocation2 + $0xa2] sm:$0xff]
    %v342 = vld [vmem:[#allocation2 + $0xb2] sm:$0xff]
    %v343 = vld [vmem:[#allocation2 + $0xc2] sm:$0xff]
    %v344 = vld [vmem:[#allocation2 + $0xd2] sm:$0xff]
    %v345 = vld [vmem:[#allocation2 + $0xe2] sm:$0xff]
    %v346 = vld [vmem:[#allocation2 + $0xf2] sm:$0xff]
    %v347 = vld [vmem:[#allocation2 + $0x102] sm:$0xff]
    %v348 = vld [vmem:[#allocation2 + $0x112] sm:$0xff]
    %v349 = vld [vmem:[%s284] sm:$0xff]
    %v350 = vld [vmem:[%s284 + $0x10] sm:$0xff]
    %v351 = vld [vmem:[%s284 + $0x20] sm:$0xff]
    %v352 = vld [vmem:[%s284 + $0x30] sm:$0xff]
    %v353 = vld [vmem:[%s284 + $0x40] sm:$0xff]
    %v354 = vld [vmem:[%s284 + $0x50] sm:$0xff]
    %v355 = vld [vmem:[%s284 + $0x60] sm:$0xff]
    %v356 = vld [vmem:[%s284 + $0x70] sm:$0xff]
    %v357 = vld [vmem:[%s284 + $0xa0] sm:$0xff]
    %v358 = vld [vmem:[%s284 + $0xb0] sm:$0xff]
    %v359 = vld [vmem:[%s284 + $0xc0] sm:$0xff]
    %v360 = vld [vmem:[%s284 + $0xd0] sm:$0xff]
    %v361 = vld [vmem:[%s284 + $0xe0] sm:$0xff]
    %v362 = vld [vmem:[%s284 + $0xf0] sm:$0xff]
    %v363 = vld [vmem:[%s284 + $0x100] sm:$0xff]
    %v364 = vld [vmem:[%s284 + $0x110] sm:$0xff]
    %v365 = vld [vmem:[%s284 + $0x1] sm:$0xff]
    %v366 = vld [vmem:[%s284 + $0x11] sm:$0xff]
    %v367 = vld [vmem:[%s284 + $0x21] sm:$0xff]
    %v368 = vld [vmem:[%s284 + $0x31] sm:$0xff]
    %v369 = vld [vmem:[%s284 + $0x41] sm:$0xff]
    %v370 = vld [vmem:[%s284 + $0x51] sm:$0xff]
    %v371 = vld [vmem:[%s284 + $0x61] sm:$0xff]
    %v372 = vld [vmem:[%s284 + $0x71] sm:$0xff]
    %v373 = vld [vmem:[%s284 + $0xa1] sm:$0xff]
    %v374 = vld [vmem:[%s284 + $0xb1] sm:$0xff]
    %v375 = vld [vmem:[%s284 + $0xc1] sm:$0xff]
    %v376 = vld [vmem:[%s284 + $0xd1] sm:$0xff]
    %v377 = vld [vmem:[%s284 + $0xe1] sm:$0xff]
    %v378 = vld [vmem:[%s284 + $0xf1] sm:$0xff]
    %v379 = vld [vmem:[%s284 + $0x101] sm:$0xff]
    %v380 = vld [vmem:[%s284 + $0x111] sm:$0xff]
    %v381 = vld [vmem:[%s284 + $0x2] sm:$0xff]
    %v382 = vld [vmem:[%s284 + $0x12] sm:$0xff]
    %v383 = vld [vmem:[%s284 + $0x22] sm:$0xff]
    %v384 = vld [vmem:[%s284 + $0x32] sm:$0xff]
    %v385 = vld [vmem:[%s284 + $0x42] sm:$0xff]
    %v386 = vld [vmem:[%s284 + $0x52] sm:$0xff]
    %v387 = vld [vmem:[%s284 + $0x62] sm:$0xff]
    %v388 = vld [vmem:[%s284 + $0x72] sm:$0xff]
    %v389 = vld [vmem:[%s284 + $0xa2] sm:$0xff]
    %v390 = vld [vmem:[%s284 + $0xb2] sm:$0xff]
    %v391 = vld [vmem:[%s284 + $0xc2] sm:$0xff]
    %v392 = vld [vmem:[%s284 + $0xd2] sm:$0xff]
    %v393 = vld [vmem:[%s284 + $0xe2] sm:$0xff]
    %v394 = vld [vmem:[%s284 + $0xf2] sm:$0xff]
    %v395 = vld [vmem:[%s284 + $0x102] sm:$0xff]
    %v396 = vld [vmem:[%s284 + $0x112] sm:$0xff]
    %s397 = scalar_lea.vmem [#allocation2], 32
    %v398 = vld [vmem:[%s397] sm:$0xff]
    %v399 = vld [vmem:[%s397 + $0x10] sm:$0xff]
    %v400 = vld [vmem:[%s397 + $0x20] sm:$0xff]
    %v401 = vld [vmem:[%s397 + $0x30] sm:$0xff]
    %v402 = vld [vmem:[%s397 + $0x40] sm:$0xff]
    %v403 = vld [vmem:[%s397 + $0x50] sm:$0xff]
    %v404 = vld [vmem:[%s397 + $0x60] sm:$0xff]
    %v405 = vld [vmem:[%s397 + $0x70] sm:$0xff]
    %v406 = vld [vmem:[%s397 + $0xa0] sm:$0xff]
    %v407 = vld [vmem:[%s397 + $0xb0] sm:$0xff]
    %v408 = vld [vmem:[%s397 + $0xc0] sm:$0xff]
    %v409 = vld [vmem:[%s397 + $0xd0] sm:$0xff]
    %v410 = vld [vmem:[%s397 + $0xe0] sm:$0xff]
    %v411 = vld [vmem:[%s397 + $0xf0] sm:$0xff]
    %v412 = vld [vmem:[%s397 + $0x100] sm:$0xff]
    %v413 = vld [vmem:[%s397 + $0x110] sm:$0xff]
    %v414 = vld [vmem:[%s397 + $0x1] sm:$0xff]
    %v415 = vld [vmem:[%s397 + $0x11] sm:$0xff]
    %v416 = vld [vmem:[%s397 + $0x21] sm:$0xff]
    %v417 = vld [vmem:[%s397 + $0x31] sm:$0xff]
    %v418 = vld [vmem:[%s397 + $0x41] sm:$0xff]
    %v419 = vld [vmem:[%s397 + $0x51] sm:$0xff]
    %v420 = vld [vmem:[%s397 + $0x61] sm:$0xff]
    %v421 = vld [vmem:[%s397 + $0x71] sm:$0xff]
    %v422 = vld [vmem:[%s397 + $0xa1] sm:$0xff]
    %v423 = vld [vmem:[%s397 + $0xb1] sm:$0xff]
    %v424 = vld [vmem:[%s397 + $0xc1] sm:$0xff]
    %v425 = vld [vmem:[%s397 + $0xd1] sm:$0xff]
    %v426 = vld [vmem:[%s397 + $0xe1] sm:$0xff]
    %v427 = vld [vmem:[%s397 + $0xf1] sm:$0xff]
    %v428 = vld [vmem:[%s397 + $0x101] sm:$0xff]
    %v429 = vld [vmem:[%s397 + $0x111] sm:$0xff]
    %v430 = vld [vmem:[%s397 + $0x2] sm:$0xff]
    %v431 = vld [vmem:[%s397 + $0x12] sm:$0xff]
    %v432 = vld [vmem:[%s397 + $0x22] sm:$0xff]
    %v433 = vld [vmem:[%s397 + $0x32] sm:$0xff]
    %v434 = vld [vmem:[%s397 + $0x42] sm:$0xff]
    %v435 = vld [vmem:[%s397 + $0x52] sm:$0xff]
    %v436 = vld [vmem:[%s397 + $0x62] sm:$0xff]
    %v437 = vld [vmem:[%s397 + $0x72] sm:$0xff]
    %v438 = vld [vmem:[%s397 + $0xa2] sm:$0xff]
    %v439 = vld [vmem:[%s397 + $0xb2] sm:$0xff]
    %v440 = vld [vmem:[%s397 + $0xc2] sm:$0xff]
    %v441 = vld [vmem:[%s397 + $0xd2] sm:$0xff]
    %v442 = vld [vmem:[%s397 + $0xe2] sm:$0xff]
    %v443 = vld [vmem:[%s397 + $0xf2] sm:$0xff]
    %v444 = vld [vmem:[%s397 + $0x102] sm:$0xff]
    %v445 = vld [vmem:[%s397 + $0x112] sm:$0xff]
    %462 = vrot.lane.b32.xlu0 %v317, 4
    %v463 = vpop.permute.xlu0 %462
    %464 = vrot.lane.b32.xlu0 %v318, 4
    %v465 = vpop.permute.xlu0 %464
    %466 = vrot.lane.b32.xlu0 %v319, 4
    %v467 = vpop.permute.xlu0 %466
    %468 = vrot.lane.b32.xlu0 %v320, 4
    %v469 = vpop.permute.xlu0 %468
    %470 = vrot.lane.b32.xlu0 %v321, 4
    %v471 = vpop.permute.xlu0 %470
    %472 = vrot.lane.b32.xlu0 %v322, 4
    %v473 = vpop.permute.xlu0 %472
    %474 = vrot.lane.b32.xlu0 %v323, 4
    %v475 = vpop.permute.xlu0 %474
    %476 = vrot.lane.b32.xlu0 %v324, 4
    %v477 = vpop.permute.xlu0 %476
    %478 = vrot.lane.b32.xlu0 %v325, 4
    %v479 = vpop.permute.xlu0 %478
    %480 = vrot.lane.b32.xlu0 %v326, 4
    %v481 = vpop.permute.xlu0 %480
    %482 = vrot.lane.b32.xlu0 %v327, 4
    %v483 = vpop.permute.xlu0 %482
    %484 = vrot.lane.b32.xlu0 %v328, 4
    %v485 = vpop.permute.xlu0 %484
    %486 = vrot.lane.b32.xlu0 %v329, 4
    %v487 = vpop.permute.xlu0 %486
    %488 = vrot.lane.b32.xlu0 %v330, 4
    %v489 = vpop.permute.xlu0 %488
    %490 = vrot.lane.b32.xlu0 %v331, 4
    %v491 = vpop.permute.xlu0 %490
    %492 = vrot.lane.b32.xlu0 %v332, 4
    %v493 = vpop.permute.xlu0 %492
    %526 = vrot.lane.b32.xlu0 %v333, 8
    %v527 = vpop.permute.xlu0 %526
    %528 = vrot.lane.b32.xlu0 %v334, 8
    %v529 = vpop.permute.xlu0 %528
    %530 = vrot.lane.b32.xlu0 %v335, 8
    %v531 = vpop.permute.xlu0 %530
    %532 = vrot.lane.b32.xlu0 %v336, 8
    %v533 = vpop.permute.xlu0 %532
    %534 = vrot.lane.b32.xlu0 %v337, 8
    %v535 = vpop.permute.xlu0 %534
    %536 = vrot.lane.b32.xlu0 %v338, 8
    %v537 = vpop.permute.xlu0 %536
    %538 = vrot.lane.b32.xlu0 %v339, 8
    %v539 = vpop.permute.xlu0 %538
    %540 = vrot.lane.b32.xlu0 %v340, 8
    %v541 = vpop.permute.xlu0 %540
    %542 = vrot.lane.b32.xlu0 %v341, 8
    %v543 = vpop.permute.xlu0 %542
    %544 = vrot.lane.b32.xlu0 %v342, 8
    %v545 = vpop.permute.xlu0 %544
    %546 = vrot.lane.b32.xlu0 %v343, 8
    %v547 = vpop.permute.xlu0 %546
    %548 = vrot.lane.b32.xlu0 %v344, 8
    %v549 = vpop.permute.xlu0 %548
    %550 = vrot.lane.b32.xlu0 %v345, 8
    %v551 = vpop.permute.xlu0 %550
    %552 = vrot.lane.b32.xlu0 %v346, 8
    %v553 = vpop.permute.xlu0 %552
    %554 = vrot.lane.b32.xlu0 %v347, 8
    %v555 = vpop.permute.xlu0 %554
    %556 = vrot.lane.b32.xlu0 %v348, 8
    %v557 = vpop.permute.xlu0 %556
    %590 = vrot.lane.b32.xlu0 %v349, 12
    %v591 = vpop.permute.xlu0 %590
    %592 = vrot.lane.b32.xlu0 %v350, 12
    %v593 = vpop.permute.xlu0 %592
    %594 = vrot.lane.b32.xlu0 %v351, 12
    %v595 = vpop.permute.xlu0 %594
    %596 = vrot.lane.b32.xlu0 %v352, 12
    %v597 = vpop.permute.xlu0 %596
    %598 = vrot.lane.b32.xlu0 %v353, 12
    %v599 = vpop.permute.xlu0 %598
    %600 = vrot.lane.b32.xlu0 %v354, 12
    %v601 = vpop.permute.xlu0 %600
    %602 = vrot.lane.b32.xlu0 %v355, 12
    %v603 = vpop.permute.xlu0 %602
    %604 = vrot.lane.b32.xlu0 %v356, 12
    %v605 = vpop.permute.xlu0 %604
    %606 = vrot.lane.b32.xlu0 %v357, 12
    %v607 = vpop.permute.xlu0 %606
    %608 = vrot.lane.b32.xlu0 %v358, 12
    %v609 = vpop.permute.xlu0 %608
    %610 = vrot.lane.b32.xlu0 %v359, 12
    %v611 = vpop.permute.xlu0 %610
    %612 = vrot.lane.b32.xlu0 %v360, 12
    %v613 = vpop.permute.xlu0 %612
    %614 = vrot.lane.b32.xlu0 %v361, 12
    %v615 = vpop.permute.xlu0 %614
    %616 = vrot.lane.b32.xlu0 %v362, 12
    %v617 = vpop.permute.xlu0 %616
    %618 = vrot.lane.b32.xlu0 %v363, 12
    %v619 = vpop.permute.xlu0 %618
    %620 = vrot.lane.b32.xlu0 %v364, 12
    %v621 = vpop.permute.xlu0 %620
    %654 = vrot.lane.b32.xlu0 %v365, 16
    %v655 = vpop.permute.xlu0 %654
    %656 = vrot.lane.b32.xlu0 %v366, 16
    %v657 = vpop.permute.xlu0 %656
    %658 = vrot.lane.b32.xlu0 %v367, 16
    %v659 = vpop.permute.xlu0 %658
    %660 = vrot.lane.b32.xlu0 %v368, 16
    %v661 = vpop.permute.xlu0 %660
    %662 = vrot.lane.b32.xlu0 %v369, 16
    %v663 = vpop.permute.xlu0 %662
    %664 = vrot.lane.b32.xlu0 %v370, 16
    %v665 = vpop.permute.xlu0 %664
    %666 = vrot.lane.b32.xlu0 %v371, 16
    %v667 = vpop.permute.xlu0 %666
    %668 = vrot.lane.b32.xlu0 %v372, 16
    %v669 = vpop.permute.xlu0 %668
    %670 = vrot.lane.b32.xlu0 %v373, 16
    %v671 = vpop.permute.xlu0 %670
    %672 = vrot.lane.b32.xlu0 %v374, 16
    %v673 = vpop.permute.xlu0 %672
    %674 = vrot.lane.b32.xlu0 %v375, 16
    %v675 = vpop.permute.xlu0 %674
    %676 = vrot.lane.b32.xlu0 %v376, 16
    %v677 = vpop.permute.xlu0 %676
    %678 = vrot.lane.b32.xlu0 %v377, 16
    %v679 = vpop.permute.xlu0 %678
    %680 = vrot.lane.b32.xlu0 %v378, 16
    %v681 = vpop.permute.xlu0 %680
    %682 = vrot.lane.b32.xlu0 %v379, 16
    %v683 = vpop.permute.xlu0 %682
    %684 = vrot.lane.b32.xlu0 %v380, 16
    %v685 = vpop.permute.xlu0 %684
    %718 = vrot.lane.b32.xlu0 %v381, 20
    %v719 = vpop.permute.xlu0 %718
    %720 = vrot.lane.b32.xlu0 %v382, 20
    %v721 = vpop.permute.xlu0 %720
    %722 = vrot.lane.b32.xlu0 %v383, 20
    %v723 = vpop.permute.xlu0 %722
    %724 = vrot.lane.b32.xlu0 %v384, 20
    %v725 = vpop.permute.xlu0 %724
    %726 = vrot.lane.b32.xlu0 %v385, 20
    %v727 = vpop.permute.xlu0 %726
    %728 = vrot.lane.b32.xlu0 %v386, 20
    %v729 = vpop.permute.xlu0 %728
    %730 = vrot.lane.b32.xlu0 %v387, 20
    %v731 = vpop.permute.xlu0 %730
    %732 = vrot.lane.b32.xlu0 %v388, 20
    %v733 = vpop.permute.xlu0 %732
    %734 = vrot.lane.b32.xlu0 %v389, 20
    %v735 = vpop.permute.xlu0 %734
    %736 = vrot.lane.b32.xlu0 %v390, 20
    %v737 = vpop.permute.xlu0 %736
    %738 = vrot.lane.b32.xlu0 %v391, 20
    %v739 = vpop.permute.xlu0 %738
    %740 = vrot.lane.b32.xlu0 %v392, 20
    %v741 = vpop.permute.xlu0 %740
    %742 = vrot.lane.b32.xlu0 %v393, 20
    %v743 = vpop.permute.xlu0 %742
    %744 = vrot.lane.b32.xlu0 %v394, 20
    %v745 = vpop.permute.xlu0 %744
    %746 = vrot.lane.b32.xlu0 %v395, 20
    %v747 = vpop.permute.xlu0 %746
    %748 = vrot.lane.b32.xlu0 %v396, 20
    %v749 = vpop.permute.xlu0 %748
    %782 = vrot.lane.b32.xlu0 %v398, 24
    %v783 = vpop.permute.xlu0 %782
    %784 = vrot.lane.b32.xlu0 %v399, 24
    %v785 = vpop.permute.xlu0 %784
    %786 = vrot.lane.b32.xlu0 %v400, 24
    %v787 = vpop.permute.xlu0 %786
    %788 = vrot.lane.b32.xlu0 %v401, 24
    %v789 = vpop.permute.xlu0 %788
    %790 = vrot.lane.b32.xlu0 %v402, 24
    %v791 = vpop.permute.xlu0 %790
    %792 = vrot.lane.b32.xlu0 %v403, 24
    %v793 = vpop.permute.xlu0 %792
    %794 = vrot.lane.b32.xlu0 %v404, 24
    %v795 = vpop.permute.xlu0 %794
    %796 = vrot.lane.b32.xlu0 %v405, 24
    %v797 = vpop.permute.xlu0 %796
    %798 = vrot.lane.b32.xlu0 %v406, 24
    %v799 = vpop.permute.xlu0 %798
    %800 = vrot.lane.b32.xlu0 %v407, 24
    %v801 = vpop.permute.xlu0 %800
    %802 = vrot.lane.b32.xlu0 %v408, 24
    %v803 = vpop.permute.xlu0 %802
    %804 = vrot.lane.b32.xlu0 %v409, 24
    %v805 = vpop.permute.xlu0 %804
    %806 = vrot.lane.b32.xlu0 %v410, 24
    %v807 = vpop.permute.xlu0 %806
    %808 = vrot.lane.b32.xlu0 %v411, 24
    %v809 = vpop.permute.xlu0 %808
    %810 = vrot.lane.b32.xlu0 %v412, 24
    %v811 = vpop.permute.xlu0 %810
    %812 = vrot.lane.b32.xlu0 %v413, 24
    %v813 = vpop.permute.xlu0 %812
    %846 = vrot.lane.b32.xlu0 %v414, 28
    %v847 = vpop.permute.xlu0 %846
    %848 = vrot.lane.b32.xlu0 %v415, 28
    %v849 = vpop.permute.xlu0 %848
    %850 = vrot.lane.b32.xlu0 %v416, 28
    %v851 = vpop.permute.xlu0 %850
    %852 = vrot.lane.b32.xlu0 %v417, 28
    %v853 = vpop.permute.xlu0 %852
    %854 = vrot.lane.b32.xlu0 %v418, 28
    %v855 = vpop.permute.xlu0 %854
    %856 = vrot.lane.b32.xlu0 %v419, 28
    %v857 = vpop.permute.xlu0 %856
    %858 = vrot.lane.b32.xlu0 %v420, 28
    %v859 = vpop.permute.xlu0 %858
    %860 = vrot.lane.b32.xlu0 %v421, 28
    %v861 = vpop.permute.xlu0 %860
    %862 = vrot.lane.b32.xlu0 %v422, 28
    %v863 = vpop.permute.xlu0 %862
    %864 = vrot.lane.b32.xlu0 %v423, 28
    %v865 = vpop.permute.xlu0 %864
    %866 = vrot.lane.b32.xlu0 %v424, 28
    %v867 = vpop.permute.xlu0 %866
    %868 = vrot.lane.b32.xlu0 %v425, 28
    %v869 = vpop.permute.xlu0 %868
    %870 = vrot.lane.b32.xlu0 %v426, 28
    %v871 = vpop.permute.xlu0 %870
    %872 = vrot.lane.b32.xlu0 %v427, 28
    %v873 = vpop.permute.xlu0 %872
    %874 = vrot.lane.b32.xlu0 %v428, 28
    %v875 = vpop.permute.xlu0 %874
    %876 = vrot.lane.b32.xlu0 %v429, 28
    %v877 = vpop.permute.xlu0 %876
    %910 = vrot.lane.b32.xlu0 %v430, 32
    %v911 = vpop.permute.xlu0 %910
    %912 = vrot.lane.b32.xlu0 %v431, 32
    %v913 = vpop.permute.xlu0 %912
    %914 = vrot.lane.b32.xlu0 %v432, 32
    %v915 = vpop.permute.xlu0 %914
    %916 = vrot.lane.b32.xlu0 %v433, 32
    %v917 = vpop.permute.xlu0 %916
    %918 = vrot.lane.b32.xlu0 %v434, 32
    %v919 = vpop.permute.xlu0 %918
    %920 = vrot.lane.b32.xlu0 %v435, 32
    %v921 = vpop.permute.xlu0 %920
    %922 = vrot.lane.b32.xlu0 %v436, 32
    %v923 = vpop.permute.xlu0 %922
    %924 = vrot.lane.b32.xlu0 %v437, 32
    %v925 = vpop.permute.xlu0 %924
    %926 = vrot.lane.b32.xlu0 %v438, 32
    %v927 = vpop.permute.xlu0 %926
    %928 = vrot.lane.b32.xlu0 %v439, 32
    %v929 = vpop.permute.xlu0 %928
    %930 = vrot.lane.b32.xlu0 %v440, 32
    %v931 = vpop.permute.xlu0 %930
    %932 = vrot.lane.b32.xlu0 %v441, 32
    %v933 = vpop.permute.xlu0 %932
    %934 = vrot.lane.b32.xlu0 %v442, 32
    %v935 = vpop.permute.xlu0 %934
    %936 = vrot.lane.b32.xlu0 %v443, 32
    %v937 = vpop.permute.xlu0 %936
    %938 = vrot.lane.b32.xlu0 %v444, 32
    %v939 = vpop.permute.xlu0 %938
    %940 = vrot.lane.b32.xlu0 %v445, 32
    %v941 = vpop.permute.xlu0 %940
    %v958 = vsel %vm36, %v301, %v463
    %v959 = vsel %vm36, %v302, %v465
    %v960 = vsel %vm36, %v303, %v467
    %v961 = vsel %vm36, %v304, %v469
    %v962 = vsel %vm36, %v305, %v471
    %v963 = vsel %vm36, %v306, %v473
    %v964 = vsel %vm36, %v307, %v475
    %v965 = vsel %vm36, %v308, %v477
    %v966 = vsel %vm36, %v309, %v479
    %v967 = vsel %vm36, %v310, %v481
    %v968 = vsel %vm36, %v311, %v483
    %v969 = vsel %vm36, %v312, %v485
    %v970 = vsel %vm36, %v313, %v487
    %v971 = vsel %vm36, %v314, %v489
    %v972 = vsel %vm36, %v315, %v491
    %v973 = vsel %vm36, %v316, %v493
    %vm974 = vcmask 64512
    %v975 = vsel %vm974, %v958, %v527
    %v976 = vsel %vm974, %v959, %v529
    %v977 = vsel %vm974, %v960, %v531
    %v978 = vsel %vm974, %v961, %v533
    %v979 = vsel %vm974, %v962, %v535
    %v980 = vsel %vm974, %v963, %v537
    %v981 = vsel %vm974, %v964, %v539
    %v982 = vsel %vm974, %v965, %v541
    %v983 = vsel %vm974, %v966, %v543
    %v984 = vsel %vm974, %v967, %v545
    %v985 = vsel %vm974, %v968, %v547
    %v986 = vsel %vm974, %v969, %v549
    %v987 = vsel %vm974, %v970, %v551
    %v988 = vsel %vm974, %v971, %v553
    %v989 = vsel %vm974, %v972, %v555
    %v990 = vsel %vm974, %v973, %v557
    %vm991 = vcmask 97280
    %v992 = vsel %vm991, %v975, %v591
    %v993 = vsel %vm991, %v976, %v593
    %v994 = vsel %vm991, %v977, %v595
    %v995 = vsel %vm991, %v978, %v597
    %v996 = vsel %vm991, %v979, %v599
    %v997 = vsel %vm991, %v980, %v601
    %v998 = vsel %vm991, %v981, %v603
    %v999 = vsel %vm991, %v982, %v605
    %v1000 = vsel %vm991, %v983, %v607
    %v1001 = vsel %vm991, %v984, %v609
    %v1002 = vsel %vm991, %v985, %v611
    %v1003 = vsel %vm991, %v986, %v613
    %v1004 = vsel %vm991, %v987, %v615
    %v1005 = vsel %vm991, %v988, %v617
    %v1006 = vsel %vm991, %v989, %v619
    %v1007 = vsel %vm991, %v990, %v621
    %vm1008 = vcmask 130048
    %v1009 = vsel %vm1008, %v992, %v655
    %v1010 = vsel %vm1008, %v993, %v657
    %v1011 = vsel %vm1008, %v994, %v659
    %v1012 = vsel %vm1008, %v995, %v661
    %v1013 = vsel %vm1008, %v996, %v663
    %v1014 = vsel %vm1008, %v997, %v665
    %v1015 = vsel %vm1008, %v998, %v667
    %v1016 = vsel %vm1008, %v999, %v669
    %v1017 = vsel %vm1008, %v1000, %v671
    %v1018 = vsel %vm1008, %v1001, %v673
    %v1019 = vsel %vm1008, %v1002, %v675
    %v1020 = vsel %vm1008, %v1003, %v677
    %v1021 = vsel %vm1008, %v1004, %v679
    %v1022 = vsel %vm1008, %v1005, %v681
    %v1023 = vsel %vm1008, %v1006, %v683
    %v1024 = vsel %vm1008, %v1007, %v685
    %vm1025 = vcmask 162816
    %v1026 = vsel %vm1025, %v1009, %v719
    %v1027 = vsel %vm1025, %v1010, %v721
    %v1028 = vsel %vm1025, %v1011, %v723
    %v1029 = vsel %vm1025, %v1012, %v725
    %v1030 = vsel %vm1025, %v1013, %v727
    %v1031 = vsel %vm1025, %v1014, %v729
    %v1032 = vsel %vm1025, %v1015, %v731
    %v1033 = vsel %vm1025, %v1016, %v733
    %v1034 = vsel %vm1025, %v1017, %v735
    %v1035 = vsel %vm1025, %v1018, %v737
    %v1036 = vsel %vm1025, %v1019, %v739
    %v1037 = vsel %vm1025, %v1020, %v741
    %v1038 = vsel %vm1025, %v1021, %v743
    %v1039 = vsel %vm1025, %v1022, %v745
    %v1040 = vsel %vm1025, %v1023, %v747
    %v1041 = vsel %vm1025, %v1024, %v749
    %vm1042 = vcmask 195584
    %v1043 = vsel %vm1042, %v1026, %v783
    %v1044 = vsel %vm1042, %v1027, %v785
    %v1045 = vsel %vm1042, %v1028, %v787
    %v1046 = vsel %vm1042, %v1029, %v789
    %v1047 = vsel %vm1042, %v1030, %v791
    %v1048 = vsel %vm1042, %v1031, %v793
    %v1049 = vsel %vm1042, %v1032, %v795
    %v1050 = vsel %vm1042, %v1033, %v797
    %v1051 = vsel %vm1042, %v1034, %v799
    %v1052 = vsel %vm1042, %v1035, %v801
    %v1053 = vsel %vm1042, %v1036, %v803
    %v1054 = vsel %vm1042, %v1037, %v805
    %v1055 = vsel %vm1042, %v1038, %v807
    %v1056 = vsel %vm1042, %v1039, %v809
    %v1057 = vsel %vm1042, %v1040, %v811
    %v1058 = vsel %vm1042, %v1041, %v813
    %vm1059 = vcmask 228352
    %v1060 = vsel %vm1059, %v1043, %v847
    %v1061 = vsel %vm1059, %v1044, %v849
    %v1062 = vsel %vm1059, %v1045, %v851
    %v1063 = vsel %vm1059, %v1046, %v853
    %v1064 = vsel %vm1059, %v1047, %v855
    %v1065 = vsel %vm1059, %v1048, %v857
    %v1066 = vsel %vm1059, %v1049, %v859
    %v1067 = vsel %vm1059, %v1050, %v861
    %v1068 = vsel %vm1059, %v1051, %v863
    %v1069 = vsel %vm1059, %v1052, %v865
    %v1070 = vsel %vm1059, %v1053, %v867
    %v1071 = vsel %vm1059, %v1054, %v869
    %v1072 = vsel %vm1059, %v1055, %v871
    %v1073 = vsel %vm1059, %v1056, %v873
    %v1074 = vsel %vm1059, %v1057, %v875
    %v1075 = vsel %vm1059, %v1058, %v877
    %v1076 = vsel %vm88, %v1060, %v911
    %v1077 = vsel %vm88, %v1061, %v913
    %v1078 = vsel %vm88, %v1062, %v915
    %v1079 = vsel %vm88, %v1063, %v917
    %v1080 = vsel %vm88, %v1064, %v919
    %v1081 = vsel %vm88, %v1065, %v921
    %v1082 = vsel %vm88, %v1066, %v923
    %v1083 = vsel %vm88, %v1067, %v925
    %v1084 = vsel %vm88, %v1068, %v927
    %v1085 = vsel %vm88, %v1069, %v929
    %v1086 = vsel %vm88, %v1070, %v931
    %v1087 = vsel %vm88, %v1071, %v933
    %v1088 = vsel %vm88, %v1072, %v935
    %v1089 = vsel %vm88, %v1073, %v937
    %v1090 = vsel %vm88, %v1074, %v939
    %v1091 = vsel %vm88, %v1075, %v941
    %v1092 = vld [vmem:[%s1] sm:$0xff]
    %v1093 = vld [vmem:[%s1 + $0x8] sm:$0xff]
    %v1094 = vld [vmem:[%s1 + $0x10] sm:$0xff]
    %v1095 = vld [vmem:[%s1 + $0x18] sm:$0xff]
    %v1096 = vld [vmem:[%s1 + $0x20] sm:$0xf]
    %v1097 = vld [vmem:[%s2] sm:$0x1]
    %v1099 = vlaneseq
    %v1100 = vshrl.u32 %v1099, 7
    %v1101 = vsub.s32 0, %v1100
    %v1102 = vrot.slane %v1097, %v1101
    %vm1104 = vcmask 293888
    %v1106 = vsel %vm1104, %v1076, 0
    %v1109 = vsel %vm1104, %v1077, 0
    %v1112 = vsel %vm1104, %v1078, 0
    %v1115 = vsel %vm1104, %v1079, 0
    %v1118 = vsel %vm1104, %v1080, 0
    %v1121 = vsel %vm1104, %v1081, 0
    %v1124 = vsel %vm1104, %v1082, 0
    %v1127 = vsel %vm1104, %v1083, 0
    %v1130 = vsel %vm1104, %v1084, 0
    %v1133 = vsel %vm1104, %v1085, 0
    %v1136 = vsel %vm1104, %v1086, 0
    %v1139 = vsel %vm1104, %v1087, 0
    %v1142 = vsel %vm1104, %v1088, 0
    %v1145 = vsel %vm1104, %v1089, 0
    %v1148 = vsel %vm1104, %v1090, 0
    %v1151 = vsel %vm1104, %v1091, 0
    %vm1153 = vcmask 1043456
    %v1155 = vsel %vm1153, %v1096, 0
    %1157 = vmatprep.subr.mxu0 0.0
    %1158 = vmatpush1.msra.mxu0 %v1092
    %1159 = vmatprep.subr.mxu0 0.0
    %1160 = vmatpush1.msra.mxu0 %v1093
    %1161 = vmatprep.subr.mxu0 0.0
    %1162 = vmatpush1.msra.mxu0 %v1094
    %1163 = vmatprep.subr.mxu0 0.0
    %1164 = vmatpush1.msra.mxu0 %v1095
    %1165 = vmatprep.subr.mxu0 0.0
    %1166 = vmatpush1.msra.mxu0 %v1155
    %1167 = vmatprep.subr.mxu0 0.0
    %1168 = vmatpush1.msra.mxu0 0.0
    %1169 = vmatprep.subr.mxu0 0.0
    %1170 = vmatpush1.msra.mxu0 0.0
    %1171 = vmatprep.subr.mxu0 0.0
    %1172 = vmatpush1.msra.mxu0 0.0
    %1173 = vmatprep.subr.mxu0 0.0
    %1174 = vmatpush1.msra.mxu0 0.0
    %1175 = vmatprep.subr.mxu0 0.0
    %1176 = vmatpush1.msra.mxu0 0.0
    %1177 = vmatprep.subr.mxu0 0.0
    %1178 = vmatpush1.msra.mxu0 0.0
    %1179 = vmatprep.subr.mxu0 0.0
    %1180 = vmatpush1.msra.mxu0 0.0
    %1181 = vmatprep.subr.mxu0 0.0
    %1182 = vmatpush1.msra.mxu0 0.0
    %1183 = vmatprep.subr.mxu0 0.0
    %1184 = vmatpush1.msra.mxu0 0.0
    %1185 = vmatprep.subr.mxu0 0.0
    %1186 = vmatpush1.msra.mxu0 0.0
    %1187 = vmatprep.subr.mxu0 0.0
    %1188 = vmatpush1.msra.mxu0 0.0
    %1189 = vmatprep.subr.mxu0 0.0
    %1190 = vmatpush1.msra.mxu0 0.0
    %1191 = vmatprep.subr.mxu0 0.0
    %1192 = vmatpush1.msra.mxu0 0.0
    %1193 = vmatprep.subr.mxu0 0.0
    %1194 = vmatpush1.msra.mxu0 0.0
    %1195 = vmatprep.subr.mxu0 0.0
    %1196 = vmatpush1.msra.mxu0 0.0
    %1197 = vmatprep.subr.mxu0 0.0
    %1198 = vmatpush1.msra.mxu0 0.0
    %1199 = vmatprep.subr.mxu0 0.0
    %1200 = vmatpush1.msra.mxu0 0.0
    %1201 = vmatprep.subr.mxu0 0.0
    %1202 = vmatpush1.msra.mxu0 0.0
    %1203 = vmatprep.subr.mxu0 0.0
    %1204 = vmatpush1.msra.mxu0 0.0
    %1205 = vmatprep.subr.mxu0 0.0
    %1206 = vmatpush1.msra.mxu0 0.0
    %1207 = vmatprep.subr.mxu0 0.0
    %1208 = vmatpush1.msra.mxu0 0.0
    %1209 = vmatprep.subr.mxu0 0.0
    %1210 = vmatpush1.msra.mxu0 0.0
    %1211 = vmatprep.subr.mxu0 0.0
    %1212 = vmatpush1.msra.mxu0 0.0
    %1213 = vmatprep.subr.mxu0 0.0
    %1214 = vmatpush1.msra.mxu0 0.0
    %1215 = vmatprep.subr.mxu0 0.0
    %1216 = vmatpush1.msra.mxu0 0.0
    %1217 = vmatprep.subr.mxu0 0.0
    %1218 = vmatpush1.msra.mxu0 0.0
    %1219 = vmatprep.subr.mxu0 0.0
    %1220 = vmatpush1.msra.mxu0 0.0
    %1221 = vmatprep.mubr.f32.mxu0 0.0
    %1222 = vmatmul.mubr.f32.gmra.mrb[0].mxu0 %v1106
    %v1223 = vpop.f32.mrb[0].mxu0
    %v1224 = vadd.f32 %v1102, %v1223
    %v1225 = vpop.f32.mrb[0].mxu0
    %1226 = vmatprep.mubr.f32.mxu0 0.0
    %1227 = vmatmul.mubr.f32.gmra.mrb[0].mxu0 %v1109
    %v1228 = vpop.f32.mrb[0].mxu0
    %v1229 = vadd.f32 %v1102, %v1228
    %v1230 = vpop.f32.mrb[0].mxu0
    %1231 = vmatprep.mubr.f32.mxu0 0.0
    %1232 = vmatmul.mubr.f32.gmra.mrb[0].mxu0 %v1112
    %v1233 = vpop.f32.mrb[0].mxu0
    %v1234 = vadd.f32 %v1102, %v1233
    %v1235 = vpop.f32.mrb[0].mxu0
    %1236 = vmatprep.mubr.f32.mxu0 0.0
    %1237 = vmatmul.mubr.f32.gmra.mrb[0].mxu0 %v1115
    %v1238 = vpop.f32.mrb[0].mxu0
    %v1239 = vadd.f32 %v1102, %v1238
    %v1240 = vpop.f32.mrb[0].mxu0
    %1241 = vmatprep.mubr.f32.mxu0 0.0
    %1242 = vmatmul.mubr.f32.gmra.mrb[0].mxu0 %v1118
    %v1243 = vpop.f32.mrb[0].mxu0
    %v1244 = vadd.f32 %v1102, %v1243
    %v1245 = vpop.f32.mrb[0].mxu0
    %1246 = vmatprep.mubr.f32.mxu0 0.0
    %1247 = vmatmul.mubr.f32.gmra.mrb[0].mxu0 %v1121
    %v1248 = vpop.f32.mrb[0].mxu0
    %v1249 = vadd.f32 %v1102, %v1248
    %v1250 = vpop.f32.mrb[0].mxu0
    %1251 = vmatprep.mubr.f32.mxu0 0.0
    %1252 = vmatmul.mubr.f32.gmra.mrb[0].mxu0 %v1124
    %v1253 = vpop.f32.mrb[0].mxu0
    %v1254 = vadd.f32 %v1102, %v1253
    %v1255 = vpop.f32.mrb[0].mxu0
    %1256 = vmatprep.mubr.f32.mxu0 0.0
    %1257 = vmatmul.mubr.f32.gmra.mrb[0].mxu0 %v1127
    %v1258 = vpop.f32.mrb[0].mxu0
    %v1259 = vadd.f32 %v1102, %v1258
    %v1260 = vpop.f32.mrb[0].mxu0
    %1261 = vmatprep.mubr.f32.mxu0 0.0
    %1262 = vmatmul.mubr.f32.gmra.mrb[0].mxu0 %v1130
    %v1263 = vpop.f32.mrb[0].mxu0
    %v1264 = vadd.f32 %v1102, %v1263
    %v1265 = vpop.f32.mrb[0].mxu0
    %1266 = vmatprep.mubr.f32.mxu0 0.0
    %1267 = vmatmul.mubr.f32.gmra.mrb[0].mxu0 %v1133
    %v1268 = vpop.f32.mrb[0].mxu0
    %v1269 = vadd.f32 %v1102, %v1268
    %v1270 = vpop.f32.mrb[0].mxu0
    %1271 = vmatprep.mubr.f32.mxu0 0.0
    %1272 = vmatmul.mubr.f32.gmra.mrb[0].mxu0 %v1136
    %v1273 = vpop.f32.mrb[0].mxu0
    %v1274 = vadd.f32 %v1102, %v1273
    %v1275 = vpop.f32.mrb[0].mxu0
    %1276 = vmatprep.mubr.f32.mxu0 0.0
    %1277 = vmatmul.mubr.f32.gmra.mrb[0].mxu0 %v1139
    %v1278 = vpop.f32.mrb[0].mxu0
    %v1279 = vadd.f32 %v1102, %v1278
    %v1280 = vpop.f32.mrb[0].mxu0
    %1281 = vmatprep.mubr.f32.mxu0 0.0
    %1282 = vmatmul.mubr.f32.gmra.mrb[0].mxu0 %v1142
    %v1283 = vpop.f32.mrb[0].mxu0
    %v1284 = vadd.f32 %v1102, %v1283
    %v1285 = vpop.f32.mrb[0].mxu0
    %1286 = vmatprep.mubr.f32.mxu0 0.0
    %1287 = vmatmul.mubr.f32.gmra.mrb[0].mxu0 %v1145
    %v1288 = vpop.f32.mrb[0].mxu0
    %v1289 = vadd.f32 %v1102, %v1288
    %v1290 = vpop.f32.mrb[0].mxu0
    %1291 = vmatprep.mubr.f32.mxu0 0.0
    %1292 = vmatmul.mubr.f32.gmra.mrb[0].mxu0 %v1148
    %v1293 = vpop.f32.mrb[0].mxu0
    %v1294 = vadd.f32 %v1102, %v1293
    %v1295 = vpop.f32.mrb[0].mxu0
    %1296 = vmatprep.mubr.f32.mxu0 0.0
    %1297 = vmatmul.mubr.f32.gmra.mrb[0].mxu0 %v1151
    %v1298 = vpop.f32.mrb[0].mxu0
    %v1299 = vadd.f32 %v1102, %v1298
    %v1300 = vpop.f32.mrb[0].mxu0
    %1301 = vdwg.mxu0
    %v1302 = vsel %vm88, %v1224, 0.0
    %v1303 = vsel %vm88, %v1229, 0.0
    %v1304 = vadd.f32 %v1302, %v1303
    %v1305 = vsel %vm88, %v1234, 0.0
    %v1306 = vadd.f32 %v1304, %v1305
    %v1307 = vsel %vm88, %v1239, 0.0
    %v1308 = vadd.f32 %v1306, %v1307
    %v1309 = vsel %vm88, %v1244, 0.0
    %v1310 = vadd.f32 %v1308, %v1309
    %v1311 = vsel %vm88, %v1249, 0.0
    %v1312 = vadd.f32 %v1310, %v1311
    %v1313 = vsel %vm88, %v1254, 0.0
    %v1314 = vadd.f32 %v1312, %v1313
    %v1315 = vsel %vm88, %v1259, 0.0
    %v1316 = vadd.f32 %v1314, %v1315
    %v1317 = vrot.slane %v1316, 4
    %v1318 = vadd.f32 %v1316, %v1317
    %v1319 = vrot.slane %v1318, 2
    %v1320 = vadd.f32 %v1318, %v1319
    %v1321 = vrot.slane %v1320, 1
    %v1322 = vadd.f32 %v1320, %v1321
    %v1323 = vsel %vm88, %v1264, 0.0
    %v1324 = vsel %vm88, %v1269, 0.0
    %v1325 = vadd.f32 %v1323, %v1324
    %v1326 = vsel %vm88, %v1274, 0.0
    %v1327 = vadd.f32 %v1325, %v1326
    %v1328 = vsel %vm88, %v1279, 0.0
    %v1329 = vadd.f32 %v1327, %v1328
    %v1330 = vsel %vm88, %v1284, 0.0
    %v1331 = vadd.f32 %v1329, %v1330
    %v1332 = vsel %vm88, %v1289, 0.0
    %v1333 = vadd.f32 %v1331, %v1332
    %v1334 = vsel %vm88, %v1294, 0.0
    %v1335 = vadd.f32 %v1333, %v1334
    %v1336 = vsel %vm88, %v1299, 0.0
    %v1337 = vadd.f32 %v1335, %v1336
    %v1338 = vrot.slane %v1337, 4
    %v1339 = vadd.f32 %v1337, %v1338
    %v1340 = vrot.slane %v1339, 2
    %v1341 = vadd.f32 %v1339, %v1340
    %v1342 = vrot.slane %v1341, 1
    %v1343 = vadd.f32 %v1341, %v1342
    %v1344 = vrcp.pop 64.0
    %v1345 = vmul.f32 %v1322, %v1344
    %v1346 = vmul.f32 %v1343, %v1344
    %v1347 = vmul.f32 %v1224, %v1224
    %v1348 = vmul.f32 %v1229, %v1229
    %v1349 = vmul.f32 %v1234, %v1234
    %v1350 = vmul.f32 %v1239, %v1239
    %v1351 = vmul.f32 %v1244, %v1244
    %v1352 = vmul.f32 %v1249, %v1249
    %v1353 = vmul.f32 %v1254, %v1254
    %v1354 = vmul.f32 %v1259, %v1259
    %v1355 = vmul.f32 %v1264, %v1264
    %v1356 = vmul.f32 %v1269, %v1269
    %v1357 = vmul.f32 %v1274, %v1274
    %v1358 = vmul.f32 %v1279, %v1279
    %v1359 = vmul.f32 %v1284, %v1284
    %v1360 = vmul.f32 %v1289, %v1289
    %v1361 = vmul.f32 %v1294, %v1294
    %v1362 = vmul.f32 %v1299, %v1299
    %v1363 = vsel %vm88, %v1347, 0.0
    %v1364 = vsel %vm88, %v1348, 0.0
    %v1365 = vadd.f32 %v1363, %v1364
    %v1366 = vsel %vm88, %v1349, 0.0
    %v1367 = vadd.f32 %v1365, %v1366
    %v1368 = vsel %vm88, %v1350, 0.0
    %v1369 = vadd.f32 %v1367, %v1368
    %v1370 = vsel %vm88, %v1351, 0.0
    %v1371 = vadd.f32 %v1369, %v1370
    %v1372 = vsel %vm88, %v1352, 0.0
    %v1373 = vadd.f32 %v1371, %v1372
    %v1374 = vsel %vm88, %v1353, 0.0
    %v1375 = vadd.f32 %v1373, %v1374
    %v1376 = vsel %vm88, %v1354, 0.0
    %v1377 = vadd.f32 %v1375, %v1376
    %v1378 = vrot.slane %v1377, 4
    %v1379 = vadd.f32 %v1377, %v1378
    %v1380 = vrot.slane %v1379, 2
    %v1381 = vadd.f32 %v1379, %v1380
    %v1382 = vrot.slane %v1381, 1
    %v1383 = vadd.f32 %v1381, %v1382
    %v1384 = vsel %vm88, %v1355, 0.0
    %v1385 = vsel %vm88, %v1356, 0.0
    %v1386 = vadd.f32 %v1384, %v1385
    %v1387 = vsel %vm88, %v1357, 0.0
    %v1388 = vadd.f32 %v1386, %v1387
    %v1389 = vsel %vm88, %v1358, 0.0
    %v1390 = vadd.f32 %v1388, %v1389
    %v1391 = vsel %vm88, %v1359, 0.0
    %v1392 = vadd.f32 %v1390, %v1391
    %v1393 = vsel %vm88, %v1360, 0.0
    %v1394 = vadd.f32 %v1392, %v1393
    %v1395 = vsel %vm88, %v1361, 0.0
    %v1396 = vadd.f32 %v1394, %v1395
    %v1397 = vsel %vm88, %v1362, 0.0
    %v1398 = vadd.f32 %v1396, %v1397
    %v1399 = vrot.slane %v1398, 4
    %v1400 = vadd.f32 %v1398, %v1399
    %v1401 = vrot.slane %v1400, 2
    %v1402 = vadd.f32 %v1400, %v1401
    %v1403 = vrot.slane %v1402, 1
    %v1404 = vadd.f32 %v1402, %v1403
    %v1405 = vmul.f32 %v1383, %v1344
    %v1406 = vmul.f32 %v1404, %v1344
    %vm1409 = vcmask 1041409
    %v1410 = vsel %vm1409, %v1346, %v1345
    %vm1414 = vcmask 1043459
    %v1415 = vsel %vm1414, %v1406, %v1405
    %vm1417 = vcmask 1041408
    %v1418 = vsel %vm1417, %v1410, %v1415
    %v1419 = vld [vmem:[%s9] sm:$0xff]
    %v1420 = vld [vmem:[%s9 + $0x8] sm:$0xff]
    %v1421 = vld [vmem:[%s9 + $0x10] sm:$0xff]
    %v1422 = vld [vmem:[%s9 + $0x18] sm:$0xff]
    %v1424 = vsel %vm88, %v1418, 0
    %1426 = vmatprep.subr.mxu0 0.0
    %1427 = vmatpush1.msra.mxu0 %v1419
    %1428 = vmatprep.subr.mxu0 0.0
    %1429 = vmatpush1.msra.mxu0 %v1420
    %1430 = vmatprep.subr.mxu0 0.0
    %1431 = vmatpush1.msra.mxu0 %v1421
    %1432 = vmatprep.subr.mxu0 0.0
    %1433 = vmatpush1.msra.mxu0 %v1422
    %1434 = vmatprep.subr.mxu0 0.0
    %1435 = vmatpush1.msra.mxu0 0.0
    %1436 = vmatprep.subr.mxu0 0.0
    %1437 = vmatpush1.msra.mxu0 0.0
    %1438 = vmatprep.subr.mxu0 0.0
    %1439 = vmatpush1.msra.mxu0 0.0
    %1440 = vmatprep.subr.mxu0 0.0
    %1441 = vmatpush1.msra.mxu0 0.0
    %1442 = vmatprep.subr.mxu0 0.0
    %1443 = vmatpush1.msra.mxu0 0.0
    %1444 = vmatprep.subr.mxu0 0.0
    %1445 = vmatpush1.msra.mxu0 0.0
    %1446 = vmatprep.subr.mxu0 0.0
    %1447 = vmatpush1.msra.mxu0 0.0
    %1448 = vmatprep.subr.mxu0 0.0
    %1449 = vmatpush1.msra.mxu0 0.0
    %1450 = vmatprep.subr.mxu0 0.0
    %1451 = vmatpush1.msra.mxu0 0.0
    %1452 = vmatprep.subr.mxu0 0.0
    %1453 = vmatpush1.msra.mxu0 0.0
    %1454 = vmatprep.subr.mxu0 0.0
    %1455 = vmatpush1.msra.mxu0 0.0
    %1456 = vmatprep.subr.mxu0 0.0
    %1457 = vmatpush1.msra.mxu0 0.0
    %1458 = vmatprep.subr.mxu0 0.0
    %1459 = vmatpush1.msra.mxu0 0.0
    %1460 = vmatprep.subr.mxu0 0.0
    %1461 = vmatpush1.msra.mxu0 0.0
    %1462 = vmatprep.subr.mxu0 0.0
    %1463 = vmatpush1.msra.mxu0 0.0
    %1464 = vmatprep.subr.mxu0 0.0
    %1465 = vmatpush1.msra.mxu0 0.0
    %1466 = vmatprep.subr.mxu0 0.0
    %1467 = vmatpush1.msra.mxu0 0.0
    %1468 = vmatprep.subr.mxu0 0.0
    %1469 = vmatpush1.msra.mxu0 0.0
    %1470 = vmatprep.subr.mxu0 0.0
    %1471 = vmatpush1.msra.mxu0 0.0
    %1472 = vmatprep.subr.mxu0 0.0
    %1473 = vmatpush1.msra.mxu0 0.0
    %1474 = vmatprep.subr.mxu0 0.0
    %1475 = vmatpush1.msra.mxu0 0.0
    %1476 = vmatprep.subr.mxu0 0.0
    %1477 = vmatpush1.msra.mxu0 0.0
    %1478 = vmatprep.subr.mxu0 0.0
    %1479 = vmatpush1.msra.mxu0 0.0
    %1480 = vmatprep.subr.mxu0 0.0
    %1481 = vmatpush1.msra.mxu0 0.0
    %1482 = vmatprep.subr.mxu0 0.0
    %1483 = vmatpush1.msra.mxu0 0.0
    %1484 = vmatprep.subr.mxu0 0.0
    %1485 = vmatpush1.msra.mxu0 0.0
    %1486 = vmatprep.subr.mxu0 0.0
    %1487 = vmatpush1.msra.mxu0 0.0
    %1488 = vmatprep.subr.mxu0 0.0
    %1489 = vmatpush1.msra.mxu0 0.0
    %1490 = vmatprep.mubr.f32.mxu0 0.0
    %1491 = vmatmul.mubr.f32.gmra.mrb[0].mxu0 %v1424
    %v1492 = vpop.f32.mrb[0].mxu0
    %v1493 = vadd.f32 0.0, %v1492
    %v1494 = vpop.f32.mrb[0].mxu0
    %1495 = vdwg.mxu0
    %v1498 = vunpack.c.l.s4 1966171168
    %v1499 = vunpack.c.0.s8 %v1498
    %v1500 = vlaneseq
    %v1501 = vshrl.u32 %v1500, 7
    %v1502 = vsub.s32 %v1499, %v1501
    %v1503 = vrot.slane %v1493, %v1502
    %v1504 = vcombine.high %v1503, %v1503
    %v1506 = vunpack.c.l.s4 1966171168
    %v1507 = vunpack.c.0.s8 %v1506
    %v1508 = vlaneseq
    %v1509 = vshrl.u32 %v1508, 7
    %v1510 = vsub.s32 %v1507, %v1509
    %v1511 = vrot.slane %v1503, %v1510
    %v1513 = vunpack.c.l.s4 1966171168
    %v1514 = vunpack.c.0.s8 %v1513
    %v1515 = vlaneseq
    %v1516 = vshrl.u32 %v1515, 7
    %v1517 = vsub.s32 %v1514, %v1516
    %v1518 = vrot.slane %v1504, %v1517
    %v1521 = vcombine.high %v1511, %v1511
    %v1522 = vcombine.high %v1518, %v1518
    %v1525 = vmul.f32 %v1511, %v1511
    %v1526 = vmul.f32 %v1518, %v1518
    %v1527 = vsub.f32 %v1521, %v1525
    %v1528 = vsub.f32 %v1522, %v1526
    %v1529 = vadd.f32 %v1527, 1e-05
    %v1530 = vadd.f32 %v1528, 1e-05
    %v1531 = vrsqrt.pop %v1529
    %v1532 = vrsqrt.pop %v1530
    %v1533 = vld [vmem:[%s3] sm:$0x1]
    %v1534 = vld [vmem:[%s4] sm:$0x1]
    %v1535 = vlaneseq
    %v1536 = vshrl.u32 %v1535, 7
    %v1537 = vsub.s32 0, %v1536
    %v1538 = vrot.slane %v1511, %v1537
    %v1539 = vlaneseq
    %v1540 = vshrl.u32 %v1539, 7
    %v1541 = vsub.s32 0, %v1540
    %v1542 = vrot.slane %v1518, %v1541
    %v1545 = vsub.f32 %v1224, %v1538
    %v1546 = vsub.f32 %v1229, %v1538
    %v1547 = vsub.f32 %v1234, %v1538
    %v1548 = vsub.f32 %v1239, %v1538
    %v1549 = vsub.f32 %v1244, %v1538
    %v1550 = vsub.f32 %v1249, %v1538
    %v1551 = vsub.f32 %v1254, %v1538
    %v1552 = vsub.f32 %v1259, %v1538
    %v1553 = vsub.f32 %v1264, %v1542
    %v1554 = vsub.f32 %v1269, %v1542
    %v1555 = vsub.f32 %v1274, %v1542
    %v1556 = vsub.f32 %v1279, %v1542
    %v1557 = vsub.f32 %v1284, %v1542
    %v1558 = vsub.f32 %v1289, %v1542
    %v1559 = vsub.f32 %v1294, %v1542
    %v1560 = vsub.f32 %v1299, %v1542
    %v1563 = vlaneseq
    %v1564 = vshrl.u32 %v1563, 7
    %v1565 = vsub.s32 0, %v1564
    %v1566 = vrot.slane %v1531, %v1565
    %v1567 = vlaneseq
    %v1568 = vshrl.u32 %v1567, 7
    %v1569 = vsub.s32 0, %v1568
    %v1570 = vrot.slane %v1532, %v1569
    %v1573 = vmul.f32 %v1545, %v1566
    %v1574 = vmul.f32 %v1546, %v1566
    %v1575 = vmul.f32 %v1547, %v1566
    %v1576 = vmul.f32 %v1548, %v1566
    %v1577 = vmul.f32 %v1549, %v1566
    %v1578 = vmul.f32 %v1550, %v1566
    %v1579 = vmul.f32 %v1551, %v1566
    %v1580 = vmul.f32 %v1552, %v1566
    %v1581 = vmul.f32 %v1553, %v1570
    %v1582 = vmul.f32 %v1554, %v1570
    %v1583 = vmul.f32 %v1555, %v1570
    %v1584 = vmul.f32 %v1556, %v1570
    %v1585 = vmul.f32 %v1557, %v1570
    %v1586 = vmul.f32 %v1558, %v1570
    %v1587 = vmul.f32 %v1559, %v1570
    %v1588 = vmul.f32 %v1560, %v1570
    %v1590 = vlaneseq
    %v1591 = vshrl.u32 %v1590, 7
    %v1592 = vsub.s32 0, %v1591
    %v1593 = vrot.slane %v1533, %v1592
    %v1595 = vmul.f32 %v1573, %v1593
    %v1596 = vmul.f32 %v1574, %v1593
    %v1597 = vmul.f32 %v1575, %v1593
    %v1598 = vmul.f32 %v1576, %v1593
    %v1599 = vmul.f32 %v1577, %v1593
    %v1600 = vmul.f32 %v1578, %v1593
    %v1601 = vmul.f32 %v1579, %v1593
    %v1602 = vmul.f32 %v1580, %v1593
    %v1603 = vmul.f32 %v1581, %v1593
    %v1604 = vmul.f32 %v1582, %v1593
    %v1605 = vmul.f32 %v1583, %v1593
    %v1606 = vmul.f32 %v1584, %v1593
    %v1607 = vmul.f32 %v1585, %v1593
    %v1608 = vmul.f32 %v1586, %v1593
    %v1609 = vmul.f32 %v1587, %v1593
    %v1610 = vmul.f32 %v1588, %v1593
    %v1612 = vlaneseq
    %v1613 = vshrl.u32 %v1612, 7
    %v1614 = vsub.s32 0, %v1613
    %v1615 = vrot.slane %v1534, %v1614
    %v1617 = vadd.f32 %v1595, %v1615
    %v1618 = vadd.f32 %v1596, %v1615
    %v1619 = vadd.f32 %v1597, %v1615
    %v1620 = vadd.f32 %v1598, %v1615
    %v1621 = vadd.f32 %v1599, %v1615
    %v1622 = vadd.f32 %v1600, %v1615
    %v1623 = vadd.f32 %v1601, %v1615
    %v1624 = vadd.f32 %v1602, %v1615
    %v1625 = vadd.f32 %v1603, %v1615
    %v1626 = vadd.f32 %v1604, %v1615
    %v1627 = vadd.f32 %v1605, %v1615
    %v1628 = vadd.f32 %v1606, %v1615
    %v1629 = vadd.f32 %v1607, %v1615
    %v1630 = vadd.f32 %v1608, %v1615
    %v1631 = vadd.f32 %v1609, %v1615
    %v1632 = vadd.f32 %v1610, %v1615
    %v1633 = vmul.f32 %v1617, 0.5
    %v1634 = vmul.f32 %v1618, 0.5
    %v1635 = vmul.f32 %v1619, 0.5
    %v1636 = vmul.f32 %v1620, 0.5
    %v1637 = vmul.f32 %v1621, 0.5
    %v1638 = vmul.f32 %v1622, 0.5
    %v1639 = vmul.f32 %v1623, 0.5
    %v1640 = vmul.f32 %v1624, 0.5
    %v1641 = vmul.f32 %v1625, 0.5
    %v1642 = vmul.f32 %v1626, 0.5
    %v1643 = vmul.f32 %v1627, 0.5
    %v1644 = vmul.f32 %v1628, 0.5
    %v1645 = vmul.f32 %v1629, 0.5
    %v1646 = vmul.f32 %v1630, 0.5
    %v1647 = vmul.f32 %v1631, 0.5
    %v1648 = vmul.f32 %v1632, 0.5
    %v1649 = vmul.f32 %v1617, 0.70710677
    %v1650 = vmul.f32 %v1618, 0.70710677
    %v1651 = vmul.f32 %v1619, 0.70710677
    %v1652 = vmul.f32 %v1620, 0.70710677
    %v1653 = vmul.f32 %v1621, 0.70710677
    %v1654 = vmul.f32 %v1622, 0.70710677
    %v1655 = vmul.f32 %v1623, 0.70710677
    %v1656 = vmul.f32 %v1624, 0.70710677
    %v1657 = vmul.f32 %v1625, 0.70710677
    %v1658 = vmul.f32 %v1626, 0.70710677
    %v1659 = vmul.f32 %v1627, 0.70710677
    %v1660 = vmul.f32 %v1628, 0.70710677
    %v1661 = vmul.f32 %v1629, 0.70710677
    %v1662 = vmul.f32 %v1630, 0.70710677
    %v1663 = vmul.f32 %v1631, 0.70710677
    %v1664 = vmul.f32 %v1632, 0.70710677
    %v1665 = vand.u32 2147483647, %v1649
    %v1666 = vand.u32 2147483647, %v1650
    %v1667 = vand.u32 2147483647, %v1651
    %v1668 = vand.u32 2147483647, %v1652
    %v1669 = vand.u32 2147483647, %v1653
    %v1670 = vand.u32 2147483647, %v1654
    %v1671 = vand.u32 2147483647, %v1655
    %v1672 = vand.u32 2147483647, %v1656
    %v1673 = vand.u32 2147483647, %v1657
    %v1674 = vand.u32 2147483647, %v1658
    %v1675 = vand.u32 2147483647, %v1659
    %v1676 = vand.u32 2147483647, %v1660
    %v1677 = vand.u32 2147483647, %v1661
    %v1678 = vand.u32 2147483647, %v1662
    %v1679 = vand.u32 2147483647, %v1663
    %v1680 = vand.u32 2147483647, %v1664
    %v1681 = vmul.f32 %v1665, 0.3275911
    %v1682 = vmul.f32 %v1666, 0.3275911
    %v1683 = vmul.f32 %v1667, 0.3275911
    %v1684 = vmul.f32 %v1668, 0.3275911
    %v1685 = vmul.f32 %v1669, 0.3275911
    %v1686 = vmul.f32 %v1670, 0.3275911
    %v1687 = vmul.f32 %v1671, 0.3275911
    %v1688 = vmul.f32 %v1672, 0.3275911
    %v1689 = vmul.f32 %v1673, 0.3275911
    %v1690 = vmul.f32 %v1674, 0.3275911
    %v1691 = vmul.f32 %v1675, 0.3275911
    %v1692 = vmul.f32 %v1676, 0.3275911
    %v1693 = vmul.f32 %v1677, 0.3275911
    %v1694 = vmul.f32 %v1678, 0.3275911
    %v1695 = vmul.f32 %v1679, 0.3275911
    %v1696 = vmul.f32 %v1680, 0.3275911
    %v1697 = vadd.f32 %v1681, 1.0
    %v1698 = vadd.f32 %v1682, 1.0
    %v1699 = vadd.f32 %v1683, 1.0
    %v1700 = vadd.f32 %v1684, 1.0
    %v1701 = vadd.f32 %v1685, 1.0
    %v1702 = vadd.f32 %v1686, 1.0
    %v1703 = vadd.f32 %v1687, 1.0
    %v1704 = vadd.f32 %v1688, 1.0
    %v1705 = vadd.f32 %v1689, 1.0
    %v1706 = vadd.f32 %v1690, 1.0
    %v1707 = vadd.f32 %v1691, 1.0
    %v1708 = vadd.f32 %v1692, 1.0
    %v1709 = vadd.f32 %v1693, 1.0
    %v1710 = vadd.f32 %v1694, 1.0
    %v1711 = vadd.f32 %v1695, 1.0
    %v1712 = vadd.f32 %v1696, 1.0
    %v1713 = vrcp.pop %v1697
    %v1714 = vmul.f32 1.0, %v1713
    %v1715 = vrcp.pop %v1698
    %v1716 = vmul.f32 1.0, %v1715
    %v1717 = vrcp.pop %v1699
    %v1718 = vmul.f32 1.0, %v1717
    %v1719 = vrcp.pop %v1700
    %v1720 = vmul.f32 1.0, %v1719
    %v1721 = vrcp.pop %v1701
    %v1722 = vmul.f32 1.0, %v1721
    %v1723 = vrcp.pop %v1702
    %v1724 = vmul.f32 1.0, %v1723
    %v1725 = vrcp.pop %v1703
    %v1726 = vmul.f32 1.0, %v1725
    %v1727 = vrcp.pop %v1704
    %v1728 = vmul.f32 1.0, %v1727
    %v1729 = vrcp.pop %v1705
    %v1730 = vmul.f32 1.0, %v1729
    %v1731 = vrcp.pop %v1706
    %v1732 = vmul.f32 1.0, %v1731
    %v1733 = vrcp.pop %v1707
    %v1734 = vmul.f32 1.0, %v1733
    %v1735 = vrcp.pop %v1708
    %v1736 = vmul.f32 1.0, %v1735
    %v1737 = vrcp.pop %v1709
    %v1738 = vmul.f32 1.0, %v1737
    %v1739 = vrcp.pop %v1710
    %v1740 = vmul.f32 1.0, %v1739
    %v1741 = vrcp.pop %v1711
    %v1742 = vmul.f32 1.0, %v1741
    %v1743 = vrcp.pop %v1712
    %v1744 = vmul.f32 1.0, %v1743
    %v1745 = vmul.f32 %v1714, 1.0614054
    %v1746 = vmul.f32 %v1716, 1.0614054
    %v1747 = vmul.f32 %v1718, 1.0614054
    %v1748 = vmul.f32 %v1720, 1.0614054
    %v1749 = vmul.f32 %v1722, 1.0614054
    %v1750 = vmul.f32 %v1724, 1.0614054
    %v1751 = vmul.f32 %v1726, 1.0614054
    %v1752 = vmul.f32 %v1728, 1.0614054
    %v1753 = vmul.f32 %v1730, 1.0614054
    %v1754 = vmul.f32 %v1732, 1.0614054
    %v1755 = vmul.f32 %v1734, 1.0614054
    %v1756 = vmul.f32 %v1736, 1.0614054
    %v1757 = vmul.f32 %v1738, 1.0614054
    %v1758 = vmul.f32 %v1740, 1.0614054
    %v1759 = vmul.f32 %v1742, 1.0614054
    %v1760 = vmul.f32 %v1744, 1.0614054
    %v1761 = vadd.f32 %v1745, -1.4531521
    %v1762 = vadd.f32 %v1746, -1.4531521
    %v1763 = vadd.f32 %v1747, -1.4531521
    %v1764 = vadd.f32 %v1748, -1.4531521
    %v1765 = vadd.f32 %v1749, -1.4531521
    %v1766 = vadd.f32 %v1750, -1.4531521
    %v1767 = vadd.f32 %v1751, -1.4531521
    %v1768 = vadd.f32 %v1752, -1.4531521
    %v1769 = vadd.f32 %v1753, -1.4531521
    %v1770 = vadd.f32 %v1754, -1.4531521
    %v1771 = vadd.f32 %v1755, -1.4531521
    %v1772 = vadd.f32 %v1756, -1.4531521
    %v1773 = vadd.f32 %v1757, -1.4531521
    %v1774 = vadd.f32 %v1758, -1.4531521
    %v1775 = vadd.f32 %v1759, -1.4531521
    %v1776 = vadd.f32 %v1760, -1.4531521
    %v1777 = vmul.f32 %v1714, %v1761
    %v1778 = vmul.f32 %v1716, %v1762
    %v1779 = vmul.f32 %v1718, %v1763
    %v1780 = vmul.f32 %v1720, %v1764
    %v1781 = vmul.f32 %v1722, %v1765
    %v1782 = vmul.f32 %v1724, %v1766
    %v1783 = vmul.f32 %v1726, %v1767
    %v1784 = vmul.f32 %v1728, %v1768
    %v1785 = vmul.f32 %v1730, %v1769
    %v1786 = vmul.f32 %v1732, %v1770
    %v1787 = vmul.f32 %v1734, %v1771
    %v1788 = vmul.f32 %v1736, %v1772
    %v1789 = vmul.f32 %v1738, %v1773
    %v1790 = vmul.f32 %v1740, %v1774
    %v1791 = vmul.f32 %v1742, %v1775
    %v1792 = vmul.f32 %v1744, %v1776
    %v1793 = vadd.f32 %v1777, 1.4214138
    %v1794 = vadd.f32 %v1778, 1.4214138
    %v1795 = vadd.f32 %v1779, 1.4214138
    %v1796 = vadd.f32 %v1780, 1.4214138
    %v1797 = vadd.f32 %v1781, 1.4214138
    %v1798 = vadd.f32 %v1782, 1.4214138
    %v1799 = vadd.f32 %v1783, 1.4214138
    %v1800 = vadd.f32 %v1784, 1.4214138
    %v1801 = vadd.f32 %v1785, 1.4214138
    %v1802 = vadd.f32 %v1786, 1.4214138
    %v1803 = vadd.f32 %v1787, 1.4214138
    %v1804 = vadd.f32 %v1788, 1.4214138
    %v1805 = vadd.f32 %v1789, 1.4214138
    %v1806 = vadd.f32 %v1790, 1.4214138
    %v1807 = vadd.f32 %v1791, 1.4214138
    %v1808 = vadd.f32 %v1792, 1.4214138
    %v1809 = vmul.f32 %v1714, %v1793
    %v1810 = vmul.f32 %v1716, %v1794
    %v1811 = vmul.f32 %v1718, %v1795
    %v1812 = vmul.f32 %v1720, %v1796
    %v1813 = vmul.f32 %v1722, %v1797
    %v1814 = vmul.f32 %v1724, %v1798
    %v1815 = vmul.f32 %v1726, %v1799
    %v1816 = vmul.f32 %v1728, %v1800
    %v1817 = vmul.f32 %v1730, %v1801
    %v1818 = vmul.f32 %v1732, %v1802
    %v1819 = vmul.f32 %v1734, %v1803
    %v1820 = vmul.f32 %v1736, %v1804
    %v1821 = vmul.f32 %v1738, %v1805
    %v1822 = vmul.f32 %v1740, %v1806
    %v1823 = vmul.f32 %v1742, %v1807
    %v1824 = vmul.f32 %v1744, %v1808
    %v1825 = vadd.f32 %v1809, -0.28449672
    %v1826 = vadd.f32 %v1810, -0.28449672
    %v1827 = vadd.f32 %v1811, -0.28449672
    %v1828 = vadd.f32 %v1812, -0.28449672
    %v1829 = vadd.f32 %v1813, -0.28449672
    %v1830 = vadd.f32 %v1814, -0.28449672
    %v1831 = vadd.f32 %v1815, -0.28449672
    %v1832 = vadd.f32 %v1816, -0.28449672
    %v1833 = vadd.f32 %v1817, -0.28449672
    %v1834 = vadd.f32 %v1818, -0.28449672
    %v1835 = vadd.f32 %v1819, -0.28449672
    %v1836 = vadd.f32 %v1820, -0.28449672
    %v1837 = vadd.f32 %v1821, -0.28449672
    %v1838 = vadd.f32 %v1822, -0.28449672
    %v1839 = vadd.f32 %v1823, -0.28449672
    %v1840 = vadd.f32 %v1824, -0.28449672
    %v1841 = vmul.f32 %v1714, %v1825
    %v1842 = vmul.f32 %v1716, %v1826
    %v1843 = vmul.f32 %v1718, %v1827
    %v1844 = vmul.f32 %v1720, %v1828
    %v1845 = vmul.f32 %v1722, %v1829
    %v1846 = vmul.f32 %v1724, %v1830
    %v1847 = vmul.f32 %v1726, %v1831
    %v1848 = vmul.f32 %v1728, %v1832
    %v1849 = vmul.f32 %v1730, %v1833
    %v1850 = vmul.f32 %v1732, %v1834
    %v1851 = vmul.f32 %v1734, %v1835
    %v1852 = vmul.f32 %v1736, %v1836
    %v1853 = vmul.f32 %v1738, %v1837
    %v1854 = vmul.f32 %v1740, %v1838
    %v1855 = vmul.f32 %v1742, %v1839
    %v1856 = vmul.f32 %v1744, %v1840
    %v1857 = vadd.f32 %v1841, 0.2548296
    %v1858 = vadd.f32 %v1842, 0.2548296
    %v1859 = vadd.f32 %v1843, 0.2548296
    %v1860 = vadd.f32 %v1844, 0.2548296
    %v1861 = vadd.f32 %v1845, 0.2548296
    %v1862 = vadd.f32 %v1846, 0.2548296
    %v1863 = vadd.f32 %v1847, 0.2548296
    %v1864 = vadd.f32 %v1848, 0.2548296
    %v1865 = vadd.f32 %v1849, 0.2548296
    %v1866 = vadd.f32 %v1850, 0.2548296
    %v1867 = vadd.f32 %v1851, 0.2548296
    %v1868 = vadd.f32 %v1852, 0.2548296
    %v1869 = vadd.f32 %v1853, 0.2548296
    %v1870 = vadd.f32 %v1854, 0.2548296
    %v1871 = vadd.f32 %v1855, 0.2548296
    %v1872 = vadd.f32 %v1856, 0.2548296
    %v1873 = vmul.f32 %v1714, %v1857
    %v1874 = vmul.f32 %v1716, %v1858
    %v1875 = vmul.f32 %v1718, %v1859
    %v1876 = vmul.f32 %v1720, %v1860
    %v1877 = vmul.f32 %v1722, %v1861
    %v1878 = vmul.f32 %v1724, %v1862
    %v1879 = vmul.f32 %v1726, %v1863
    %v1880 = vmul.f32 %v1728, %v1864
    %v1881 = vmul.f32 %v1730, %v1865
    %v1882 = vmul.f32 %v1732, %v1866
    %v1883 = vmul.f32 %v1734, %v1867
    %v1884 = vmul.f32 %v1736, %v1868
    %v1885 = vmul.f32 %v1738, %v1869
    %v1886 = vmul.f32 %v1740, %v1870
    %v1887 = vmul.f32 %v1742, %v1871
    %v1888 = vmul.f32 %v1744, %v1872
    %v1889 = vsub.f32 0.0, %v1665
    %v1890 = vsub.f32 0.0, %v1666
    %v1891 = vsub.f32 0.0, %v1667
    %v1892 = vsub.f32 0.0, %v1668
    %v1893 = vsub.f32 0.0, %v1669
    %v1894 = vsub.f32 0.0, %v1670
    %v1895 = vsub.f32 0.0, %v1671
    %v1896 = vsub.f32 0.0, %v1672
    %v1897 = vsub.f32 0.0, %v1673
    %v1898 = vsub.f32 0.0, %v1674
    %v1899 = vsub.f32 0.0, %v1675
    %v1900 = vsub.f32 0.0, %v1676
    %v1901 = vsub.f32 0.0, %v1677
    %v1902 = vsub.f32 0.0, %v1678
    %v1903 = vsub.f32 0.0, %v1679
    %v1904 = vsub.f32 0.0, %v1680
    %v1905 = vmul.f32 %v1889, %v1665
    %v1906 = vmul.f32 %v1890, %v1666
    %v1907 = vmul.f32 %v1891, %v1667
    %v1908 = vmul.f32 %v1892, %v1668
    %v1909 = vmul.f32 %v1893, %v1669
    %v1910 = vmul.f32 %v1894, %v1670
    %v1911 = vmul.f32 %v1895, %v1671
    %v1912 = vmul.f32 %v1896, %v1672
    %v1913 = vmul.f32 %v1897, %v1673
    %v1914 = vmul.f32 %v1898, %v1674
    %v1915 = vmul.f32 %v1899, %v1675
    %v1916 = vmul.f32 %v1900, %v1676
    %v1917 = vmul.f32 %v1901, %v1677
    %v1918 = vmul.f32 %v1902, %v1678
    %v1919 = vmul.f32 %v1903, %v1679
    %v1920 = vmul.f32 %v1904, %v1680
    %v1921 = vmul.f32 %v1905, 1.442695
    %v1922 = vpow.pop %v1921
    %v1923 = vmul.f32 %v1906, 1.442695
    %v1924 = vpow.pop %v1923
    %v1925 = vmul.f32 %v1907, 1.442695
    %v1926 = vpow.pop %v1925
    %v1927 = vmul.f32 %v1908, 1.442695
    %v1928 = vpow.pop %v1927
    %v1929 = vmul.f32 %v1909, 1.442695
    %v1930 = vpow.pop %v1929
    %v1931 = vmul.f32 %v1910, 1.442695
    %v1932 = vpow.pop %v1931
    %v1933 = vmul.f32 %v1911, 1.442695
    %v1934 = vpow.pop %v1933
    %v1935 = vmul.f32 %v1912, 1.442695
    %v1936 = vpow.pop %v1935
    %v1937 = vmul.f32 %v1913, 1.442695
    %v1938 = vpow.pop %v1937
    %v1939 = vmul.f32 %v1914, 1.442695
    %v1940 = vpow.pop %v1939
    %v1941 = vmul.f32 %v1915, 1.442695
    %v1942 = vpow.pop %v1941
    %v1943 = vmul.f32 %v1916, 1.442695
    %v1944 = vpow.pop %v1943
    %v1945 = vmul.f32 %v1917, 1.442695
    %v1946 = vpow.pop %v1945
    %v1947 = vmul.f32 %v1918, 1.442695
    %v1948 = vpow.pop %v1947
    %v1949 = vmul.f32 %v1919, 1.442695
    %v1950 = vpow.pop %v1949
    %v1951 = vmul.f32 %v1920, 1.442695
    %v1952 = vpow.pop %v1951
    %v1953 = vmul.f32 %v1873, %v1922
    %v1954 = vmul.f32 %v1874, %v1924
    %v1955 = vmul.f32 %v1875, %v1926
    %v1956 = vmul.f32 %v1876, %v1928
    %v1957 = vmul.f32 %v1877, %v1930
    %v1958 = vmul.f32 %v1878, %v1932
    %v1959 = vmul.f32 %v1879, %v1934
    %v1960 = vmul.f32 %v1880, %v1936
    %v1961 = vmul.f32 %v1881, %v1938
    %v1962 = vmul.f32 %v1882, %v1940
    %v1963 = vmul.f32 %v1883, %v1942
    %v1964 = vmul.f32 %v1884, %v1944
    %v1965 = vmul.f32 %v1885, %v1946
    %v1966 = vmul.f32 %v1886, %v1948
    %v1967 = vmul.f32 %v1887, %v1950
    %v1968 = vmul.f32 %v1888, %v1952
    %v1969 = vsub.f32 1.0, %v1953
    %v1970 = vsub.f32 1.0, %v1954
    %v1971 = vsub.f32 1.0, %v1955
    %v1972 = vsub.f32 1.0, %v1956
    %v1973 = vsub.f32 1.0, %v1957
    %v1974 = vsub.f32 1.0, %v1958
    %v1975 = vsub.f32 1.0, %v1959
    %v1976 = vsub.f32 1.0, %v1960
    %v1977 = vsub.f32 1.0, %v1961
    %v1978 = vsub.f32 1.0, %v1962
    %v1979 = vsub.f32 1.0, %v1963
    %v1980 = vsub.f32 1.0, %v1964
    %v1981 = vsub.f32 1.0, %v1965
    %v1982 = vsub.f32 1.0, %v1966
    %v1983 = vsub.f32 1.0, %v1967
    %v1984 = vsub.f32 1.0, %v1968
    %vm1985 = vcmp.ge.f32.partialorder %v1649, 0.0
    %vm1986 = vcmp.ge.f32.partialorder %v1650, 0.0
    %vm1987 = vcmp.ge.f32.partialorder %v1651, 0.0
    %vm1988 = vcmp.ge.f32.partialorder %v1652, 0.0
    %vm1989 = vcmp.ge.f32.partialorder %v1653, 0.0
    %vm1990 = vcmp.ge.f32.partialorder %v1654, 0.0
    %vm1991 = vcmp.ge.f32.partialorder %v1655, 0.0
    %vm1992 = vcmp.ge.f32.partialorder %v1656, 0.0
    %vm1993 = vcmp.ge.f32.partialorder %v1657, 0.0
    %vm1994 = vcmp.ge.f32.partialorder %v1658, 0.0
    %vm1995 = vcmp.ge.f32.partialorder %v1659, 0.0
    %vm1996 = vcmp.ge.f32.partialorder %v1660, 0.0
    %vm1997 = vcmp.ge.f32.partialorder %v1661, 0.0
    %vm1998 = vcmp.ge.f32.partialorder %v1662, 0.0
    %vm1999 = vcmp.ge.f32.partialorder %v1663, 0.0
    %vm2000 = vcmp.ge.f32.partialorder %v1664, 0.0
    %v2001 = vsub.f32 0.0, %v1969
    %v2002 = vsub.f32 0.0, %v1970
    %v2003 = vsub.f32 0.0, %v1971
    %v2004 = vsub.f32 0.0, %v1972
    %v2005 = vsub.f32 0.0, %v1973
    %v2006 = vsub.f32 0.0, %v1974
    %v2007 = vsub.f32 0.0, %v1975
    %v2008 = vsub.f32 0.0, %v1976
    %v2009 = vsub.f32 0.0, %v1977
    %v2010 = vsub.f32 0.0, %v1978
    %v2011 = vsub.f32 0.0, %v1979
    %v2012 = vsub.f32 0.0, %v1980
    %v2013 = vsub.f32 0.0, %v1981
    %v2014 = vsub.f32 0.0, %v1982
    %v2015 = vsub.f32 0.0, %v1983
    %v2016 = vsub.f32 0.0, %v1984
    %v2017 = vsel %vm1985, %v1969, %v2001
    %v2018 = vsel %vm1986, %v1970, %v2002
    %v2019 = vsel %vm1987, %v1971, %v2003
    %v2020 = vsel %vm1988, %v1972, %v2004
    %v2021 = vsel %vm1989, %v1973, %v2005
    %v2022 = vsel %vm1990, %v1974, %v2006
    %v2023 = vsel %vm1991, %v1975, %v2007
    %v2024 = vsel %vm1992, %v1976, %v2008
    %v2025 = vsel %vm1993, %v1977, %v2009
    %v2026 = vsel %vm1994, %v1978, %v2010
    %v2027 = vsel %vm1995, %v1979, %v2011
    %v2028 = vsel %vm1996, %v1980, %v2012
    %v2029 = vsel %vm1997, %v1981, %v2013
    %v2030 = vsel %vm1998, %v1982, %v2014
    %v2031 = vsel %vm1999, %v1983, %v2015
    %v2032 = vsel %vm2000, %v1984, %v2016
    %v2033 = vadd.f32 %v2017, 1.0
    %v2034 = vadd.f32 %v2018, 1.0
    %v2035 = vadd.f32 %v2019, 1.0
    %v2036 = vadd.f32 %v2020, 1.0
    %v2037 = vadd.f32 %v2021, 1.0
    %v2038 = vadd.f32 %v2022, 1.0
    %v2039 = vadd.f32 %v2023, 1.0
    %v2040 = vadd.f32 %v2024, 1.0
    %v2041 = vadd.f32 %v2025, 1.0
    %v2042 = vadd.f32 %v2026, 1.0
    %v2043 = vadd.f32 %v2027, 1.0
    %v2044 = vadd.f32 %v2028, 1.0
    %v2045 = vadd.f32 %v2029, 1.0
    %v2046 = vadd.f32 %v2030, 1.0
    %v2047 = vadd.f32 %v2031, 1.0
    %v2048 = vadd.f32 %v2032, 1.0
    %v2049 = vmul.f32 %v1633, %v2033
    %v2050 = vmul.f32 %v1634, %v2034
    %v2051 = vmul.f32 %v1635, %v2035
    %v2052 = vmul.f32 %v1636, %v2036
    %v2053 = vmul.f32 %v1637, %v2037
    %v2054 = vmul.f32 %v1638, %v2038
    %v2055 = vmul.f32 %v1639, %v2039
    %v2056 = vmul.f32 %v1640, %v2040
    %v2057 = vmul.f32 %v1641, %v2041
    %v2058 = vmul.f32 %v1642, %v2042
    %v2059 = vmul.f32 %v1643, %v2043
    %v2060 = vmul.f32 %v1644, %v2044
    %v2061 = vmul.f32 %v1645, %v2045
    %v2062 = vmul.f32 %v1646, %v2046
    %v2063 = vmul.f32 %v1647, %v2047
    %v2064 = vmul.f32 %v1648, %v2048
    %s2065 = scalar_lea.vmem [#allocation3], 16
    %2066 = vst.msk [vmem:[%s2065 + $0x1] sm:$0xff] %vm88, %v2049
    %2067 = vst.msk [vmem:[%s2065 + $0x11] sm:$0xff] %vm88, %v2050
    %2068 = vst.msk [vmem:[%s2065 + $0x21] sm:$0xff] %vm88, %v2051
    %2069 = vst.msk [vmem:[%s2065 + $0x31] sm:$0xff] %vm88, %v2052
    %2070 = vst.msk [vmem:[%s2065 + $0x41] sm:$0xff] %vm88, %v2053
    %2071 = vst.msk [vmem:[%s2065 + $0x51] sm:$0xff] %vm88, %v2054
    %2072 = vst.msk [vmem:[%s2065 + $0x61] sm:$0xff] %vm88, %v2055
    %2073 = vst.msk [vmem:[%s2065 + $0x71] sm:$0xff] %vm88, %v2056
    %2074 = vst.msk [vmem:[%s2065 + $0xa1] sm:$0xff] %vm88, %v2057
    %2075 = vst.msk [vmem:[%s2065 + $0xb1] sm:$0xff] %vm88, %v2058
    %2076 = vst.msk [vmem:[%s2065 + $0xc1] sm:$0xff] %vm88, %v2059
    %2077 = vst.msk [vmem:[%s2065 + $0xd1] sm:$0xff] %vm88, %v2060
    %2078 = vst.msk [vmem:[%s2065 + $0xe1] sm:$0xff] %vm88, %v2061
    %2079 = vst.msk [vmem:[%s2065 + $0xf1] sm:$0xff] %vm88, %v2062
    %2080 = vst.msk [vmem:[%s2065 + $0x101] sm:$0xff] %vm88, %v2063
    %2081 = vst.msk [vmem:[%s2065 + $0x111] sm:$0xff] %vm88, %v2064
    %v2082 = vld [vmem:[#allocation3] sm:$0xff]
    %v2083 = vld [vmem:[#allocation3 + $0x10] sm:$0xff]
    %v2084 = vld [vmem:[#allocation3 + $0x20] sm:$0xff]
    %v2085 = vld [vmem:[#allocation3 + $0x30] sm:$0xff]
    %v2086 = vld [vmem:[#allocation3 + $0x40] sm:$0xff]
    %v2087 = vld [vmem:[#allocation3 + $0x50] sm:$0xff]
    %v2088 = vld [vmem:[#allocation3 + $0x60] sm:$0xff]
    %v2089 = vld [vmem:[#allocation3 + $0x70] sm:$0xff]
    %v2090 = vld [vmem:[#allocation3 + $0xa0] sm:$0xff]
    %v2091 = vld [vmem:[#allocation3 + $0xb0] sm:$0xff]
    %v2092 = vld [vmem:[#allocation3 + $0xc0] sm:$0xff]
    %v2093 = vld [vmem:[#allocation3 + $0xd0] sm:$0xff]
    %v2094 = vld [vmem:[#allocation3 + $0xe0] sm:$0xff]
    %v2095 = vld [vmem:[#allocation3 + $0xf0] sm:$0xff]
    %v2096 = vld [vmem:[#allocation3 + $0x100] sm:$0xff]
    %v2097 = vld [vmem:[#allocation3 + $0x110] sm:$0xff]
    %v2098 = vld [vmem:[#allocation3 + $0x1] sm:$0xff]
    %v2099 = vld [vmem:[#allocation3 + $0x11] sm:$0xff]
    %v2100 = vld [vmem:[#allocation3 + $0x21] sm:$0xff]
    %v2101 = vld [vmem:[#allocation3 + $0x31] sm:$0xff]
    %v2102 = vld [vmem:[#allocation3 + $0x41] sm:$0xff]
    %v2103 = vld [vmem:[#allocation3 + $0x51] sm:$0xff]
    %v2104 = vld [vmem:[#allocation3 + $0x61] sm:$0xff]
    %v2105 = vld [vmem:[#allocation3 + $0x71] sm:$0xff]
    %v2106 = vld [vmem:[#allocation3 + $0xa1] sm:$0xff]
    %v2107 = vld [vmem:[#allocation3 + $0xb1] sm:$0xff]
    %v2108 = vld [vmem:[#allocation3 + $0xc1] sm:$0xff]
    %v2109 = vld [vmem:[#allocation3 + $0xd1] sm:$0xff]
    %v2110 = vld [vmem:[#allocation3 + $0xe1] sm:$0xff]
    %v2111 = vld [vmem:[#allocation3 + $0xf1] sm:$0xff]
    %v2112 = vld [vmem:[#allocation3 + $0x101] sm:$0xff]
    %v2113 = vld [vmem:[#allocation3 + $0x111] sm:$0xff]
    %v2114 = vld [vmem:[#allocation3 + $0x2] sm:$0xff]
    %v2115 = vld [vmem:[#allocation3 + $0x12] sm:$0xff]
    %v2116 = vld [vmem:[#allocation3 + $0x22] sm:$0xff]
    %v2117 = vld [vmem:[#allocation3 + $0x32] sm:$0xff]
    %v2118 = vld [vmem:[#allocation3 + $0x42] sm:$0xff]
    %v2119 = vld [vmem:[#allocation3 + $0x52] sm:$0xff]
    %v2120 = vld [vmem:[#allocation3 + $0x62] sm:$0xff]
    %v2121 = vld [vmem:[#allocation3 + $0x72] sm:$0xff]
    %v2122 = vld [vmem:[#allocation3 + $0xa2] sm:$0xff]
    %v2123 = vld [vmem:[#allocation3 + $0xb2] sm:$0xff]
    %v2124 = vld [vmem:[#allocation3 + $0xc2] sm:$0xff]
    %v2125 = vld [vmem:[#allocation3 + $0xd2] sm:$0xff]
    %v2126 = vld [vmem:[#allocation3 + $0xe2] sm:$0xff]
    %v2127 = vld [vmem:[#allocation3 + $0xf2] sm:$0xff]
    %v2128 = vld [vmem:[#allocation3 + $0x102] sm:$0xff]
    %v2129 = vld [vmem:[#allocation3 + $0x112] sm:$0xff]
    %v2130 = vld [vmem:[%s2065] sm:$0xff]
    %v2131 = vld [vmem:[%s2065 + $0x10] sm:$0xff]
    %v2132 = vld [vmem:[%s2065 + $0x20] sm:$0xff]
    %v2133 = vld [vmem:[%s2065 + $0x30] sm:$0xff]
    %v2134 = vld [vmem:[%s2065 + $0x40] sm:$0xff]
    %v2135 = vld [vmem:[%s2065 + $0x50] sm:$0xff]
    %v2136 = vld [vmem:[%s2065 + $0x60] sm:$0xff]
    %v2137 = vld [vmem:[%s2065 + $0x70] sm:$0xff]
    %v2138 = vld [vmem:[%s2065 + $0xa0] sm:$0xff]
    %v2139 = vld [vmem:[%s2065 + $0xb0] sm:$0xff]
    %v2140 = vld [vmem:[%s2065 + $0xc0] sm:$0xff]
    %v2141 = vld [vmem:[%s2065 + $0xd0] sm:$0xff]
    %v2142 = vld [vmem:[%s2065 + $0xe0] sm:$0xff]
    %v2143 = vld [vmem:[%s2065 + $0xf0] sm:$0xff]
    %v2144 = vld [vmem:[%s2065 + $0x100] sm:$0xff]
    %v2145 = vld [vmem:[%s2065 + $0x110] sm:$0xff]
    %v2146 = vld [vmem:[%s2065 + $0x1] sm:$0xff]
    %v2147 = vld [vmem:[%s2065 + $0x11] sm:$0xff]
    %v2148 = vld [vmem:[%s2065 + $0x21] sm:$0xff]
    %v2149 = vld [vmem:[%s2065 + $0x31] sm:$0xff]
    %v2150 = vld [vmem:[%s2065 + $0x41] sm:$0xff]
    %v2151 = vld [vmem:[%s2065 + $0x51] sm:$0xff]
    %v2152 = vld [vmem:[%s2065 + $0x61] sm:$0xff]
    %v2153 = vld [vmem:[%s2065 + $0x71] sm:$0xff]
    %v2154 = vld [vmem:[%s2065 + $0xa1] sm:$0xff]
    %v2155 = vld [vmem:[%s2065 + $0xb1] sm:$0xff]
    %v2156 = vld [vmem:[%s2065 + $0xc1] sm:$0xff]
    %v2157 = vld [vmem:[%s2065 + $0xd1] sm:$0xff]
    %v2158 = vld [vmem:[%s2065 + $0xe1] sm:$0xff]
    %v2159 = vld [vmem:[%s2065 + $0xf1] sm:$0xff]
    %v2160 = vld [vmem:[%s2065 + $0x101] sm:$0xff]
    %v2161 = vld [vmem:[%s2065 + $0x111] sm:$0xff]
    %v2162 = vld [vmem:[%s2065 + $0x2] sm:$0xff]
    %v2163 = vld [vmem:[%s2065 + $0x12] sm:$0xff]
    %v2164 = vld [vmem:[%s2065 + $0x22] sm:$0xff]
    %v2165 = vld [vmem:[%s2065 + $0x32] sm:$0xff]
    %v2166 = vld [vmem:[%s2065 + $0x42] sm:$0xff]
    %v2167 = vld [vmem:[%s2065 + $0x52] sm:$0xff]
    %v2168 = vld [vmem:[%s2065 + $0x62] sm:$0xff]
    %v2169 = vld [vmem:[%s2065 + $0x72] sm:$0xff]
    %v2170 = vld [vmem:[%s2065 + $0xa2] sm:$0xff]
    %v2171 = vld [vmem:[%s2065 + $0xb2] sm:$0xff]
    %v2172 = vld [vmem:[%s2065 + $0xc2] sm:$0xff]
    %v2173 = vld [vmem:[%s2065 + $0xd2] sm:$0xff]
    %v2174 = vld [vmem:[%s2065 + $0xe2] sm:$0xff]
    %v2175 = vld [vmem:[%s2065 + $0xf2] sm:$0xff]
    %v2176 = vld [vmem:[%s2065 + $0x102] sm:$0xff]
    %v2177 = vld [vmem:[%s2065 + $0x112] sm:$0xff]
    %s2178 = scalar_lea.vmem [#allocation3], 32
    %v2179 = vld [vmem:[%s2178] sm:$0xff]
    %v2180 = vld [vmem:[%s2178 + $0x10] sm:$0xff]
    %v2181 = vld [vmem:[%s2178 + $0x20] sm:$0xff]
    %v2182 = vld [vmem:[%s2178 + $0x30] sm:$0xff]
    %v2183 = vld [vmem:[%s2178 + $0x40] sm:$0xff]
    %v2184 = vld [vmem:[%s2178 + $0x50] sm:$0xff]
    %v2185 = vld [vmem:[%s2178 + $0x60] sm:$0xff]
    %v2186 = vld [vmem:[%s2178 + $0x70] sm:$0xff]
    %v2187 = vld [vmem:[%s2178 + $0xa0] sm:$0xff]
    %v2188 = vld [vmem:[%s2178 + $0xb0] sm:$0xff]
    %v2189 = vld [vmem:[%s2178 + $0xc0] sm:$0xff]
    %v2190 = vld [vmem:[%s2178 + $0xd0] sm:$0xff]
    %v2191 = vld [vmem:[%s2178 + $0xe0] sm:$0xff]
    %v2192 = vld [vmem:[%s2178 + $0xf0] sm:$0xff]
    %v2193 = vld [vmem:[%s2178 + $0x100] sm:$0xff]
    %v2194 = vld [vmem:[%s2178 + $0x110] sm:$0xff]
    %v2195 = vld [vmem:[%s2178 + $0x1] sm:$0xff]
    %v2196 = vld [vmem:[%s2178 + $0x11] sm:$0xff]
    %v2197 = vld [vmem:[%s2178 + $0x21] sm:$0xff]
    %v2198 = vld [vmem:[%s2178 + $0x31] sm:$0xff]
    %v2199 = vld [vmem:[%s2178 + $0x41] sm:$0xff]
    %v2200 = vld [vmem:[%s2178 + $0x51] sm:$0xff]
    %v2201 = vld [vmem:[%s2178 + $0x61] sm:$0xff]
    %v2202 = vld [vmem:[%s2178 + $0x71] sm:$0xff]
    %v2203 = vld [vmem:[%s2178 + $0xa1] sm:$0xff]
    %v2204 = vld [vmem:[%s2178 + $0xb1] sm:$0xff]
    %v2205 = vld [vmem:[%s2178 + $0xc1] sm:$0xff]
    %v2206 = vld [vmem:[%s2178 + $0xd1] sm:$0xff]
    %v2207 = vld [vmem:[%s2178 + $0xe1] sm:$0xff]
    %v2208 = vld [vmem:[%s2178 + $0xf1] sm:$0xff]
    %v2209 = vld [vmem:[%s2178 + $0x101] sm:$0xff]
    %v2210 = vld [vmem:[%s2178 + $0x111] sm:$0xff]
    %v2211 = vld [vmem:[%s2178 + $0x2] sm:$0xff]
    %v2212 = vld [vmem:[%s2178 + $0x12] sm:$0xff]
    %v2213 = vld [vmem:[%s2178 + $0x22] sm:$0xff]
    %v2214 = vld [vmem:[%s2178 + $0x32] sm:$0xff]
    %v2215 = vld [vmem:[%s2178 + $0x42] sm:$0xff]
    %v2216 = vld [vmem:[%s2178 + $0x52] sm:$0xff]
    %v2217 = vld [vmem:[%s2178 + $0x62] sm:$0xff]
    %v2218 = vld [vmem:[%s2178 + $0x72] sm:$0xff]
    %v2219 = vld [vmem:[%s2178 + $0xa2] sm:$0xff]
    %v2220 = vld [vmem:[%s2178 + $0xb2] sm:$0xff]
    %v2221 = vld [vmem:[%s2178 + $0xc2] sm:$0xff]
    %v2222 = vld [vmem:[%s2178 + $0xd2] sm:$0xff]
    %v2223 = vld [vmem:[%s2178 + $0xe2] sm:$0xff]
    %v2224 = vld [vmem:[%s2178 + $0xf2] sm:$0xff]
    %v2225 = vld [vmem:[%s2178 + $0x102] sm:$0xff]
    %v2226 = vld [vmem:[%s2178 + $0x112] sm:$0xff]
    %2243 = vrot.lane.b32.xlu0 %v2098, 32
    %v2244 = vpop.permute.xlu0 %2243
    %2245 = vrot.lane.b32.xlu0 %v2099, 32
    %v2246 = vpop.permute.xlu0 %2245
    %2247 = vrot.lane.b32.xlu0 %v2100, 32
    %v2248 = vpop.permute.xlu0 %2247
    %2249 = vrot.lane.b32.xlu0 %v2101, 32
    %v2250 = vpop.permute.xlu0 %2249
    %2251 = vrot.lane.b32.xlu0 %v2102, 32
    %v2252 = vpop.permute.xlu0 %2251
    %2253 = vrot.lane.b32.xlu0 %v2103, 32
    %v2254 = vpop.permute.xlu0 %2253
    %2255 = vrot.lane.b32.xlu0 %v2104, 32
    %v2256 = vpop.permute.xlu0 %2255
    %2257 = vrot.lane.b32.xlu0 %v2105, 32
    %v2258 = vpop.permute.xlu0 %2257
    %2259 = vrot.lane.b32.xlu0 %v2106, 32
    %v2260 = vpop.permute.xlu0 %2259
    %2261 = vrot.lane.b32.xlu0 %v2107, 32
    %v2262 = vpop.permute.xlu0 %2261
    %2263 = vrot.lane.b32.xlu0 %v2108, 32
    %v2264 = vpop.permute.xlu0 %2263
    %2265 = vrot.lane.b32.xlu0 %v2109, 32
    %v2266 = vpop.permute.xlu0 %2265
    %2267 = vrot.lane.b32.xlu0 %v2110, 32
    %v2268 = vpop.permute.xlu0 %2267
    %2269 = vrot.lane.b32.xlu0 %v2111, 32
    %v2270 = vpop.permute.xlu0 %2269
    %2271 = vrot.lane.b32.xlu0 %v2112, 32
    %v2272 = vpop.permute.xlu0 %2271
    %2273 = vrot.lane.b32.xlu0 %v2113, 32
    %v2274 = vpop.permute.xlu0 %2273
    %2307 = vrot.lane.b32.xlu0 %v2114, 64
    %v2308 = vpop.permute.xlu0 %2307
    %2309 = vrot.lane.b32.xlu0 %v2115, 64
    %v2310 = vpop.permute.xlu0 %2309
    %2311 = vrot.lane.b32.xlu0 %v2116, 64
    %v2312 = vpop.permute.xlu0 %2311
    %2313 = vrot.lane.b32.xlu0 %v2117, 64
    %v2314 = vpop.permute.xlu0 %2313
    %2315 = vrot.lane.b32.xlu0 %v2118, 64
    %v2316 = vpop.permute.xlu0 %2315
    %2317 = vrot.lane.b32.xlu0 %v2119, 64
    %v2318 = vpop.permute.xlu0 %2317
    %2319 = vrot.lane.b32.xlu0 %v2120, 64
    %v2320 = vpop.permute.xlu0 %2319
    %2321 = vrot.lane.b32.xlu0 %v2121, 64
    %v2322 = vpop.permute.xlu0 %2321
    %2323 = vrot.lane.b32.xlu0 %v2122, 64
    %v2324 = vpop.permute.xlu0 %2323
    %2325 = vrot.lane.b32.xlu0 %v2123, 64
    %v2326 = vpop.permute.xlu0 %2325
    %2327 = vrot.lane.b32.xlu0 %v2124, 64
    %v2328 = vpop.permute.xlu0 %2327
    %2329 = vrot.lane.b32.xlu0 %v2125, 64
    %v2330 = vpop.permute.xlu0 %2329
    %2331 = vrot.lane.b32.xlu0 %v2126, 64
    %v2332 = vpop.permute.xlu0 %2331
    %2333 = vrot.lane.b32.xlu0 %v2127, 64
    %v2334 = vpop.permute.xlu0 %2333
    %2335 = vrot.lane.b32.xlu0 %v2128, 64
    %v2336 = vpop.permute.xlu0 %2335
    %2337 = vrot.lane.b32.xlu0 %v2129, 64
    %v2338 = vpop.permute.xlu0 %2337
    %2371 = vrot.lane.b32.xlu0 %v2130, 96
    %v2372 = vpop.permute.xlu0 %2371
    %2373 = vrot.lane.b32.xlu0 %v2131, 96
    %v2374 = vpop.permute.xlu0 %2373
    %2375 = vrot.lane.b32.xlu0 %v2132, 96
    %v2376 = vpop.permute.xlu0 %2375
    %2377 = vrot.lane.b32.xlu0 %v2133, 96
    %v2378 = vpop.permute.xlu0 %2377
    %2379 = vrot.lane.b32.xlu0 %v2134, 96
    %v2380 = vpop.permute.xlu0 %2379
    %2381 = vrot.lane.b32.xlu0 %v2135, 96
    %v2382 = vpop.permute.xlu0 %2381
    %2383 = vrot.lane.b32.xlu0 %v2136, 96
    %v2384 = vpop.permute.xlu0 %2383
    %2385 = vrot.lane.b32.xlu0 %v2137, 96
    %v2386 = vpop.permute.xlu0 %2385
    %2387 = vrot.lane.b32.xlu0 %v2138, 96
    %v2388 = vpop.permute.xlu0 %2387
    %2389 = vrot.lane.b32.xlu0 %v2139, 96
    %v2390 = vpop.permute.xlu0 %2389
    %2391 = vrot.lane.b32.xlu0 %v2140, 96
    %v2392 = vpop.permute.xlu0 %2391
    %2393 = vrot.lane.b32.xlu0 %v2141, 96
    %v2394 = vpop.permute.xlu0 %2393
    %2395 = vrot.lane.b32.xlu0 %v2142, 96
    %v2396 = vpop.permute.xlu0 %2395
    %2397 = vrot.lane.b32.xlu0 %v2143, 96
    %v2398 = vpop.permute.xlu0 %2397
    %2399 = vrot.lane.b32.xlu0 %v2144, 96
    %v2400 = vpop.permute.xlu0 %2399
    %2401 = vrot.lane.b32.xlu0 %v2145, 96
    %v2402 = vpop.permute.xlu0 %2401
    %2435 = vrot.lane.b32.xlu0 %v2162, 32
    %v2436 = vpop.permute.xlu0 %2435
    %2437 = vrot.lane.b32.xlu0 %v2163, 32
    %v2438 = vpop.permute.xlu0 %2437
    %2439 = vrot.lane.b32.xlu0 %v2164, 32
    %v2440 = vpop.permute.xlu0 %2439
    %2441 = vrot.lane.b32.xlu0 %v2165, 32
    %v2442 = vpop.permute.xlu0 %2441
    %2443 = vrot.lane.b32.xlu0 %v2166, 32
    %v2444 = vpop.permute.xlu0 %2443
    %2445 = vrot.lane.b32.xlu0 %v2167, 32
    %v2446 = vpop.permute.xlu0 %2445
    %2447 = vrot.lane.b32.xlu0 %v2168, 32
    %v2448 = vpop.permute.xlu0 %2447
    %2449 = vrot.lane.b32.xlu0 %v2169, 32
    %v2450 = vpop.permute.xlu0 %2449
    %2451 = vrot.lane.b32.xlu0 %v2170, 32
    %v2452 = vpop.permute.xlu0 %2451
    %2453 = vrot.lane.b32.xlu0 %v2171, 32
    %v2454 = vpop.permute.xlu0 %2453
    %2455 = vrot.lane.b32.xlu0 %v2172, 32
    %v2456 = vpop.permute.xlu0 %2455
    %2457 = vrot.lane.b32.xlu0 %v2173, 32
    %v2458 = vpop.permute.xlu0 %2457
    %2459 = vrot.lane.b32.xlu0 %v2174, 32
    %v2460 = vpop.permute.xlu0 %2459
    %2461 = vrot.lane.b32.xlu0 %v2175, 32
    %v2462 = vpop.permute.xlu0 %2461
    %2463 = vrot.lane.b32.xlu0 %v2176, 32
    %v2464 = vpop.permute.xlu0 %2463
    %2465 = vrot.lane.b32.xlu0 %v2177, 32
    %v2466 = vpop.permute.xlu0 %2465
    %2499 = vrot.lane.b32.xlu0 %v2179, 64
    %v2500 = vpop.permute.xlu0 %2499
    %2501 = vrot.lane.b32.xlu0 %v2180, 64
    %v2502 = vpop.permute.xlu0 %2501
    %2503 = vrot.lane.b32.xlu0 %v2181, 64
    %v2504 = vpop.permute.xlu0 %2503
    %2505 = vrot.lane.b32.xlu0 %v2182, 64
    %v2506 = vpop.permute.xlu0 %2505
    %2507 = vrot.lane.b32.xlu0 %v2183, 64
    %v2508 = vpop.permute.xlu0 %2507
    %2509 = vrot.lane.b32.xlu0 %v2184, 64
    %v2510 = vpop.permute.xlu0 %2509
    %2511 = vrot.lane.b32.xlu0 %v2185, 64
    %v2512 = vpop.permute.xlu0 %2511
    %2513 = vrot.lane.b32.xlu0 %v2186, 64
    %v2514 = vpop.permute.xlu0 %2513
    %2515 = vrot.lane.b32.xlu0 %v2187, 64
    %v2516 = vpop.permute.xlu0 %2515
    %2517 = vrot.lane.b32.xlu0 %v2188, 64
    %v2518 = vpop.permute.xlu0 %2517
    %2519 = vrot.lane.b32.xlu0 %v2189, 64
    %v2520 = vpop.permute.xlu0 %2519
    %2521 = vrot.lane.b32.xlu0 %v2190, 64
    %v2522 = vpop.permute.xlu0 %2521
    %2523 = vrot.lane.b32.xlu0 %v2191, 64
    %v2524 = vpop.permute.xlu0 %2523
    %2525 = vrot.lane.b32.xlu0 %v2192, 64
    %v2526 = vpop.permute.xlu0 %2525
    %2527 = vrot.lane.b32.xlu0 %v2193, 64
    %v2528 = vpop.permute.xlu0 %2527
    %2529 = vrot.lane.b32.xlu0 %v2194, 64
    %v2530 = vpop.permute.xlu0 %2529
    %2563 = vrot.lane.b32.xlu0 %v2195, 96
    %v2564 = vpop.permute.xlu0 %2563
    %2565 = vrot.lane.b32.xlu0 %v2196, 96
    %v2566 = vpop.permute.xlu0 %2565
    %2567 = vrot.lane.b32.xlu0 %v2197, 96
    %v2568 = vpop.permute.xlu0 %2567
    %2569 = vrot.lane.b32.xlu0 %v2198, 96
    %v2570 = vpop.permute.xlu0 %2569
    %2571 = vrot.lane.b32.xlu0 %v2199, 96
    %v2572 = vpop.permute.xlu0 %2571
    %2573 = vrot.lane.b32.xlu0 %v2200, 96
    %v2574 = vpop.permute.xlu0 %2573
    %2575 = vrot.lane.b32.xlu0 %v2201, 96
    %v2576 = vpop.permute.xlu0 %2575
    %2577 = vrot.lane.b32.xlu0 %v2202, 96
    %v2578 = vpop.permute.xlu0 %2577
    %2579 = vrot.lane.b32.xlu0 %v2203, 96
    %v2580 = vpop.permute.xlu0 %2579
    %2581 = vrot.lane.b32.xlu0 %v2204, 96
    %v2582 = vpop.permute.xlu0 %2581
    %2583 = vrot.lane.b32.xlu0 %v2205, 96
    %v2584 = vpop.permute.xlu0 %2583
    %2585 = vrot.lane.b32.xlu0 %v2206, 96
    %v2586 = vpop.permute.xlu0 %2585
    %2587 = vrot.lane.b32.xlu0 %v2207, 96
    %v2588 = vpop.permute.xlu0 %2587
    %2589 = vrot.lane.b32.xlu0 %v2208, 96
    %v2590 = vpop.permute.xlu0 %2589
    %2591 = vrot.lane.b32.xlu0 %v2209, 96
    %v2592 = vpop.permute.xlu0 %2591
    %2593 = vrot.lane.b32.xlu0 %v2210, 96
    %v2594 = vpop.permute.xlu0 %2593
    %v2611 = vsel %vm88, %v2082, %v2244
    %v2612 = vsel %vm88, %v2083, %v2246
    %v2613 = vsel %vm88, %v2084, %v2248
    %v2614 = vsel %vm88, %v2085, %v2250
    %v2615 = vsel %vm88, %v2086, %v2252
    %v2616 = vsel %vm88, %v2087, %v2254
    %v2617 = vsel %vm88, %v2088, %v2256
    %v2618 = vsel %vm88, %v2089, %v2258
    %v2619 = vsel %vm88, %v2090, %v2260
    %v2620 = vsel %vm88, %v2091, %v2262
    %v2621 = vsel %vm88, %v2092, %v2264
    %v2622 = vsel %vm88, %v2093, %v2266
    %v2623 = vsel %vm88, %v2094, %v2268
    %v2624 = vsel %vm88, %v2095, %v2270
    %v2625 = vsel %vm88, %v2096, %v2272
    %v2626 = vsel %vm88, %v2097, %v2274
    %vm2627 = vcmask 523264
    %v2628 = vsel %vm2627, %v2611, %v2308
    %v2629 = vsel %vm2627, %v2612, %v2310
    %v2630 = vsel %vm2627, %v2613, %v2312
    %v2631 = vsel %vm2627, %v2614, %v2314
    %v2632 = vsel %vm2627, %v2615, %v2316
    %v2633 = vsel %vm2627, %v2616, %v2318
    %v2634 = vsel %vm2627, %v2617, %v2320
    %v2635 = vsel %vm2627, %v2618, %v2322
    %v2636 = vsel %vm2627, %v2619, %v2324
    %v2637 = vsel %vm2627, %v2620, %v2326
    %v2638 = vsel %vm2627, %v2621, %v2328
    %v2639 = vsel %vm2627, %v2622, %v2330
    %v2640 = vsel %vm2627, %v2623, %v2332
    %v2641 = vsel %vm2627, %v2624, %v2334
    %v2642 = vsel %vm2627, %v2625, %v2336
    %v2643 = vsel %vm2627, %v2626, %v2338
    %vm2644 = vcmask 785408
    %v2645 = vsel %vm2644, %v2628, %v2372
    %v2646 = vsel %vm2644, %v2629, %v2374
    %v2647 = vsel %vm2644, %v2630, %v2376
    %v2648 = vsel %vm2644, %v2631, %v2378
    %v2649 = vsel %vm2644, %v2632, %v2380
    %v2650 = vsel %vm2644, %v2633, %v2382
    %v2651 = vsel %vm2644, %v2634, %v2384
    %v2652 = vsel %vm2644, %v2635, %v2386
    %v2653 = vsel %vm2644, %v2636, %v2388
    %v2654 = vsel %vm2644, %v2637, %v2390
    %v2655 = vsel %vm2644, %v2638, %v2392
    %v2656 = vsel %vm2644, %v2639, %v2394
    %v2657 = vsel %vm2644, %v2640, %v2396
    %v2658 = vsel %vm2644, %v2641, %v2398
    %v2659 = vsel %vm2644, %v2642, %v2400
    %v2660 = vsel %vm2644, %v2643, %v2402
    %v2661 = vsel %vm88, %v2146, %v2436
    %v2662 = vsel %vm88, %v2147, %v2438
    %v2663 = vsel %vm88, %v2148, %v2440
    %v2664 = vsel %vm88, %v2149, %v2442
    %v2665 = vsel %vm88, %v2150, %v2444
    %v2666 = vsel %vm88, %v2151, %v2446
    %v2667 = vsel %vm88, %v2152, %v2448
    %v2668 = vsel %vm88, %v2153, %v2450
    %v2669 = vsel %vm88, %v2154, %v2452
    %v2670 = vsel %vm88, %v2155, %v2454
    %v2671 = vsel %vm88, %v2156, %v2456
    %v2672 = vsel %vm88, %v2157, %v2458
    %v2673 = vsel %vm88, %v2158, %v2460
    %v2674 = vsel %vm88, %v2159, %v2462
    %v2675 = vsel %vm88, %v2160, %v2464
    %v2676 = vsel %vm88, %v2161, %v2466
    %v2677 = vsel %vm2627, %v2661, %v2500
    %v2678 = vsel %vm2627, %v2662, %v2502
    %v2679 = vsel %vm2627, %v2663, %v2504
    %v2680 = vsel %vm2627, %v2664, %v2506
    %v2681 = vsel %vm2627, %v2665, %v2508
    %v2682 = vsel %vm2627, %v2666, %v2510
    %v2683 = vsel %vm2627, %v2667, %v2512
    %v2684 = vsel %vm2627, %v2668, %v2514
    %v2685 = vsel %vm2627, %v2669, %v2516
    %v2686 = vsel %vm2627, %v2670, %v2518
    %v2687 = vsel %vm2627, %v2671, %v2520
    %v2688 = vsel %vm2627, %v2672, %v2522
    %v2689 = vsel %vm2627, %v2673, %v2524
    %v2690 = vsel %vm2627, %v2674, %v2526
    %v2691 = vsel %vm2627, %v2675, %v2528
    %v2692 = vsel %vm2627, %v2676, %v2530
    %v2693 = vsel %vm2644, %v2677, %v2564
    %v2694 = vsel %vm2644, %v2678, %v2566
    %v2695 = vsel %vm2644, %v2679, %v2568
    %v2696 = vsel %vm2644, %v2680, %v2570
    %v2697 = vsel %vm2644, %v2681, %v2572
    %v2698 = vsel %vm2644, %v2682, %v2574
    %v2699 = vsel %vm2644, %v2683, %v2576
    %v2700 = vsel %vm2644, %v2684, %v2578
    %v2701 = vsel %vm2644, %v2685, %v2580
    %v2702 = vsel %vm2644, %v2686, %v2582
    %v2703 = vsel %vm2644, %v2687, %v2584
    %v2704 = vsel %vm2644, %v2688, %v2586
    %v2705 = vsel %vm2644, %v2689, %v2588
    %v2706 = vsel %vm2644, %v2690, %v2590
    %v2707 = vsel %vm2644, %v2691, %v2592
    %v2708 = vsel %vm2644, %v2692, %v2594
    %v2709 = vld [vmem:[%s5] sm:$0xff]
    %v2710 = vld [vmem:[%s5 + $0x8] sm:$0xff]
    %v2711 = vld [vmem:[%s5 + $0x10] sm:$0xff]
    %v2712 = vld [vmem:[%s5 + $0x18] sm:$0xff]
    %v2713 = vld [vmem:[%s5 + $0x20] sm:$0xff]
    %v2714 = vld [vmem:[%s5 + $0x28] sm:$0xff]
    %v2715 = vld [vmem:[%s5 + $0x30] sm:$0xff]
    %v2716 = vld [vmem:[%s5 + $0x38] sm:$0xff]
    %v2717 = vld [vmem:[%s5 + $0x40] sm:$0xff]
    %v2718 = vld [vmem:[%s5 + $0x48] sm:$0xff]
    %v2719 = vld [vmem:[%s5 + $0x50] sm:$0xff]
    %v2720 = vld [vmem:[%s5 + $0x58] sm:$0xff]
    %v2721 = vld [vmem:[%s5 + $0x60] sm:$0xff]
    %v2722 = vld [vmem:[%s5 + $0x68] sm:$0xff]
    %v2723 = vld [vmem:[%s5 + $0x70] sm:$0xff]
    %v2724 = vld [vmem:[%s5 + $0x78] sm:$0xff]
    %v2725 = vld [vmem:[%s5 + $0x80] sm:$0xff]
    %v2726 = vld [vmem:[%s5 + $0x88] sm:$0xff]
    %v2727 = vld [vmem:[%s5 + $0x90] sm:$0xff]
    %v2728 = vld [vmem:[%s5 + $0x98] sm:$0xff]
    %v2729 = vld [vmem:[%s5 + $0xa0] sm:$0xff]
    %v2730 = vld [vmem:[%s5 + $0xa8] sm:$0xff]
    %v2731 = vld [vmem:[%s5 + $0xb0] sm:$0xff]
    %v2732 = vld [vmem:[%s5 + $0xb8] sm:$0xff]
    %v2733 = vld [vmem:[%s5 + $0xc0] sm:$0xff]
    %v2734 = vld [vmem:[%s5 + $0xc8] sm:$0xff]
    %v2735 = vld [vmem:[%s5 + $0xd0] sm:$0xff]
    %v2736 = vld [vmem:[%s5 + $0xd8] sm:$0xff]
    %v2737 = vld [vmem:[%s5 + $0xe0] sm:$0xff]
    %v2738 = vld [vmem:[%s5 + $0xe8] sm:$0xff]
    %v2739 = vld [vmem:[%s5 + $0xf0] sm:$0xff]
    %v2740 = vld [vmem:[%s5 + $0xf8] sm:$0xff]
    %v2741 = vld [vmem:[%s5 + $0x100] sm:$0xff]
    %v2742 = vld [vmem:[%s5 + $0x108] sm:$0xff]
    %v2743 = vld [vmem:[%s5 + $0x110] sm:$0xff]
    %v2744 = vld [vmem:[%s5 + $0x118] sm:$0xff]
    %v2745 = vld [vmem:[%s6] sm:$0x1]
    %v2747 = vlaneseq
    %v2748 = vshrl.u32 %v2747, 7
    %v2749 = vsub.s32 0, %v2748
    %v2750 = vrot.slane %v2745, %v2749
    %v2753 = vsel %vm88, %v2211, 0
    %v2756 = vsel %vm88, %v2212, 0
    %v2759 = vsel %vm88, %v2213, 0
    %v2762 = vsel %vm88, %v2214, 0
    %v2765 = vsel %vm88, %v2215, 0
    %v2768 = vsel %vm88, %v2216, 0
    %v2771 = vsel %vm88, %v2217, 0
    %v2774 = vsel %vm88, %v2218, 0
    %v2777 = vsel %vm88, %v2219, 0
    %v2780 = vsel %vm88, %v2220, 0
    %v2783 = vsel %vm88, %v2221, 0
    %v2786 = vsel %vm88, %v2222, 0
    %v2789 = vsel %vm88, %v2223, 0
    %v2792 = vsel %vm88, %v2224, 0
    %v2795 = vsel %vm88, %v2225, 0
    %v2798 = vsel %vm88, %v2226, 0
    %2800 = vmatprep.subr.mxu0 0.0
    %2801 = vmatpush1.msra.mxu0 %v2709
    %2802 = vmatprep.subr.mxu0 0.0
    %2803 = vmatpush1.msra.mxu0 %v2710
    %2804 = vmatprep.subr.mxu0 0.0
    %2805 = vmatpush1.msra.mxu0 %v2711
    %2806 = vmatprep.subr.mxu0 0.0
    %2807 = vmatpush1.msra.mxu0 %v2712
    %2808 = vmatprep.subr.mxu0 0.0
    %2809 = vmatpush1.msra.mxu0 %v2713
    %2810 = vmatprep.subr.mxu0 0.0
    %2811 = vmatpush1.msra.mxu0 %v2714
    %2812 = vmatprep.subr.mxu0 0.0
    %2813 = vmatpush1.msra.mxu0 %v2715
    %2814 = vmatprep.subr.mxu0 0.0
    %2815 = vmatpush1.msra.mxu0 %v2716
    %2816 = vmatprep.subr.mxu0 0.0
    %2817 = vmatpush1.msra.mxu0 %v2717
    %2818 = vmatprep.subr.mxu0 0.0
    %2819 = vmatpush1.msra.mxu0 %v2718
    %2820 = vmatprep.subr.mxu0 0.0
    %2821 = vmatpush1.msra.mxu0 %v2719
    %2822 = vmatprep.subr.mxu0 0.0
    %2823 = vmatpush1.msra.mxu0 %v2720
    %2824 = vmatprep.subr.mxu0 0.0
    %2825 = vmatpush1.msra.mxu0 %v2721
    %2826 = vmatprep.subr.mxu0 0.0
    %2827 = vmatpush1.msra.mxu0 %v2722
    %2828 = vmatprep.subr.mxu0 0.0
    %2829 = vmatpush1.msra.mxu0 %v2723
    %2830 = vmatprep.subr.mxu0 0.0
    %2831 = vmatpush1.msra.mxu0 %v2724
    %2832 = vmatprep.subr.mxu0 0.0
    %2833 = vmatpush1.msra.mxu0 %v2725
    %2834 = vmatprep.subr.mxu0 0.0
    %2835 = vmatpush1.msra.mxu0 %v2726
    %2836 = vmatprep.subr.mxu0 0.0
    %2837 = vmatpush1.msra.mxu0 %v2727
    %2838 = vmatprep.subr.mxu0 0.0
    %2839 = vmatpush1.msra.mxu0 %v2728
    %2840 = vmatprep.subr.mxu0 0.0
    %2841 = vmatpush1.msra.mxu0 %v2729
    %2842 = vmatprep.subr.mxu0 0.0
    %2843 = vmatpush1.msra.mxu0 %v2730
    %2844 = vmatprep.subr.mxu0 0.0
    %2845 = vmatpush1.msra.mxu0 %v2731
    %2846 = vmatprep.subr.mxu0 0.0
    %2847 = vmatpush1.msra.mxu0 %v2732
    %2848 = vmatprep.subr.mxu0 0.0
    %2849 = vmatpush1.msra.mxu0 %v2733
    %2850 = vmatprep.subr.mxu0 0.0
    %2851 = vmatpush1.msra.mxu0 %v2734
    %2852 = vmatprep.subr.mxu0 0.0
    %2853 = vmatpush1.msra.mxu0 %v2735
    %2854 = vmatprep.subr.mxu0 0.0
    %2855 = vmatpush1.msra.mxu0 %v2736
    %2856 = vmatprep.subr.mxu0 0.0
    %2857 = vmatpush1.msra.mxu0 %v2737
    %2858 = vmatprep.subr.mxu0 0.0
    %2859 = vmatpush1.msra.mxu0 %v2738
    %2860 = vmatprep.subr.mxu0 0.0
    %2861 = vmatpush1.msra.mxu0 %v2739
    %2862 = vmatprep.subr.mxu0 0.0
    %2863 = vmatpush1.msra.mxu0 %v2740
    %2864 = vmatprep.mubr.f32.mxu0 %v2693
    %2865 = vmatmul.mubr.f32.gmra.mrb[0].mxu0 %v2645
    %v2866 = vpop.f32.mrb[0].mxu0
    %v2867 = vadd.f32 %v2750, %v2866
    %v2868 = vpop.f32.mrb[0].mxu0
    %2869 = vmatprep.mubr.f32.mxu0 %v2694
    %2870 = vmatmul.mubr.f32.gmra.mrb[0].mxu0 %v2646
    %v2871 = vpop.f32.mrb[0].mxu0
    %v2872 = vadd.f32 %v2750, %v2871
    %v2873 = vpop.f32.mrb[0].mxu0
    %2874 = vmatprep.mubr.f32.mxu0 %v2695
    %2875 = vmatmul.mubr.f32.gmra.mrb[0].mxu0 %v2647
    %v2876 = vpop.f32.mrb[0].mxu0
    %v2877 = vadd.f32 %v2750, %v2876
    %v2878 = vpop.f32.mrb[0].mxu0
    %2879 = vmatprep.mubr.f32.mxu0 %v2696
    %2880 = vmatmul.mubr.f32.gmra.mrb[0].mxu0 %v2648
    %v2881 = vpop.f32.mrb[0].mxu0
    %v2882 = vadd.f32 %v2750, %v2881
    %v2883 = vpop.f32.mrb[0].mxu0
    %2884 = vmatprep.mubr.f32.mxu0 %v2697
    %2885 = vmatmul.mubr.f32.gmra.mrb[0].mxu0 %v2649
    %v2886 = vpop.f32.mrb[0].mxu0
    %v2887 = vadd.f32 %v2750, %v2886
    %v2888 = vpop.f32.mrb[0].mxu0
    %2889 = vmatprep.mubr.f32.mxu0 %v2698
    %2890 = vmatmul.mubr.f32.gmra.mrb[0].mxu0 %v2650
    %v2891 = vpop.f32.mrb[0].mxu0
    %v2892 = vadd.f32 %v2750, %v2891
    %v2893 = vpop.f32.mrb[0].mxu0
    %2894 = vmatprep.mubr.f32.mxu0 %v2699
    %2895 = vmatmul.mubr.f32.gmra.mrb[0].mxu0 %v2651
    %v2896 = vpop.f32.mrb[0].mxu0
    %v2897 = vadd.f32 %v2750, %v2896
    %v2898 = vpop.f32.mrb[0].mxu0
    %2899 = vmatprep.mubr.f32.mxu0 %v2700
    %2900 = vmatmul.mubr.f32.gmra.mrb[0].mxu0 %v2652
    %v2901 = vpop.f32.mrb[0].mxu0
    %v2902 = vadd.f32 %v2750, %v2901
    %v2903 = vpop.f32.mrb[0].mxu0
    %2904 = vmatprep.mubr.f32.mxu0 %v2701
    %2905 = vmatmul.mubr.f32.gmra.mrb[0].mxu0 %v2653
    %v2906 = vpop.f32.mrb[0].mxu0
    %v2907 = vadd.f32 %v2750, %v2906
    %v2908 = vpop.f32.mrb[0].mxu0
    %2909 = vmatprep.mubr.f32.mxu0 %v2702
    %2910 = vmatmul.mubr.f32.gmra.mrb[0].mxu0 %v2654
    %v2911 = vpop.f32.mrb[0].mxu0
    %v2912 = vadd.f32 %v2750, %v2911
    %v2913 = vpop.f32.mrb[0].mxu0
    %2914 = vmatprep.mubr.f32.mxu0 %v2703
    %2915 = vmatmul.mubr.f32.gmra.mrb[0].mxu0 %v2655
    %v2916 = vpop.f32.mrb[0].mxu0
    %v2917 = vadd.f32 %v2750, %v2916
    %v2918 = vpop.f32.mrb[0].mxu0
    %2919 = vmatprep.mubr.f32.mxu0 %v2704
    %2920 = vmatmul.mubr.f32.gmra.mrb[0].mxu0 %v2656
    %v2921 = vpop.f32.mrb[0].mxu0
    %v2922 = vadd.f32 %v2750, %v2921
    %v2923 = vpop.f32.mrb[0].mxu0
    %2924 = vmatprep.mubr.f32.mxu0 %v2705
    %2925 = vmatmul.mubr.f32.gmra.mrb[0].mxu0 %v2657
    %v2926 = vpop.f32.mrb[0].mxu0
    %v2927 = vadd.f32 %v2750, %v2926
    %v2928 = vpop.f32.mrb[0].mxu0
    %2929 = vmatprep.mubr.f32.mxu0 %v2706
    %2930 = vmatmul.mubr.f32.gmra.mrb[0].mxu0 %v2658
    %v2931 = vpop.f32.mrb[0].mxu0
    %v2932 = vadd.f32 %v2750, %v2931
    %v2933 = vpop.f32.mrb[0].mxu0
    %2934 = vmatprep.mubr.f32.mxu0 %v2707
    %2935 = vmatmul.mubr.f32.gmra.mrb[0].mxu0 %v2659
    %v2936 = vpop.f32.mrb[0].mxu0
    %v2937 = vadd.f32 %v2750, %v2936
    %v2938 = vpop.f32.mrb[0].mxu0
    %2939 = vmatprep.mubr.f32.mxu0 %v2708
    %2940 = vmatmul.mubr.f32.gmra.mrb[0].mxu0 %v2660
    %v2941 = vpop.f32.mrb[0].mxu0
    %v2942 = vadd.f32 %v2750, %v2941
    %v2943 = vpop.f32.mrb[0].mxu0
    %2944 = vdwg.mxu0
    %2945 = vmatprep.subr.mxu0 0.0
    %2946 = vmatpush1.msra.mxu0 %v2741
    %2947 = vmatprep.subr.mxu0 0.0
    %2948 = vmatpush1.msra.mxu0 %v2742
    %2949 = vmatprep.subr.mxu0 0.0
    %2950 = vmatpush1.msra.mxu0 %v2743
    %2951 = vmatprep.subr.mxu0 0.0
    %2952 = vmatpush1.msra.mxu0 %v2744
    %2953 = vmatprep.subr.mxu0 0.0
    %2954 = vmatpush1.msra.mxu0 0.0
    %2955 = vmatprep.subr.mxu0 0.0
    %2956 = vmatpush1.msra.mxu0 0.0
    %2957 = vmatprep.subr.mxu0 0.0
    %2958 = vmatpush1.msra.mxu0 0.0
    %2959 = vmatprep.subr.mxu0 0.0
    %2960 = vmatpush1.msra.mxu0 0.0
    %2961 = vmatprep.subr.mxu0 0.0
    %2962 = vmatpush1.msra.mxu0 0.0
    %2963 = vmatprep.subr.mxu0 0.0
    %2964 = vmatpush1.msra.mxu0 0.0
    %2965 = vmatprep.subr.mxu0 0.0
    %2966 = vmatpush1.msra.mxu0 0.0
    %2967 = vmatprep.subr.mxu0 0.0
    %2968 = vmatpush1.msra.mxu0 0.0
    %2969 = vmatprep.subr.mxu0 0.0
    %2970 = vmatpush1.msra.mxu0 0.0
    %2971 = vmatprep.subr.mxu0 0.0
    %2972 = vmatpush1.msra.mxu0 0.0
    %2973 = vmatprep.subr.mxu0 0.0
    %2974 = vmatpush1.msra.mxu0 0.0
    %2975 = vmatprep.subr.mxu0 0.0
    %2976 = vmatpush1.msra.mxu0 0.0
    %2977 = vmatprep.subr.mxu0 0.0
    %2978 = vmatpush1.msra.mxu0 0.0
    %2979 = vmatprep.subr.mxu0 0.0
    %2980 = vmatpush1.msra.mxu0 0.0
    %2981 = vmatprep.subr.mxu0 0.0
    %2982 = vmatpush1.msra.mxu0 0.0
    %2983 = vmatprep.subr.mxu0 0.0
    %2984 = vmatpush1.msra.mxu0 0.0
    %2985 = vmatprep.subr.mxu0 0.0
    %2986 = vmatpush1.msra.mxu0 0.0
    %2987 = vmatprep.subr.mxu0 0.0
    %2988 = vmatpush1.msra.mxu0 0.0
    %2989 = vmatprep.subr.mxu0 0.0
    %2990 = vmatpush1.msra.mxu0 0.0
    %2991 = vmatprep.subr.mxu0 0.0
    %2992 = vmatpush1.msra.mxu0 0.0
    %2993 = vmatprep.subr.mxu0 0.0
    %2994 = vmatpush1.msra.mxu0 0.0
    %2995 = vmatprep.subr.mxu0 0.0
    %2996 = vmatpush1.msra.mxu0 0.0
    %2997 = vmatprep.subr.mxu0 0.0
    %2998 = vmatpush1.msra.mxu0 0.0
    %2999 = vmatprep.subr.mxu0 0.0
    %3000 = vmatpush1.msra.mxu0 0.0
    %3001 = vmatprep.subr.mxu0 0.0
    %3002 = vmatpush1.msra.mxu0 0.0
    %3003 = vmatprep.subr.mxu0 0.0
    %3004 = vmatpush1.msra.mxu0 0.0
    %3005 = vmatprep.subr.mxu0 0.0
    %3006 = vmatpush1.msra.mxu0 0.0
    %3007 = vmatprep.subr.mxu0 0.0
    %3008 = vmatpush1.msra.mxu0 0.0
    %3009 = vmatprep.mubr.f32.mxu0 0.0
    %3010 = vmatmul.mubr.f32.gmra.mrb[0].mxu0 %v2753
    %v3011 = vpop.f32.mrb[0].mxu0
    %v3012 = vadd.f32 %v2867, %v3011
    %v3013 = vpop.f32.mrb[0].mxu0
    %3014 = vmatprep.mubr.f32.mxu0 0.0
    %3015 = vmatmul.mubr.f32.gmra.mrb[0].mxu0 %v2756
    %v3016 = vpop.f32.mrb[0].mxu0
    %v3017 = vadd.f32 %v2872, %v3016
    %v3018 = vpop.f32.mrb[0].mxu0
    %3019 = vmatprep.mubr.f32.mxu0 0.0
    %3020 = vmatmul.mubr.f32.gmra.mrb[0].mxu0 %v2759
    %v3021 = vpop.f32.mrb[0].mxu0
    %v3022 = vadd.f32 %v2877, %v3021
    %v3023 = vpop.f32.mrb[0].mxu0
    %3024 = vmatprep.mubr.f32.mxu0 0.0
    %3025 = vmatmul.mubr.f32.gmra.mrb[0].mxu0 %v2762
    %v3026 = vpop.f32.mrb[0].mxu0
    %v3027 = vadd.f32 %v2882, %v3026
    %v3028 = vpop.f32.mrb[0].mxu0
    %3029 = vmatprep.mubr.f32.mxu0 0.0
    %3030 = vmatmul.mubr.f32.gmra.mrb[0].mxu0 %v2765
    %v3031 = vpop.f32.mrb[0].mxu0
    %v3032 = vadd.f32 %v2887, %v3031
    %v3033 = vpop.f32.mrb[0].mxu0
    %3034 = vmatprep.mubr.f32.mxu0 0.0
    %3035 = vmatmul.mubr.f32.gmra.mrb[0].mxu0 %v2768
    %v3036 = vpop.f32.mrb[0].mxu0
    %v3037 = vadd.f32 %v2892, %v3036
    %v3038 = vpop.f32.mrb[0].mxu0
    %3039 = vmatprep.mubr.f32.mxu0 0.0
    %3040 = vmatmul.mubr.f32.gmra.mrb[0].mxu0 %v2771
    %v3041 = vpop.f32.mrb[0].mxu0
    %v3042 = vadd.f32 %v2897, %v3041
    %v3043 = vpop.f32.mrb[0].mxu0
    %3044 = vmatprep.mubr.f32.mxu0 0.0
    %3045 = vmatmul.mubr.f32.gmra.mrb[0].mxu0 %v2774
    %v3046 = vpop.f32.mrb[0].mxu0
    %v3047 = vadd.f32 %v2902, %v3046
    %v3048 = vpop.f32.mrb[0].mxu0
    %3049 = vmatprep.mubr.f32.mxu0 0.0
    %3050 = vmatmul.mubr.f32.gmra.mrb[0].mxu0 %v2777
    %v3051 = vpop.f32.mrb[0].mxu0
    %v3052 = vadd.f32 %v2907, %v3051
    %v3053 = vpop.f32.mrb[0].mxu0
    %3054 = vmatprep.mubr.f32.mxu0 0.0
    %3055 = vmatmul.mubr.f32.gmra.mrb[0].mxu0 %v2780
    %v3056 = vpop.f32.mrb[0].mxu0
    %v3057 = vadd.f32 %v2912, %v3056
    %v3058 = vpop.f32.mrb[0].mxu0
    %3059 = vmatprep.mubr.f32.mxu0 0.0
    %3060 = vmatmul.mubr.f32.gmra.mrb[0].mxu0 %v2783
    %v3061 = vpop.f32.mrb[0].mxu0
    %v3062 = vadd.f32 %v2917, %v3061
    %v3063 = vpop.f32.mrb[0].mxu0
    %3064 = vmatprep.mubr.f32.mxu0 0.0
    %3065 = vmatmul.mubr.f32.gmra.mrb[0].mxu0 %v2786
    %v3066 = vpop.f32.mrb[0].mxu0
    %v3067 = vadd.f32 %v2922, %v3066
    %v3068 = vpop.f32.mrb[0].mxu0
    %3069 = vmatprep.mubr.f32.mxu0 0.0
    %3070 = vmatmul.mubr.f32.gmra.mrb[0].mxu0 %v2789
    %v3071 = vpop.f32.mrb[0].mxu0
    %v3072 = vadd.f32 %v2927, %v3071
    %v3073 = vpop.f32.mrb[0].mxu0
    %3074 = vmatprep.mubr.f32.mxu0 0.0
    %3075 = vmatmul.mubr.f32.gmra.mrb[0].mxu0 %v2792
    %v3076 = vpop.f32.mrb[0].mxu0
    %v3077 = vadd.f32 %v2932, %v3076
    %v3078 = vpop.f32.mrb[0].mxu0
    %3079 = vmatprep.mubr.f32.mxu0 0.0
    %3080 = vmatmul.mubr.f32.gmra.mrb[0].mxu0 %v2795
    %v3081 = vpop.f32.mrb[0].mxu0
    %v3082 = vadd.f32 %v2937, %v3081
    %v3083 = vpop.f32.mrb[0].mxu0
    %3084 = vmatprep.mubr.f32.mxu0 0.0
    %3085 = vmatmul.mubr.f32.gmra.mrb[0].mxu0 %v2798
    %v3086 = vpop.f32.mrb[0].mxu0
    %v3087 = vadd.f32 %v2942, %v3086
    %v3088 = vpop.f32.mrb[0].mxu0
    %3089 = vdwg.mxu0
    %v3090 = vsel %vm88, %v3012, 0.0
    %v3091 = vsel %vm88, %v3017, 0.0
    %v3092 = vadd.f32 %v3090, %v3091
    %v3093 = vsel %vm88, %v3022, 0.0
    %v3094 = vadd.f32 %v3092, %v3093
    %v3095 = vsel %vm88, %v3027, 0.0
    %v3096 = vadd.f32 %v3094, %v3095
    %v3097 = vsel %vm88, %v3032, 0.0
    %v3098 = vadd.f32 %v3096, %v3097
    %v3099 = vsel %vm88, %v3037, 0.0
    %v3100 = vadd.f32 %v3098, %v3099
    %v3101 = vsel %vm88, %v3042, 0.0
    %v3102 = vadd.f32 %v3100, %v3101
    %v3103 = vsel %vm88, %v3047, 0.0
    %v3104 = vadd.f32 %v3102, %v3103
    %v3105 = vrot.slane %v3104, 4
    %v3106 = vadd.f32 %v3104, %v3105
    %v3107 = vrot.slane %v3106, 2
    %v3108 = vadd.f32 %v3106, %v3107
    %v3109 = vrot.slane %v3108, 1
    %v3110 = vadd.f32 %v3108, %v3109
    %v3111 = vsel %vm88, %v3052, 0.0
    %v3112 = vsel %vm88, %v3057, 0.0
    %v3113 = vadd.f32 %v3111, %v3112
    %v3114 = vsel %vm88, %v3062, 0.0
    %v3115 = vadd.f32 %v3113, %v3114
    %v3116 = vsel %vm88, %v3067, 0.0
    %v3117 = vadd.f32 %v3115, %v3116
    %v3118 = vsel %vm88, %v3072, 0.0
    %v3119 = vadd.f32 %v3117, %v3118
    %v3120 = vsel %vm88, %v3077, 0.0
    %v3121 = vadd.f32 %v3119, %v3120
    %v3122 = vsel %vm88, %v3082, 0.0
    %v3123 = vadd.f32 %v3121, %v3122
    %v3124 = vsel %vm88, %v3087, 0.0
    %v3125 = vadd.f32 %v3123, %v3124
    %v3126 = vrot.slane %v3125, 4
    %v3127 = vadd.f32 %v3125, %v3126
    %v3128 = vrot.slane %v3127, 2
    %v3129 = vadd.f32 %v3127, %v3128
    %v3130 = vrot.slane %v3129, 1
    %v3131 = vadd.f32 %v3129, %v3130
    %v3132 = vmul.f32 %v3110, %v1344
    %v3133 = vmul.f32 %v3131, %v1344
    %v3134 = vmul.f32 %v3012, %v3012
    %v3135 = vmul.f32 %v3017, %v3017
    %v3136 = vmul.f32 %v3022, %v3022
    %v3137 = vmul.f32 %v3027, %v3027
    %v3138 = vmul.f32 %v3032, %v3032
    %v3139 = vmul.f32 %v3037, %v3037
    %v3140 = vmul.f32 %v3042, %v3042
    %v3141 = vmul.f32 %v3047, %v3047
    %v3142 = vmul.f32 %v3052, %v3052
    %v3143 = vmul.f32 %v3057, %v3057
    %v3144 = vmul.f32 %v3062, %v3062
    %v3145 = vmul.f32 %v3067, %v3067
    %v3146 = vmul.f32 %v3072, %v3072
    %v3147 = vmul.f32 %v3077, %v3077
    %v3148 = vmul.f32 %v3082, %v3082
    %v3149 = vmul.f32 %v3087, %v3087
    %v3150 = vsel %vm88, %v3134, 0.0
    %v3151 = vsel %vm88, %v3135, 0.0
    %v3152 = vadd.f32 %v3150, %v3151
    %v3153 = vsel %vm88, %v3136, 0.0
    %v3154 = vadd.f32 %v3152, %v3153
    %v3155 = vsel %vm88, %v3137, 0.0
    %v3156 = vadd.f32 %v3154, %v3155
    %v3157 = vsel %vm88, %v3138, 0.0
    %v3158 = vadd.f32 %v3156, %v3157
    %v3159 = vsel %vm88, %v3139, 0.0
    %v3160 = vadd.f32 %v3158, %v3159
    %v3161 = vsel %vm88, %v3140, 0.0
    %v3162 = vadd.f32 %v3160, %v3161
    %v3163 = vsel %vm88, %v3141, 0.0
    %v3164 = vadd.f32 %v3162, %v3163
    %v3165 = vrot.slane %v3164, 4
    %v3166 = vadd.f32 %v3164, %v3165
    %v3167 = vrot.slane %v3166, 2
    %v3168 = vadd.f32 %v3166, %v3167
    %v3169 = vrot.slane %v3168, 1
    %v3170 = vadd.f32 %v3168, %v3169
    %v3171 = vsel %vm88, %v3142, 0.0
    %v3172 = vsel %vm88, %v3143, 0.0
    %v3173 = vadd.f32 %v3171, %v3172
    %v3174 = vsel %vm88, %v3144, 0.0
    %v3175 = vadd.f32 %v3173, %v3174
    %v3176 = vsel %vm88, %v3145, 0.0
    %v3177 = vadd.f32 %v3175, %v3176
    %v3178 = vsel %vm88, %v3146, 0.0
    %v3179 = vadd.f32 %v3177, %v3178
    %v3180 = vsel %vm88, %v3147, 0.0
    %v3181 = vadd.f32 %v3179, %v3180
    %v3182 = vsel %vm88, %v3148, 0.0
    %v3183 = vadd.f32 %v3181, %v3182
    %v3184 = vsel %vm88, %v3149, 0.0
    %v3185 = vadd.f32 %v3183, %v3184
    %v3186 = vrot.slane %v3185, 4
    %v3187 = vadd.f32 %v3185, %v3186
    %v3188 = vrot.slane %v3187, 2
    %v3189 = vadd.f32 %v3187, %v3188
    %v3190 = vrot.slane %v3189, 1
    %v3191 = vadd.f32 %v3189, %v3190
    %v3192 = vmul.f32 %v3170, %v1344
    %v3193 = vmul.f32 %v3191, %v1344
    %v3196 = vsel %vm1409, %v3133, %v3132
    %v3200 = vsel %vm1414, %v3193, %v3192
    %v3202 = vsel %vm1417, %v3196, %v3200
    %v3203 = vld [vmem:[%s9] sm:$0xff]
    %v3204 = vld [vmem:[%s9 + $0x8] sm:$0xff]
    %v3205 = vld [vmem:[%s9 + $0x10] sm:$0xff]
    %v3206 = vld [vmem:[%s9 + $0x18] sm:$0xff]
    %v3208 = vsel %vm88, %v3202, 0
    %3210 = vmatprep.subr.mxu0 0.0
    %3211 = vmatpush1.msra.mxu0 %v3203
    %3212 = vmatprep.subr.mxu0 0.0
    %3213 = vmatpush1.msra.mxu0 %v3204
    %3214 = vmatprep.subr.mxu0 0.0
    %3215 = vmatpush1.msra.mxu0 %v3205
    %3216 = vmatprep.subr.mxu0 0.0
    %3217 = vmatpush1.msra.mxu0 %v3206
    %3218 = vmatprep.subr.mxu0 0.0
    %3219 = vmatpush1.msra.mxu0 0.0
    %3220 = vmatprep.subr.mxu0 0.0
    %3221 = vmatpush1.msra.mxu0 0.0
    %3222 = vmatprep.subr.mxu0 0.0
    %3223 = vmatpush1.msra.mxu0 0.0
    %3224 = vmatprep.subr.mxu0 0.0
    %3225 = vmatpush1.msra.mxu0 0.0
    %3226 = vmatprep.subr.mxu0 0.0
    %3227 = vmatpush1.msra.mxu0 0.0
    %3228 = vmatprep.subr.mxu0 0.0
    %3229 = vmatpush1.msra.mxu0 0.0
    %3230 = vmatprep.subr.mxu0 0.0
    %3231 = vmatpush1.msra.mxu0 0.0
    %3232 = vmatprep.subr.mxu0 0.0
    %3233 = vmatpush1.msra.mxu0 0.0
    %3234 = vmatprep.subr.mxu0 0.0
    %3235 = vmatpush1.msra.mxu0 0.0
    %3236 = vmatprep.subr.mxu0 0.0
    %3237 = vmatpush1.msra.mxu0 0.0
    %3238 = vmatprep.subr.mxu0 0.0
    %3239 = vmatpush1.msra.mxu0 0.0
    %3240 = vmatprep.subr.mxu0 0.0
    %3241 = vmatpush1.msra.mxu0 0.0
    %3242 = vmatprep.subr.mxu0 0.0
    %3243 = vmatpush1.msra.mxu0 0.0
    %3244 = vmatprep.subr.mxu0 0.0
    %3245 = vmatpush1.msra.mxu0 0.0
    %3246 = vmatprep.subr.mxu0 0.0
    %3247 = vmatpush1.msra.mxu0 0.0
    %3248 = vmatprep.subr.mxu0 0.0
    %3249 = vmatpush1.msra.mxu0 0.0
    %3250 = vmatprep.subr.mxu0 0.0
    %3251 = vmatpush1.msra.mxu0 0.0
    %3252 = vmatprep.subr.mxu0 0.0
    %3253 = vmatpush1.msra.mxu0 0.0
    %3254 = vmatprep.subr.mxu0 0.0
    %3255 = vmatpush1.msra.mxu0 0.0
    %3256 = vmatprep.subr.mxu0 0.0
    %3257 = vmatpush1.msra.mxu0 0.0
    %3258 = vmatprep.subr.mxu0 0.0
    %3259 = vmatpush1.msra.mxu0 0.0
    %3260 = vmatprep.subr.mxu0 0.0
    %3261 = vmatpush1.msra.mxu0 0.0
    %3262 = vmatprep.subr.mxu0 0.0
    %3263 = vmatpush1.msra.mxu0 0.0
    %3264 = vmatprep.subr.mxu0 0.0
    %3265 = vmatpush1.msra.mxu0 0.0
    %3266 = vmatprep.subr.mxu0 0.0
    %3267 = vmatpush1.msra.mxu0 0.0
    %3268 = vmatprep.subr.mxu0 0.0
    %3269 = vmatpush1.msra.mxu0 0.0
    %3270 = vmatprep.subr.mxu0 0.0
    %3271 = vmatpush1.msra.mxu0 0.0
    %3272 = vmatprep.subr.mxu0 0.0
    %3273 = vmatpush1.msra.mxu0 0.0
    %3274 = vmatprep.mubr.f32.mxu0 0.0
    %3275 = vmatmul.mubr.f32.gmra.mrb[0].mxu0 %v3208
    %v3276 = vpop.f32.mrb[0].mxu0
    %v3277 = vadd.f32 0.0, %v3276
    %v3278 = vpop.f32.mrb[0].mxu0
    %3279 = vdwg.mxu0
    %v3282 = vunpack.c.l.s4 1966171168
    %v3283 = vunpack.c.0.s8 %v3282
    %v3284 = vlaneseq
    %v3285 = vshrl.u32 %v3284, 7
    %v3286 = vsub.s32 %v3283, %v3285
    %v3287 = vrot.slane %v3277, %v3286
    %v3288 = vcombine.high %v3287, %v3287
    %v3290 = vunpack.c.l.s4 1966171168
    %v3291 = vunpack.c.0.s8 %v3290
    %v3292 = vlaneseq
    %v3293 = vshrl.u32 %v3292, 7
    %v3294 = vsub.s32 %v3291, %v3293
    %v3295 = vrot.slane %v3287, %v3294
    %v3297 = vunpack.c.l.s4 1966171168
    %v3298 = vunpack.c.0.s8 %v3297
    %v3299 = vlaneseq
    %v3300 = vshrl.u32 %v3299, 7
    %v3301 = vsub.s32 %v3298, %v3300
    %v3302 = vrot.slane %v3288, %v3301
    %v3305 = vcombine.high %v3295, %v3295
    %v3306 = vcombine.high %v3302, %v3302
    %v3309 = vmul.f32 %v3295, %v3295
    %v3310 = vmul.f32 %v3302, %v3302
    %v3311 = vsub.f32 %v3305, %v3309
    %v3312 = vsub.f32 %v3306, %v3310
    %v3313 = vadd.f32 %v3311, 1e-05
    %v3314 = vadd.f32 %v3312, 1e-05
    %v3315 = vrsqrt.pop %v3313
    %v3316 = vrsqrt.pop %v3314
    %v3317 = vld [vmem:[%s7] sm:$0x1]
    %v3318 = vld [vmem:[%s8] sm:$0x1]
    %v3319 = vlaneseq
    %v3320 = vshrl.u32 %v3319, 7
    %v3321 = vsub.s32 0, %v3320
    %v3322 = vrot.slane %v3295, %v3321
    %v3323 = vlaneseq
    %v3324 = vshrl.u32 %v3323, 7
    %v3325 = vsub.s32 0, %v3324
    %v3326 = vrot.slane %v3302, %v3325
    %v3329 = vsub.f32 %v3012, %v3322
    %v3330 = vsub.f32 %v3017, %v3322
    %v3331 = vsub.f32 %v3022, %v3322
    %v3332 = vsub.f32 %v3027, %v3322
    %v3333 = vsub.f32 %v3032, %v3322
    %v3334 = vsub.f32 %v3037, %v3322
    %v3335 = vsub.f32 %v3042, %v3322
    %v3336 = vsub.f32 %v3047, %v3322
    %v3337 = vsub.f32 %v3052, %v3326
    %v3338 = vsub.f32 %v3057, %v3326
    %v3339 = vsub.f32 %v3062, %v3326
    %v3340 = vsub.f32 %v3067, %v3326
    %v3341 = vsub.f32 %v3072, %v3326
    %v3342 = vsub.f32 %v3077, %v3326
    %v3343 = vsub.f32 %v3082, %v3326
    %v3344 = vsub.f32 %v3087, %v3326
    %v3347 = vlaneseq
    %v3348 = vshrl.u32 %v3347, 7
    %v3349 = vsub.s32 0, %v3348
    %v3350 = vrot.slane %v3315, %v3349
    %v3351 = vlaneseq
    %v3352 = vshrl.u32 %v3351, 7
    %v3353 = vsub.s32 0, %v3352
    %v3354 = vrot.slane %v3316, %v3353
    %v3357 = vmul.f32 %v3329, %v3350
    %v3358 = vmul.f32 %v3330, %v3350
    %v3359 = vmul.f32 %v3331, %v3350
    %v3360 = vmul.f32 %v3332, %v3350
    %v3361 = vmul.f32 %v3333, %v3350
    %v3362 = vmul.f32 %v3334, %v3350
    %v3363 = vmul.f32 %v3335, %v3350
    %v3364 = vmul.f32 %v3336, %v3350
    %v3365 = vmul.f32 %v3337, %v3354
    %v3366 = vmul.f32 %v3338, %v3354
    %v3367 = vmul.f32 %v3339, %v3354
    %v3368 = vmul.f32 %v3340, %v3354
    %v3369 = vmul.f32 %v3341, %v3354
    %v3370 = vmul.f32 %v3342, %v3354
    %v3371 = vmul.f32 %v3343, %v3354
    %v3372 = vmul.f32 %v3344, %v3354
    %v3374 = vlaneseq
    %v3375 = vshrl.u32 %v3374, 7
    %v3376 = vsub.s32 0, %v3375
    %v3377 = vrot.slane %v3317, %v3376
    %v3379 = vmul.f32 %v3357, %v3377
    %v3380 = vmul.f32 %v3358, %v3377
    %v3381 = vmul.f32 %v3359, %v3377
    %v3382 = vmul.f32 %v3360, %v3377
    %v3383 = vmul.f32 %v3361, %v3377
    %v3384 = vmul.f32 %v3362, %v3377
    %v3385 = vmul.f32 %v3363, %v3377
    %v3386 = vmul.f32 %v3364, %v3377
    %v3387 = vmul.f32 %v3365, %v3377
    %v3388 = vmul.f32 %v3366, %v3377
    %v3389 = vmul.f32 %v3367, %v3377
    %v3390 = vmul.f32 %v3368, %v3377
    %v3391 = vmul.f32 %v3369, %v3377
    %v3392 = vmul.f32 %v3370, %v3377
    %v3393 = vmul.f32 %v3371, %v3377
    %v3394 = vmul.f32 %v3372, %v3377
    %v3396 = vlaneseq
    %v3397 = vshrl.u32 %v3396, 7
    %v3398 = vsub.s32 0, %v3397
    %v3399 = vrot.slane %v3318, %v3398
    %v3401 = vadd.f32 %v3379, %v3399
    %v3402 = vadd.f32 %v3380, %v3399
    %v3403 = vadd.f32 %v3381, %v3399
    %v3404 = vadd.f32 %v3382, %v3399
    %v3405 = vadd.f32 %v3383, %v3399
    %v3406 = vadd.f32 %v3384, %v3399
    %v3407 = vadd.f32 %v3385, %v3399
    %v3408 = vadd.f32 %v3386, %v3399
    %v3409 = vadd.f32 %v3387, %v3399
    %v3410 = vadd.f32 %v3388, %v3399
    %v3411 = vadd.f32 %v3389, %v3399
    %v3412 = vadd.f32 %v3390, %v3399
    %v3413 = vadd.f32 %v3391, %v3399
    %v3414 = vadd.f32 %v3392, %v3399
    %v3415 = vadd.f32 %v3393, %v3399
    %v3416 = vadd.f32 %v3394, %v3399
    %v3417 = vmul.f32 %v3401, 0.5
    %v3418 = vmul.f32 %v3402, 0.5
    %v3419 = vmul.f32 %v3403, 0.5
    %v3420 = vmul.f32 %v3404, 0.5
    %v3421 = vmul.f32 %v3405, 0.5
    %v3422 = vmul.f32 %v3406, 0.5
    %v3423 = vmul.f32 %v3407, 0.5
    %v3424 = vmul.f32 %v3408, 0.5
    %v3425 = vmul.f32 %v3409, 0.5
    %v3426 = vmul.f32 %v3410, 0.5
    %v3427 = vmul.f32 %v3411, 0.5
    %v3428 = vmul.f32 %v3412, 0.5
    %v3429 = vmul.f32 %v3413, 0.5
    %v3430 = vmul.f32 %v3414, 0.5
    %v3431 = vmul.f32 %v3415, 0.5
    %v3432 = vmul.f32 %v3416, 0.5
    %v3433 = vmul.f32 %v3401, 0.70710677
    %v3434 = vmul.f32 %v3402, 0.70710677
    %v3435 = vmul.f32 %v3403, 0.70710677
    %v3436 = vmul.f32 %v3404, 0.70710677
    %v3437 = vmul.f32 %v3405, 0.70710677
    %v3438 = vmul.f32 %v3406, 0.70710677
    %v3439 = vmul.f32 %v3407, 0.70710677
    %v3440 = vmul.f32 %v3408, 0.70710677
    %v3441 = vmul.f32 %v3409, 0.70710677
    %v3442 = vmul.f32 %v3410, 0.70710677
    %v3443 = vmul.f32 %v3411, 0.70710677
    %v3444 = vmul.f32 %v3412, 0.70710677
    %v3445 = vmul.f32 %v3413, 0.70710677
    %v3446 = vmul.f32 %v3414, 0.70710677
    %v3447 = vmul.f32 %v3415, 0.70710677
    %v3448 = vmul.f32 %v3416, 0.70710677
    %v3449 = vand.u32 2147483647, %v3433
    %v3450 = vand.u32 2147483647, %v3434
    %v3451 = vand.u32 2147483647, %v3435
    %v3452 = vand.u32 2147483647, %v3436
    %v3453 = vand.u32 2147483647, %v3437
    %v3454 = vand.u32 2147483647, %v3438
    %v3455 = vand.u32 2147483647, %v3439
    %v3456 = vand.u32 2147483647, %v3440
    %v3457 = vand.u32 2147483647, %v3441
    %v3458 = vand.u32 2147483647, %v3442
    %v3459 = vand.u32 2147483647, %v3443
    %v3460 = vand.u32 2147483647, %v3444
    %v3461 = vand.u32 2147483647, %v3445
    %v3462 = vand.u32 2147483647, %v3446
    %v3463 = vand.u32 2147483647, %v3447
    %v3464 = vand.u32 2147483647, %v3448
    %v3465 = vmul.f32 %v3449, 0.3275911
    %v3466 = vmul.f32 %v3450, 0.3275911
    %v3467 = vmul.f32 %v3451, 0.3275911
    %v3468 = vmul.f32 %v3452, 0.3275911
    %v3469 = vmul.f32 %v3453, 0.3275911
    %v3470 = vmul.f32 %v3454, 0.3275911
    %v3471 = vmul.f32 %v3455, 0.3275911
    %v3472 = vmul.f32 %v3456, 0.3275911
    %v3473 = vmul.f32 %v3457, 0.3275911
    %v3474 = vmul.f32 %v3458, 0.3275911
    %v3475 = vmul.f32 %v3459, 0.3275911
    %v3476 = vmul.f32 %v3460, 0.3275911
    %v3477 = vmul.f32 %v3461, 0.3275911
    %v3478 = vmul.f32 %v3462, 0.3275911
    %v3479 = vmul.f32 %v3463, 0.3275911
    %v3480 = vmul.f32 %v3464, 0.3275911
    %v3481 = vadd.f32 %v3465, 1.0
    %v3482 = vadd.f32 %v3466, 1.0
    %v3483 = vadd.f32 %v3467, 1.0
    %v3484 = vadd.f32 %v3468, 1.0
    %v3485 = vadd.f32 %v3469, 1.0
    %v3486 = vadd.f32 %v3470, 1.0
    %v3487 = vadd.f32 %v3471, 1.0
    %v3488 = vadd.f32 %v3472, 1.0
    %v3489 = vadd.f32 %v3473, 1.0
    %v3490 = vadd.f32 %v3474, 1.0
    %v3491 = vadd.f32 %v3475, 1.0
    %v3492 = vadd.f32 %v3476, 1.0
    %v3493 = vadd.f32 %v3477, 1.0
    %v3494 = vadd.f32 %v3478, 1.0
    %v3495 = vadd.f32 %v3479, 1.0
    %v3496 = vadd.f32 %v3480, 1.0
    %v3497 = vrcp.pop %v3481
    %v3498 = vmul.f32 1.0, %v3497
    %v3499 = vrcp.pop %v3482
    %v3500 = vmul.f32 1.0, %v3499
    %v3501 = vrcp.pop %v3483
    %v3502 = vmul.f32 1.0, %v3501
    %v3503 = vrcp.pop %v3484
    %v3504 = vmul.f32 1.0, %v3503
    %v3505 = vrcp.pop %v3485
    %v3506 = vmul.f32 1.0, %v3505
    %v3507 = vrcp.pop %v3486
    %v3508 = vmul.f32 1.0, %v3507
    %v3509 = vrcp.pop %v3487
    %v3510 = vmul.f32 1.0, %v3509
    %v3511 = vrcp.pop %v3488
    %v3512 = vmul.f32 1.0, %v3511
    %v3513 = vrcp.pop %v3489
    %v3514 = vmul.f32 1.0, %v3513
    %v3515 = vrcp.pop %v3490
    %v3516 = vmul.f32 1.0, %v3515
    %v3517 = vrcp.pop %v3491
    %v3518 = vmul.f32 1.0, %v3517
    %v3519 = vrcp.pop %v3492
    %v3520 = vmul.f32 1.0, %v3519
    %v3521 = vrcp.pop %v3493
    %v3522 = vmul.f32 1.0, %v3521
    %v3523 = vrcp.pop %v3494
    %v3524 = vmul.f32 1.0, %v3523
    %v3525 = vrcp.pop %v3495
    %v3526 = vmul.f32 1.0, %v3525
    %v3527 = vrcp.pop %v3496
    %v3528 = vmul.f32 1.0, %v3527
    %v3529 = vmul.f32 %v3498, 1.0614054
    %v3530 = vmul.f32 %v3500, 1.0614054
    %v3531 = vmul.f32 %v3502, 1.0614054
    %v3532 = vmul.f32 %v3504, 1.0614054
    %v3533 = vmul.f32 %v3506, 1.0614054
    %v3534 = vmul.f32 %v3508, 1.0614054
    %v3535 = vmul.f32 %v3510, 1.0614054
    %v3536 = vmul.f32 %v3512, 1.0614054
    %v3537 = vmul.f32 %v3514, 1.0614054
    %v3538 = vmul.f32 %v3516, 1.0614054
    %v3539 = vmul.f32 %v3518, 1.0614054
    %v3540 = vmul.f32 %v3520, 1.0614054
    %v3541 = vmul.f32 %v3522, 1.0614054
    %v3542 = vmul.f32 %v3524, 1.0614054
    %v3543 = vmul.f32 %v3526, 1.0614054
    %v3544 = vmul.f32 %v3528, 1.0614054
    %v3545 = vadd.f32 %v3529, -1.4531521
    %v3546 = vadd.f32 %v3530, -1.4531521
    %v3547 = vadd.f32 %v3531, -1.4531521
    %v3548 = vadd.f32 %v3532, -1.4531521
    %v3549 = vadd.f32 %v3533, -1.4531521
    %v3550 = vadd.f32 %v3534, -1.4531521
    %v3551 = vadd.f32 %v3535, -1.4531521
    %v3552 = vadd.f32 %v3536, -1.4531521
    %v3553 = vadd.f32 %v3537, -1.4531521
    %v3554 = vadd.f32 %v3538, -1.4531521
    %v3555 = vadd.f32 %v3539, -1.4531521
    %v3556 = vadd.f32 %v3540, -1.4531521
    %v3557 = vadd.f32 %v3541, -1.4531521
    %v3558 = vadd.f32 %v3542, -1.4531521
    %v3559 = vadd.f32 %v3543, -1.4531521
    %v3560 = vadd.f32 %v3544, -1.4531521
    %v3561 = vmul.f32 %v3498, %v3545
    %v3562 = vmul.f32 %v3500, %v3546
    %v3563 = vmul.f32 %v3502, %v3547
    %v3564 = vmul.f32 %v3504, %v3548
    %v3565 = vmul.f32 %v3506, %v3549
    %v3566 = vmul.f32 %v3508, %v3550
    %v3567 = vmul.f32 %v3510, %v3551
    %v3568 = vmul.f32 %v3512, %v3552
    %v3569 = vmul.f32 %v3514, %v3553
    %v3570 = vmul.f32 %v3516, %v3554
    %v3571 = vmul.f32 %v3518, %v3555
    %v3572 = vmul.f32 %v3520, %v3556
    %v3573 = vmul.f32 %v3522, %v3557
    %v3574 = vmul.f32 %v3524, %v3558
    %v3575 = vmul.f32 %v3526, %v3559
    %v3576 = vmul.f32 %v3528, %v3560
    %v3577 = vadd.f32 %v3561, 1.4214138
    %v3578 = vadd.f32 %v3562, 1.4214138
    %v3579 = vadd.f32 %v3563, 1.4214138
    %v3580 = vadd.f32 %v3564, 1.4214138
    %v3581 = vadd.f32 %v3565, 1.4214138
    %v3582 = vadd.f32 %v3566, 1.4214138
    %v3583 = vadd.f32 %v3567, 1.4214138
    %v3584 = vadd.f32 %v3568, 1.4214138
    %v3585 = vadd.f32 %v3569, 1.4214138
    %v3586 = vadd.f32 %v3570, 1.4214138
    %v3587 = vadd.f32 %v3571, 1.4214138
    %v3588 = vadd.f32 %v3572, 1.4214138
    %v3589 = vadd.f32 %v3573, 1.4214138
    %v3590 = vadd.f32 %v3574, 1.4214138
    %v3591 = vadd.f32 %v3575, 1.4214138
    %v3592 = vadd.f32 %v3576, 1.4214138
    %v3593 = vmul.f32 %v3498, %v3577
    %v3594 = vmul.f32 %v3500, %v3578
    %v3595 = vmul.f32 %v3502, %v3579
    %v3596 = vmul.f32 %v3504, %v3580
    %v3597 = vmul.f32 %v3506, %v3581
    %v3598 = vmul.f32 %v3508, %v3582
    %v3599 = vmul.f32 %v3510, %v3583
    %v3600 = vmul.f32 %v3512, %v3584
    %v3601 = vmul.f32 %v3514, %v3585
    %v3602 = vmul.f32 %v3516, %v3586
    %v3603 = vmul.f32 %v3518, %v3587
    %v3604 = vmul.f32 %v3520, %v3588
    %v3605 = vmul.f32 %v3522, %v3589
    %v3606 = vmul.f32 %v3524, %v3590
    %v3607 = vmul.f32 %v3526, %v3591
    %v3608 = vmul.f32 %v3528, %v3592
    %v3609 = vadd.f32 %v3593, -0.28449672
    %v3610 = vadd.f32 %v3594, -0.28449672
    %v3611 = vadd.f32 %v3595, -0.28449672
    %v3612 = vadd.f32 %v3596, -0.28449672
    %v3613 = vadd.f32 %v3597, -0.28449672
    %v3614 = vadd.f32 %v3598, -0.28449672
    %v3615 = vadd.f32 %v3599, -0.28449672
    %v3616 = vadd.f32 %v3600, -0.28449672
    %v3617 = vadd.f32 %v3601, -0.28449672
    %v3618 = vadd.f32 %v3602, -0.28449672
    %v3619 = vadd.f32 %v3603, -0.28449672
    %v3620 = vadd.f32 %v3604, -0.28449672
    %v3621 = vadd.f32 %v3605, -0.28449672
    %v3622 = vadd.f32 %v3606, -0.28449672
    %v3623 = vadd.f32 %v3607, -0.28449672
    %v3624 = vadd.f32 %v3608, -0.28449672
    %v3625 = vmul.f32 %v3498, %v3609
    %v3626 = vmul.f32 %v3500, %v3610
    %v3627 = vmul.f32 %v3502, %v3611
    %v3628 = vmul.f32 %v3504, %v3612
    %v3629 = vmul.f32 %v3506, %v3613
    %v3630 = vmul.f32 %v3508, %v3614
    %v3631 = vmul.f32 %v3510, %v3615
    %v3632 = vmul.f32 %v3512, %v3616
    %v3633 = vmul.f32 %v3514, %v3617
    %v3634 = vmul.f32 %v3516, %v3618
    %v3635 = vmul.f32 %v3518, %v3619
    %v3636 = vmul.f32 %v3520, %v3620
    %v3637 = vmul.f32 %v3522, %v3621
    %v3638 = vmul.f32 %v3524, %v3622
    %v3639 = vmul.f32 %v3526, %v3623
    %v3640 = vmul.f32 %v3528, %v3624
    %v3641 = vadd.f32 %v3625, 0.2548296
    %v3642 = vadd.f32 %v3626, 0.2548296
    %v3643 = vadd.f32 %v3627, 0.2548296
    %v3644 = vadd.f32 %v3628, 0.2548296
    %v3645 = vadd.f32 %v3629, 0.2548296
    %v3646 = vadd.f32 %v3630, 0.2548296
    %v3647 = vadd.f32 %v3631, 0.2548296
    %v3648 = vadd.f32 %v3632, 0.2548296
    %v3649 = vadd.f32 %v3633, 0.2548296
    %v3650 = vadd.f32 %v3634, 0.2548296
    %v3651 = vadd.f32 %v3635, 0.2548296
    %v3652 = vadd.f32 %v3636, 0.2548296
    %v3653 = vadd.f32 %v3637, 0.2548296
    %v3654 = vadd.f32 %v3638, 0.2548296
    %v3655 = vadd.f32 %v3639, 0.2548296
    %v3656 = vadd.f32 %v3640, 0.2548296
    %v3657 = vmul.f32 %v3498, %v3641
    %v3658 = vmul.f32 %v3500, %v3642
    %v3659 = vmul.f32 %v3502, %v3643
    %v3660 = vmul.f32 %v3504, %v3644
    %v3661 = vmul.f32 %v3506, %v3645
    %v3662 = vmul.f32 %v3508, %v3646
    %v3663 = vmul.f32 %v3510, %v3647
    %v3664 = vmul.f32 %v3512, %v3648
    %v3665 = vmul.f32 %v3514, %v3649
    %v3666 = vmul.f32 %v3516, %v3650
    %v3667 = vmul.f32 %v3518, %v3651
    %v3668 = vmul.f32 %v3520, %v3652
    %v3669 = vmul.f32 %v3522, %v3653
    %v3670 = vmul.f32 %v3524, %v3654
    %v3671 = vmul.f32 %v3526, %v3655
    %v3672 = vmul.f32 %v3528, %v3656
    %v3673 = vsub.f32 0.0, %v3449
    %v3674 = vsub.f32 0.0, %v3450
    %v3675 = vsub.f32 0.0, %v3451
    %v3676 = vsub.f32 0.0, %v3452
    %v3677 = vsub.f32 0.0, %v3453
    %v3678 = vsub.f32 0.0, %v3454
    %v3679 = vsub.f32 0.0, %v3455
    %v3680 = vsub.f32 0.0, %v3456
    %v3681 = vsub.f32 0.0, %v3457
    %v3682 = vsub.f32 0.0, %v3458
    %v3683 = vsub.f32 0.0, %v3459
    %v3684 = vsub.f32 0.0, %v3460
    %v3685 = vsub.f32 0.0, %v3461
    %v3686 = vsub.f32 0.0, %v3462
    %v3687 = vsub.f32 0.0, %v3463
    %v3688 = vsub.f32 0.0, %v3464
    %v3689 = vmul.f32 %v3673, %v3449
    %v3690 = vmul.f32 %v3674, %v3450
    %v3691 = vmul.f32 %v3675, %v3451
    %v3692 = vmul.f32 %v3676, %v3452
    %v3693 = vmul.f32 %v3677, %v3453
    %v3694 = vmul.f32 %v3678, %v3454
    %v3695 = vmul.f32 %v3679, %v3455
    %v3696 = vmul.f32 %v3680, %v3456
    %v3697 = vmul.f32 %v3681, %v3457
    %v3698 = vmul.f32 %v3682, %v3458
    %v3699 = vmul.f32 %v3683, %v3459
    %v3700 = vmul.f32 %v3684, %v3460
    %v3701 = vmul.f32 %v3685, %v3461
    %v3702 = vmul.f32 %v3686, %v3462
    %v3703 = vmul.f32 %v3687, %v3463
    %v3704 = vmul.f32 %v3688, %v3464
    %v3705 = vmul.f32 %v3689, 1.442695
    %v3706 = vpow.pop %v3705
    %v3707 = vmul.f32 %v3690, 1.442695
    %v3708 = vpow.pop %v3707
    %v3709 = vmul.f32 %v3691, 1.442695
    %v3710 = vpow.pop %v3709
    %v3711 = vmul.f32 %v3692, 1.442695
    %v3712 = vpow.pop %v3711
    %v3713 = vmul.f32 %v3693, 1.442695
    %v3714 = vpow.pop %v3713
    %v3715 = vmul.f32 %v3694, 1.442695
    %v3716 = vpow.pop %v3715
    %v3717 = vmul.f32 %v3695, 1.442695
    %v3718 = vpow.pop %v3717
    %v3719 = vmul.f32 %v3696, 1.442695
    %v3720 = vpow.pop %v3719
    %v3721 = vmul.f32 %v3697, 1.442695
    %v3722 = vpow.pop %v3721
    %v3723 = vmul.f32 %v3698, 1.442695
    %v3724 = vpow.pop %v3723
    %v3725 = vmul.f32 %v3699, 1.442695
    %v3726 = vpow.pop %v3725
    %v3727 = vmul.f32 %v3700, 1.442695
    %v3728 = vpow.pop %v3727
    %v3729 = vmul.f32 %v3701, 1.442695
    %v3730 = vpow.pop %v3729
    %v3731 = vmul.f32 %v3702, 1.442695
    %v3732 = vpow.pop %v3731
    %v3733 = vmul.f32 %v3703, 1.442695
    %v3734 = vpow.pop %v3733
    %v3735 = vmul.f32 %v3704, 1.442695
    %v3736 = vpow.pop %v3735
    %v3737 = vmul.f32 %v3657, %v3706
    %v3738 = vmul.f32 %v3658, %v3708
    %v3739 = vmul.f32 %v3659, %v3710
    %v3740 = vmul.f32 %v3660, %v3712
    %v3741 = vmul.f32 %v3661, %v3714
    %v3742 = vmul.f32 %v3662, %v3716
    %v3743 = vmul.f32 %v3663, %v3718
    %v3744 = vmul.f32 %v3664, %v3720
    %v3745 = vmul.f32 %v3665, %v3722
    %v3746 = vmul.f32 %v3666, %v3724
    %v3747 = vmul.f32 %v3667, %v3726
    %v3748 = vmul.f32 %v3668, %v3728
    %v3749 = vmul.f32 %v3669, %v3730
    %v3750 = vmul.f32 %v3670, %v3732
    %v3751 = vmul.f32 %v3671, %v3734
    %v3752 = vmul.f32 %v3672, %v3736
    %v3753 = vsub.f32 1.0, %v3737
    %v3754 = vsub.f32 1.0, %v3738
    %v3755 = vsub.f32 1.0, %v3739
    %v3756 = vsub.f32 1.0, %v3740
    %v3757 = vsub.f32 1.0, %v3741
    %v3758 = vsub.f32 1.0, %v3742
    %v3759 = vsub.f32 1.0, %v3743
    %v3760 = vsub.f32 1.0, %v3744
    %v3761 = vsub.f32 1.0, %v3745
    %v3762 = vsub.f32 1.0, %v3746
    %v3763 = vsub.f32 1.0, %v3747
    %v3764 = vsub.f32 1.0, %v3748
    %v3765 = vsub.f32 1.0, %v3749
    %v3766 = vsub.f32 1.0, %v3750
    %v3767 = vsub.f32 1.0, %v3751
    %v3768 = vsub.f32 1.0, %v3752
    %vm3769 = vcmp.ge.f32.partialorder %v3433, 0.0
    %vm3770 = vcmp.ge.f32.partialorder %v3434, 0.0
    %vm3771 = vcmp.ge.f32.partialorder %v3435, 0.0
    %vm3772 = vcmp.ge.f32.partialorder %v3436, 0.0
    %vm3773 = vcmp.ge.f32.partialorder %v3437, 0.0
    %vm3774 = vcmp.ge.f32.partialorder %v3438, 0.0
    %vm3775 = vcmp.ge.f32.partialorder %v3439, 0.0
    %vm3776 = vcmp.ge.f32.partialorder %v3440, 0.0
    %vm3777 = vcmp.ge.f32.partialorder %v3441, 0.0
    %vm3778 = vcmp.ge.f32.partialorder %v3442, 0.0
    %vm3779 = vcmp.ge.f32.partialorder %v3443, 0.0
    %vm3780 = vcmp.ge.f32.partialorder %v3444, 0.0
    %vm3781 = vcmp.ge.f32.partialorder %v3445, 0.0
    %vm3782 = vcmp.ge.f32.partialorder %v3446, 0.0
    %vm3783 = vcmp.ge.f32.partialorder %v3447, 0.0
    %vm3784 = vcmp.ge.f32.partialorder %v3448, 0.0
    %v3785 = vsub.f32 0.0, %v3753
    %v3786 = vsub.f32 0.0, %v3754
    %v3787 = vsub.f32 0.0, %v3755
    %v3788 = vsub.f32 0.0, %v3756
    %v3789 = vsub.f32 0.0, %v3757
    %v3790 = vsub.f32 0.0, %v3758
    %v3791 = vsub.f32 0.0, %v3759
    %v3792 = vsub.f32 0.0, %v3760
    %v3793 = vsub.f32 0.0, %v3761
    %v3794 = vsub.f32 0.0, %v3762
    %v3795 = vsub.f32 0.0, %v3763
    %v3796 = vsub.f32 0.0, %v3764
    %v3797 = vsub.f32 0.0, %v3765
    %v3798 = vsub.f32 0.0, %v3766
    %v3799 = vsub.f32 0.0, %v3767
    %v3800 = vsub.f32 0.0, %v3768
    %v3801 = vsel %vm3769, %v3753, %v3785
    %v3802 = vsel %vm3770, %v3754, %v3786
    %v3803 = vsel %vm3771, %v3755, %v3787
    %v3804 = vsel %vm3772, %v3756, %v3788
    %v3805 = vsel %vm3773, %v3757, %v3789
    %v3806 = vsel %vm3774, %v3758, %v3790
    %v3807 = vsel %vm3775, %v3759, %v3791
    %v3808 = vsel %vm3776, %v3760, %v3792
    %v3809 = vsel %vm3777, %v3761, %v3793
    %v3810 = vsel %vm3778, %v3762, %v3794
    %v3811 = vsel %vm3779, %v3763, %v3795
    %v3812 = vsel %vm3780, %v3764, %v3796
    %v3813 = vsel %vm3781, %v3765, %v3797
    %v3814 = vsel %vm3782, %v3766, %v3798
    %v3815 = vsel %vm3783, %v3767, %v3799
    %v3816 = vsel %vm3784, %v3768, %v3800
    %v3817 = vadd.f32 %v3801, 1.0
    %v3818 = vadd.f32 %v3802, 1.0
    %v3819 = vadd.f32 %v3803, 1.0
    %v3820 = vadd.f32 %v3804, 1.0
    %v3821 = vadd.f32 %v3805, 1.0
    %v3822 = vadd.f32 %v3806, 1.0
    %v3823 = vadd.f32 %v3807, 1.0
    %v3824 = vadd.f32 %v3808, 1.0
    %v3825 = vadd.f32 %v3809, 1.0
    %v3826 = vadd.f32 %v3810, 1.0
    %v3827 = vadd.f32 %v3811, 1.0
    %v3828 = vadd.f32 %v3812, 1.0
    %v3829 = vadd.f32 %v3813, 1.0
    %v3830 = vadd.f32 %v3814, 1.0
    %v3831 = vadd.f32 %v3815, 1.0
    %v3832 = vadd.f32 %v3816, 1.0
    %v3833 = vmul.f32 %v3417, %v3817
    %v3834 = vmul.f32 %v3418, %v3818
    %v3835 = vmul.f32 %v3419, %v3819
    %v3836 = vmul.f32 %v3420, %v3820
    %v3837 = vmul.f32 %v3421, %v3821
    %v3838 = vmul.f32 %v3422, %v3822
    %v3839 = vmul.f32 %v3423, %v3823
    %v3840 = vmul.f32 %v3424, %v3824
    %v3841 = vmul.f32 %v3425, %v3825
    %v3842 = vmul.f32 %v3426, %v3826
    %v3843 = vmul.f32 %v3427, %v3827
    %v3844 = vmul.f32 %v3428, %v3828
    %v3845 = vmul.f32 %v3429, %v3829
    %v3846 = vmul.f32 %v3430, %v3830
    %v3847 = vmul.f32 %v3431, %v3831
    %v3848 = vmul.f32 %v3432, %v3832
    %3849 = vst.msk [vmem:[#allocation4] sm:$0xff] %vm88, %v3833
    %3850 = vst.msk [vmem:[#allocation4 + $0x8] sm:$0xff] %vm88, %v3834
    %3851 = vst.msk [vmem:[#allocation4 + $0x10] sm:$0xff] %vm88, %v3835
    %3852 = vst.msk [vmem:[#allocation4 + $0x18] sm:$0xff] %vm88, %v3836
    %3853 = vst.msk [vmem:[#allocation4 + $0x20] sm:$0xff] %vm88, %v3837
    %3854 = vst.msk [vmem:[#allocation4 + $0x28] sm:$0xff] %vm88, %v3838
    %3855 = vst.msk [vmem:[#allocation4 + $0x30] sm:$0xff] %vm88, %v3839
    %3856 = vst.msk [vmem:[#allocation4 + $0x38] sm:$0xff] %vm88, %v3840
    %3857 = vst.msk [vmem:[#allocation4 + $0x40] sm:$0xff] %vm88, %v3841
    %3858 = vst.msk [vmem:[#allocation4 + $0x48] sm:$0xff] %vm88, %v3842
    %3859 = vst.msk [vmem:[#allocation4 + $0x50] sm:$0xff] %vm88, %v3843
    %3860 = vst.msk [vmem:[#allocation4 + $0x58] sm:$0xff] %vm88, %v3844
    %3861 = vst.msk [vmem:[#allocation4 + $0x60] sm:$0xff] %vm88, %v3845
    %3862 = vst.msk [vmem:[#allocation4 + $0x68] sm:$0xff] %vm88, %v3846
    %3863 = vst.msk [vmem:[#allocation4 + $0x70] sm:$0xff] %vm88, %v3847
    %3864 = vst.msk [vmem:[#allocation4 + $0x78] sm:$0xff] %vm88, %v3848
    // Predicated region
    $region42: #{tpu_custom_call.1} parent=1 // pred_check
      _
    $region43: #{tpu_custom_call.1} parent=1 // pred_check_branch
      %3866 = sbr.rel (0) target = $region45
    $region44: #{tpu_custom_call.1} parent=1 // pred_region
      %s3868 = ssub.s32 2048, 2048
      %3869 = vsyncadd [#allocation5], %s3868
      %s3870 = sshll.u32 [#allocation4], 4
      %s3871 = int_to_ptr.vmem [resolvable:$true] %s3870
      %3876 = dma.vmem_to_hbm [thread:$0]  %s3871, 2048, %s10, [#allocation5], 128, 128, 8
    $region45: #{tpu_custom_call.1} parent=1 // pred_fallthru
      _
    // Predicated region
    $region46: #{tpu_custom_call.1} parent=1 // pred_check
      _
    $region47: #{tpu_custom_call.1} parent=1 // pred_check_branch
      %3878 = sbr.rel (0) target = $region49
    $region48: #{tpu_custom_call.1} parent=1 // pred_region
      %3879 = dma.done [#allocation5], 2048
    $region49: #{tpu_custom_call.1} parent=1 // pred_fallthru
      _
    %3880 = vsyncpa [#allocation5], 1

</llo_original>
